<compile_context>
chip_gen: v7x
topology: tpu7x:2x2x1
jax: 0.10.0
libtpu: 0.0.40
codegen_flags: <defaults>
</compile_context>

<pallas_src>
import functools

import jax
import jax.numpy as jnp
from jax.experimental import pallas as pl
from jax.experimental.pallas import tpu as pltpu

# CT preprocessing constants (standard DuDoNet-style values).
MIU_WATER = 0.192
WIN_WIDTH = 3000.0
WIN_CENTER = 500.0
# Fused window transform: img = clip(acc * WIN_SCALE + WIN_SHIFT, 0, 1)
WIN_SCALE = 1000.0 / (MIU_WATER * WIN_WIDTH)
WIN_SHIFT = -(1000.0 + WIN_CENTER - WIN_WIDTH * 0.5) / WIN_WIDTH


def _round_up(x, m):
    return ((x + m - 1) // m) * m


def _pick_tile(dim, cap, quantum=128):
    """Largest multiple of `quantum` that divides `dim` and is <= cap.
    `dim` must already be a multiple of `quantum` (padded by the caller)."""
    assert dim % quantum == 0
    best = quantum
    t = quantum
    while t <= min(dim, cap):
        if dim % t == 0:
            best = t
        t += quantum
    return best


# ----------------------------------------------------------------------------
# Stage 1: sino_net (pointwise MLP) + LI trace replacement
#   writes sino_out (f32) once and a bf16 copy for the radon stage
# ----------------------------------------------------------------------------
def _sino_stage_kernel(sino_ref, mt_ref, w1_ref, b1_ref, w2_ref, b2_ref,
                       sino_out_ref, s_bf16_ref, *, hidden):
    sino = sino_ref[...]
    mt = mt_ref[...]

    # sino_net: pointwise 2 -> hidden -> 1 MLP; VPU broadcast FMAs, weights in SMEM.
    pred = jnp.full(sino.shape, b2_ref[0], dtype=jnp.float32)
    for c in range(hidden):
        h = jnp.maximum(sino * w1_ref[c] + mt * w1_ref[hidden + c] + b1_ref[c], 0.0)
        pred = pred + h * w2_ref[c]

    # LI trace replacement: sino_out = pred*mt + sino*(1 - mt)
    s = pred * mt + sino * (1.0 - mt)
    sino_out_ref[...] = s
    s_bf16_ref[...] = s.astype(jnp.bfloat16)


def sino_stage(sino_in, metal_trace, sino_net_params, *, tile_cap=4096):
    """sino_in / metal_trace: (B, A*D) f32.
    Returns (sino_out (B, AD) f32, s_bf16 (B, AD_pad) bf16 with zero-padded tail)."""
    B, AD = sino_in.shape
    w1, b1, w2, b2 = sino_net_params
    hidden = b1.shape[0]

    AD_pad = _round_up(AD, 128)
    if AD_pad != AD:
        # Padded tail: sino=0, mt=0 -> s = 0 there; safe for the radon stage.
        sino_in = jnp.pad(sino_in, ((0, 0), (0, AD_pad - AD)))
        metal_trace = jnp.pad(metal_trace, ((0, 0), (0, AD_pad - AD)))
    tk = _pick_tile(AD_pad, tile_cap)

    smem = pl.BlockSpec(memory_space=pltpu.MemorySpace.SMEM)
    kernel = functools.partial(_sino_stage_kernel, hidden=hidden)

    sino_out, s_bf16 = pl.pallas_call(
        kernel,
        out_shape=(
            jax.ShapeDtypeStruct((B, AD_pad), jnp.float32),
            jax.ShapeDtypeStruct((B, AD_pad), jnp.bfloat16),
        ),
        grid_spec=pltpu.PrefetchScalarGridSpec(
            num_scalar_prefetch=0,
            grid=(AD_pad // tk,),
            in_specs=[
                pl.BlockSpec((B, tk), lambda i: (0, i)),   # sino_in
                pl.BlockSpec((B, tk), lambda i: (0, i)),   # metal_trace
                smem, smem, smem, smem,                    # sino_net weights
            ],
            out_specs=(
                pl.BlockSpec((B, tk), lambda i: (0, i)),   # sino_out (f32)
                pl.BlockSpec((B, tk), lambda i: (0, i)),   # s (bf16, for radon)
            ),
        ),
        compiler_params=pltpu.CompilerParams(
            dimension_semantics=("parallel",)),
    )(sino_in, metal_trace, w1, b1, w2, b2)
    return sino_out[:, :AD], s_bf16


# ----------------------------------------------------------------------------
# Stage 2: tiled dense radon (back-projection) -> CT window -> fused refine_net
# ----------------------------------------------------------------------------
def _radon_refine_kernel(s_ref, radon_ref, li_ref, w1_ref, b1_ref, w2_ref, b2_ref,
                         img_ref, refine_ref, acc_ref, *, hidden):
    k = pl.program_id(1)
    nk = pl.num_programs(1)

    # bf16 stream, f32 accumulation in VMEM scratch.
    partial = jnp.dot(s_ref[...], radon_ref[...], preferred_element_type=jnp.float32)

    @pl.when(k == 0)
    def _():
        acc_ref[...] = partial            # direct write: no zero + += on k==0

    @pl.when(k > 0)
    def _():
        acc_ref[...] += partial

    # Epilogue on the last reduction tile: fused miu2HU + window, then refine_net.
    @pl.when(k == nk - 1)
    def _():
        img = jnp.clip(acc_ref[...] * WIN_SCALE + WIN_SHIFT, 0.0, 1.0)
        img_ref[...] = img

        # refine_net(cat(li_image, sino_image)) as a pointwise 2->hidden->1 MLP.
        li = li_ref[...]
        out = jnp.full(img.shape, b2_ref[0], dtype=jnp.float32)
        for c in range(hidden):
            h = jnp.maximum(li * w1_ref[c] + img * w1_ref[hidden + c] + b1_ref[c],
                            0.0)
            out = out + h * w2_ref[c]
        refine_ref[...] = out


def radon_refine_fused(s_bf16, radon_mat, li_flat, refine_params,
                       *, tk_cap=1024, tn_cap=4096):
    """s_bf16: (B, AD_pad) bf16 (zero-padded), radon_mat: (AD, HW) bf16,
    li_flat: (B, HW) f32. Returns (sino_image (B, HW) f32, refine_out (B, HW) f32)."""
    B, AD_pad = s_bf16.shape
    AD, HW = radon_mat.shape
    assert AD_pad >= AD
    w1, b1, w2, b2 = refine_params
    hidden = b1.shape[0]

    HW_pad = _round_up(HW, 128)
    if (AD_pad != AD) or (HW_pad != HW):
        # TODO(synk): for production, pad the radon matrix once at init (parameter),
        #             not per forward call.
        radon_mat = jnp.pad(radon_mat, ((0, AD_pad - AD), (0, HW_pad - HW)))
    if HW_pad != HW:
        li_flat = jnp.pad(li_flat, ((0, 0), (0, HW_pad - HW)))

    tk = _pick_tile(AD_pad, tk_cap)   # reduction tile (sinogram axis)
    tn = _pick_tile(HW_pad, tn_cap)   # output-column tile (image axis)
    grid = (HW_pad // tn, AD_pad // tk)   # j = image cols (parallel), k = reduction

    smem = pl.BlockSpec(memory_space=pltpu.MemorySpace.SMEM)
    kernel = functools.partial(_radon_refine_kernel, hidden=hidden)

    img, refine = pl.pallas_call(
        kernel,
        out_shape=(
            jax.ShapeDtypeStruct((B, HW_pad), jnp.float32),
            jax.ShapeDtypeStruct((B, HW_pad), jnp.float32),
        ),
        grid_spec=pltpu.PrefetchScalarGridSpec(
            num_scalar_prefetch=0,
            grid=grid,
            in_specs=[
                pl.BlockSpec((B, tk), lambda j, k: (0, k)),    # s (bf16)
                pl.BlockSpec((tk, tn), lambda j, k: (k, j)),   # radon (bf16 stream)
                pl.BlockSpec((B, tn), lambda j, k: (0, j)),    # li_image tile
                smem, smem, smem, smem,                        # refine_net weights
            ],
            out_specs=(
                pl.BlockSpec((B, tn), lambda j, k: (0, j)),    # windowed sino_image
                pl.BlockSpec((B, tn), lambda j, k: (0, j)),    # refine_out
            ),
            scratch_shapes=[pltpu.VMEM((B, tn), jnp.float32)],
        ),
        compiler_params=pltpu.CompilerParams(
            dimension_semantics=("parallel", "arbitrary"),
            vmem_limit_bytes=48 * 1024 * 1024,
        ),
    )(s_bf16, radon_mat, li_flat, w1, b1, w2, b2)
    return img[:, :HW], refine[:, :HW]


# ----------------------------------------------------------------------------
# Full MAR_LI_net forward
# ----------------------------------------------------------------------------
def _flatten_mlp_params(p):
    w1, b1, w2, b2 = p                     # (2,Hh), (Hh,), (Hh,1), (1,)
    return (w1.reshape(-1), b1.reshape(-1), w2.reshape(-1), b2.reshape(-1))


@jax.jit
def mar_li_net_forward(params, sino_in, metal_trace, li_image):
    B, _, A, D = sino_in.shape
    _, _, H, W = li_image.shape
    AD, HW = A * D, H * W

    sino_p = _flatten_mlp_params(params["sino_net"])
    refine_p = _flatten_mlp_params(params["refine_net"])

    # Stage 1: sino_net -> LI trace replacement (writes sino_out once, emits bf16 s).
    sino_out_2d, s_bf16 = sino_stage(
        sino_in.reshape(B, AD), metal_trace.reshape(B, AD), sino_p)

    # Stage 2: radon backprojection -> miu2HU+window -> refine_net (fused epilogue).
    sino_img_2d, refine_2d = radon_refine_fused(
        s_bf16, params["radon"], li_image.reshape(B, HW), refine_p)

    sino_out = sino_out_2d.reshape(B, 1, A, D)
    sino_image = sino_img_2d.reshape(B, 1, H, W)
    image_out = li_image                   # LI skip connection (no image net)
    refine_out = refine_2d.reshape(B, 1, H, W)

    return refine_out, (sino_out, image_out, sino_image)


# ----------------------------------------------------------------------------
# Pure-JAX reference (for correctness check)
# ----------------------------------------------------------------------------
def _mlp_2ch_ref(x0, x1, p):
    w1, b1, w2, b2 = p                     # (2,Hh), (Hh,), (Hh,1), (1,)
    h = jnp.maximum(x0[..., None] * w1[0] + x1[..., None] * w1[1] + b1, 0.0)
    return jnp.sum(h * w2[:, 0], axis=-1) + b2[0]


def reference_forward(params, sino_in, metal_trace, li_image):
    B, _, A, D = sino_in.shape
    _, _, H, W = li_image.shape

    sino_pred = _mlp_2ch_ref(sino_in, metal_trace, params["sino_net"])
    sino_out = sino_pred * metal_trace + sino_in * (1.0 - metal_trace)

    img = jnp.dot(sino_out.reshape(B, A * D).astype(jnp.bfloat16),
                  params["radon"], preferred_element_type=jnp.float32)
    hu = (img - MIU_WATER) / MIU_WATER * 1000.0
    sino_image = jnp.clip((hu - (WIN_CENTER - WIN_WIDTH * 0.5)) / WIN_WIDTH, 0.0, 1.0)
    sino_image = sino_image.reshape(B, 1, H, W)

    image_out = li_image
    refine_out = _mlp_2ch_ref(image_out, sino_image, params["refine_net"])
    return refine_out, (sino_out, image_out, sino_image)


# ----------------------------------------------------------------------------
# Deterministic parameter construction
# ----------------------------------------------------------------------------
def make_params(key, A, D, H, W, hidden=32):
    ks = jax.random.split(key, 9)

    def mlp_params(kw1, kb1, kw2, kb2, cin, ch):
        w1 = jax.random.normal(kw1, (cin, ch), jnp.float32) * (1.0 / jnp.sqrt(cin))
        b1 = jax.random.normal(kb1, (ch,), jnp.float32) * 0.1
        w2 = jax.random.normal(kw2, (ch, 1), jnp.float32) * (1.0 / jnp.sqrt(ch))
        b2 = jax.random.normal(kb2, (1,), jnp.float32) * 0.1
        return (w1, b1, w2, b2)

    # Dense back-projection operator stored/streamed in bf16: the radon matmul is
    # purely HBM-bandwidth bound (B is tiny), so bf16 halves the dominant traffic.
    radon = (jax.random.normal(ks[8], (A * D, H * W), jnp.float32)
             * (1.0 / (A * D))).astype(jnp.bfloat16)
    return {
        "sino_net": mlp_params(ks[0], ks[1], ks[2], ks[3], 2, hidden),
        "refine_net": mlp_params(ks[4], ks[5], ks[6], ks[7], 2, hidden),
        "radon": radon,
    }


if __name__ == "__main__":
    B, A, D, H, W = 2, 16, 16, 16, 16
    key = jax.random.PRNGKey(0)
    k_p, k1, k2, k3 = jax.random.split(key, 4)

    params = make_params(k_p, A, D, H, W, hidden=32)
    sino_in = jax.random.uniform(k1, (B, 1, A, D), jnp.float32) * 0.4
    metal_trace = (jax.random.uniform(k2, (B, 1, A, D), jnp.float32) > 0.7).astype(
        jnp.float32
    )
    li_image = jax.random.uniform(k3, (B, 1, H, W), jnp.float32) * 0.3

    out = mar_li_net_forward(params, sino_in, metal_trace, li_image)
    refine_out, (sino_out, image_out, sino_image) = jax.block_until_ready(out)

    ref = reference_forward(params, sino_in, metal_trace, li_image)
    ref_refine, (ref_sino, ref_img, ref_sim) = jax.block_until_ready(ref)

    assert jnp.allclose(refine_out, ref_refine, atol=5e-4, rtol=5e-4), "refine_out"
    assert jnp.allclose(sino_out, ref_sino, atol=5e-4, rtol=5e-4), "sino_out"
    assert jnp.allclose(image_out, ref_img, atol=1e-6, rtol=1e-6), "image_out"
    assert jnp.allclose(sino_image, ref_sim, atol=5e-4, rtol=5e-4), "sino_image"

    print("KERNEL_OK")
</pallas_src>

<mosaic_0001>
module attributes {stable_mosaic.version = 11 : i64} {
  func.func @_sino_stage_kernel(%arg0: i32, %arg1: memref<2x256xf32, #tpu.memory_space<vmem>>, %arg2: memref<2x256xf32, #tpu.memory_space<vmem>>, %arg3: memref<64xf32, #tpu.memory_space<smem>>, %arg4: memref<32xf32, #tpu.memory_space<smem>>, %arg5: memref<32xf32, #tpu.memory_space<smem>>, %arg6: memref<1xf32, #tpu.memory_space<smem>>, %arg7: memref<2x256xf32, #tpu.memory_space<vmem>>, %arg8: memref<2x256xbf16, #tpu.memory_space<vmem>>) attributes {dimension_semantics = [#tpu.dimension_semantics<parallel>], iteration_bounds = array<i64: 1>, scalar_prefetch = 0 : i64, scratch_operands = 0 : i64, tpu.core_type = #tpu.core_type<tc>, window_params = [{transform_indices = @transform_0, window_bounds = array<i64: 2, 256>}, {transform_indices = @transform_1, window_bounds = array<i64: 2, 256>}, {transform_indices = @transform_2, window_bounds = array<i64: 64>}, {transform_indices = @transform_3, window_bounds = array<i64: 32>}, {transform_indices = @transform_4, window_bounds = array<i64: 32>}, {transform_indices = @transform_5, window_bounds = array<i64: 1>}, {transform_indices = @transform_6, window_bounds = array<i64: 2, 256>}, {transform_indices = @transform_7, window_bounds = array<i64: 2, 256>}]} {
    %c0 = arith.constant 0 : index
    %c0_0 = arith.constant 0 : index
    %0 = vector.load %arg1[%c0, %c0_0] : memref<2x256xf32, #tpu.memory_space<vmem>>, vector<2x256xf32>
    %c0_1 = arith.constant 0 : index
    %c0_2 = arith.constant 0 : index
    %1 = vector.load %arg2[%c0_1, %c0_2] : memref<2x256xf32, #tpu.memory_space<vmem>>, vector<2x256xf32>
    %c0_3 = arith.constant 0 : index
    %2 = memref.load %arg6[%c0_3] : memref<1xf32, #tpu.memory_space<smem>>
    %3 = vector.broadcast %2 : f32 to vector<2x256xf32>
    %c0_4 = arith.constant 0 : index
    %4 = memref.load %arg3[%c0_4] : memref<64xf32, #tpu.memory_space<smem>>
    %5 = vector.broadcast %4 : f32 to vector<2x256xf32>
    %6 = arith.mulf %0, %5 : vector<2x256xf32>
    %c32 = arith.constant 32 : index
    %7 = memref.load %arg3[%c32] : memref<64xf32, #tpu.memory_space<smem>>
    %8 = vector.broadcast %7 : f32 to vector<2x256xf32>
    %9 = arith.mulf %1, %8 : vector<2x256xf32>
    %10 = arith.addf %6, %9 : vector<2x256xf32>
    %c0_5 = arith.constant 0 : index
    %11 = memref.load %arg4[%c0_5] : memref<32xf32, #tpu.memory_space<smem>>
    %12 = vector.broadcast %11 : f32 to vector<2x256xf32>
    %13 = arith.addf %10, %12 : vector<2x256xf32>
    %cst = arith.constant 0.000000e+00 : f32
    %14 = vector.broadcast %cst : f32 to vector<2x256xf32>
    %15 = arith.maximumf %13, %14 : vector<2x256xf32>
    %c0_6 = arith.constant 0 : index
    %16 = memref.load %arg5[%c0_6] : memref<32xf32, #tpu.memory_space<smem>>
    %17 = vector.broadcast %16 : f32 to vector<2x256xf32>
    %18 = arith.mulf %15, %17 : vector<2x256xf32>
    %19 = arith.addf %3, %18 : vector<2x256xf32>
    %c1 = arith.constant 1 : index
    %20 = memref.load %arg3[%c1] : memref<64xf32, #tpu.memory_space<smem>>
    %21 = vector.broadcast %20 : f32 to vector<2x256xf32>
    %22 = arith.mulf %0, %21 : vector<2x256xf32>
    %c33 = arith.constant 33 : index
    %23 = memref.load %arg3[%c33] : memref<64xf32, #tpu.memory_space<smem>>
    %24 = vector.broadcast %23 : f32 to vector<2x256xf32>
    %25 = arith.mulf %1, %24 : vector<2x256xf32>
    %26 = arith.addf %22, %25 : vector<2x256xf32>
    %c1_7 = arith.constant 1 : index
    %27 = memref.load %arg4[%c1_7] : memref<32xf32, #tpu.memory_space<smem>>
    %28 = vector.broadcast %27 : f32 to vector<2x256xf32>
    %29 = arith.addf %26, %28 : vector<2x256xf32>
    %cst_8 = arith.constant 0.000000e+00 : f32
    %30 = vector.broadcast %cst_8 : f32 to vector<2x256xf32>
    %31 = arith.maximumf %29, %30 : vector<2x256xf32>
    %c1_9 = arith.constant 1 : index
    %32 = memref.load %arg5[%c1_9] : memref<32xf32, #tpu.memory_space<smem>>
    %33 = vector.broadcast %32 : f32 to vector<2x256xf32>
    %34 = arith.mulf %31, %33 : vector<2x256xf32>
    %35 = arith.addf %19, %34 : vector<2x256xf32>
    %c2 = arith.constant 2 : index
    %36 = memref.load %arg3[%c2] : memref<64xf32, #tpu.memory_space<smem>>
    %37 = vector.broadcast %36 : f32 to vector<2x256xf32>
    %38 = arith.mulf %0, %37 : vector<2x256xf32>
    %c34 = arith.constant 34 : index
    %39 = memref.load %arg3[%c34] : memref<64xf32, #tpu.memory_space<smem>>
    %40 = vector.broadcast %39 : f32 to vector<2x256xf32>
    %41 = arith.mulf %1, %40 : vector<2x256xf32>
    %42 = arith.addf %38, %41 : vector<2x256xf32>
    %c2_10 = arith.constant 2 : index
    %43 = memref.load %arg4[%c2_10] : memref<32xf32, #tpu.memory_space<smem>>
    %44 = vector.broadcast %43 : f32 to vector<2x256xf32>
    %45 = arith.addf %42, %44 : vector<2x256xf32>
    %cst_11 = arith.constant 0.000000e+00 : f32
    %46 = vector.broadcast %cst_11 : f32 to vector<2x256xf32>
    %47 = arith.maximumf %45, %46 : vector<2x256xf32>
    %c2_12 = arith.constant 2 : index
    %48 = memref.load %arg5[%c2_12] : memref<32xf32, #tpu.memory_space<smem>>
    %49 = vector.broadcast %48 : f32 to vector<2x256xf32>
    %50 = arith.mulf %47, %49 : vector<2x256xf32>
    %51 = arith.addf %35, %50 : vector<2x256xf32>
    %c3 = arith.constant 3 : index
    %52 = memref.load %arg3[%c3] : memref<64xf32, #tpu.memory_space<smem>>
    %53 = vector.broadcast %52 : f32 to vector<2x256xf32>
    %54 = arith.mulf %0, %53 : vector<2x256xf32>
    %c35 = arith.constant 35 : index
    %55 = memref.load %arg3[%c35] : memref<64xf32, #tpu.memory_space<smem>>
    %56 = vector.broadcast %55 : f32 to vector<2x256xf32>
    %57 = arith.mulf %1, %56 : vector<2x256xf32>
    %58 = arith.addf %54, %57 : vector<2x256xf32>
    %c3_13 = arith.constant 3 : index
    %59 = memref.load %arg4[%c3_13] : memref<32xf32, #tpu.memory_space<smem>>
    %60 = vector.broadcast %59 : f32 to vector<2x256xf32>
    %61 = arith.addf %58, %60 : vector<2x256xf32>
    %cst_14 = arith.constant 0.000000e+00 : f32
    %62 = vector.broadcast %cst_14 : f32 to vector<2x256xf32>
    %63 = arith.maximumf %61, %62 : vector<2x256xf32>
    %c3_15 = arith.constant 3 : index
    %64 = memref.load %arg5[%c3_15] : memref<32xf32, #tpu.memory_space<smem>>
    %65 = vector.broadcast %64 : f32 to vector<2x256xf32>
    %66 = arith.mulf %63, %65 : vector<2x256xf32>
    %67 = arith.addf %51, %66 : vector<2x256xf32>
    %c4 = arith.constant 4 : index
    %68 = memref.load %arg3[%c4] : memref<64xf32, #tpu.memory_space<smem>>
    %69 = vector.broadcast %68 : f32 to vector<2x256xf32>
    %70 = arith.mulf %0, %69 : vector<2x256xf32>
    %c36 = arith.constant 36 : index
    %71 = memref.load %arg3[%c36] : memref<64xf32, #tpu.memory_space<smem>>
    %72 = vector.broadcast %71 : f32 to vector<2x256xf32>
    %73 = arith.mulf %1, %72 : vector<2x256xf32>
    %74 = arith.addf %70, %73 : vector<2x256xf32>
    %c4_16 = arith.constant 4 : index
    %75 = memref.load %arg4[%c4_16] : memref<32xf32, #tpu.memory_space<smem>>
    %76 = vector.broadcast %75 : f32 to vector<2x256xf32>
    %77 = arith.addf %74, %76 : vector<2x256xf32>
    %cst_17 = arith.constant 0.000000e+00 : f32
    %78 = vector.broadcast %cst_17 : f32 to vector<2x256xf32>
    %79 = arith.maximumf %77, %78 : vector<2x256xf32>
    %c4_18 = arith.constant 4 : index
    %80 = memref.load %arg5[%c4_18] : memref<32xf32, #tpu.memory_space<smem>>
    %81 = vector.broadcast %80 : f32 to vector<2x256xf32>
    %82 = arith.mulf %79, %81 : vector<2x256xf32>
    %83 = arith.addf %67, %82 : vector<2x256xf32>
    %c5 = arith.constant 5 : index
    %84 = memref.load %arg3[%c5] : memref<64xf32, #tpu.memory_space<smem>>
    %85 = vector.broadcast %84 : f32 to vector<2x256xf32>
    %86 = arith.mulf %0, %85 : vector<2x256xf32>
    %c37 = arith.constant 37 : index
    %87 = memref.load %arg3[%c37] : memref<64xf32, #tpu.memory_space<smem>>
    %88 = vector.broadcast %87 : f32 to vector<2x256xf32>
    %89 = arith.mulf %1, %88 : vector<2x256xf32>
    %90 = arith.addf %86, %89 : vector<2x256xf32>
    %c5_19 = arith.constant 5 : index
    %91 = memref.load %arg4[%c5_19] : memref<32xf32, #tpu.memory_space<smem>>
    %92 = vector.broadcast %91 : f32 to vector<2x256xf32>
    %93 = arith.addf %90, %92 : vector<2x256xf32>
    %cst_20 = arith.constant 0.000000e+00 : f32
    %94 = vector.broadcast %cst_20 : f32 to vector<2x256xf32>
    %95 = arith.maximumf %93, %94 : vector<2x256xf32>
    %c5_21 = arith.constant 5 : index
    %96 = memref.load %arg5[%c5_21] : memref<32xf32, #tpu.memory_space<smem>>
    %97 = vector.broadcast %96 : f32 to vector<2x256xf32>
    %98 = arith.mulf %95, %97 : vector<2x256xf32>
    %99 = arith.addf %83, %98 : vector<2x256xf32>
    %c6 = arith.constant 6 : index
    %100 = memref.load %arg3[%c6] : memref<64xf32, #tpu.memory_space<smem>>
    %101 = vector.broadcast %100 : f32 to vector<2x256xf32>
    %102 = arith.mulf %0, %101 : vector<2x256xf32>
    %c38 = arith.constant 38 : index
    %103 = memref.load %arg3[%c38] : memref<64xf32, #tpu.memory_space<smem>>
    %104 = vector.broadcast %103 : f32 to vector<2x256xf32>
    %105 = arith.mulf %1, %104 : vector<2x256xf32>
    %106 = arith.addf %102, %105 : vector<2x256xf32>
    %c6_22 = arith.constant 6 : index
    %107 = memref.load %arg4[%c6_22] : memref<32xf32, #tpu.memory_space<smem>>
    %108 = vector.broadcast %107 : f32 to vector<2x256xf32>
    %109 = arith.addf %106, %108 : vector<2x256xf32>
    %cst_23 = arith.constant 0.000000e+00 : f32
    %110 = vector.broadcast %cst_23 : f32 to vector<2x256xf32>
    %111 = arith.maximumf %109, %110 : vector<2x256xf32>
    %c6_24 = arith.constant 6 : index
    %112 = memref.load %arg5[%c6_24] : memref<32xf32, #tpu.memory_space<smem>>
    %113 = vector.broadcast %112 : f32 to vector<2x256xf32>
    %114 = arith.mulf %111, %113 : vector<2x256xf32>
    %115 = arith.addf %99, %114 : vector<2x256xf32>
    %c7 = arith.constant 7 : index
    %116 = memref.load %arg3[%c7] : memref<64xf32, #tpu.memory_space<smem>>
    %117 = vector.broadcast %116 : f32 to vector<2x256xf32>
    %118 = arith.mulf %0, %117 : vector<2x256xf32>
    %c39 = arith.constant 39 : index
    %119 = memref.load %arg3[%c39] : memref<64xf32, #tpu.memory_space<smem>>
    %120 = vector.broadcast %119 : f32 to vector<2x256xf32>
    %121 = arith.mulf %1, %120 : vector<2x256xf32>
    %122 = arith.addf %118, %121 : vector<2x256xf32>
    %c7_25 = arith.constant 7 : index
    %123 = memref.load %arg4[%c7_25] : memref<32xf32, #tpu.memory_space<smem>>
    %124 = vector.broadcast %123 : f32 to vector<2x256xf32>
    %125 = arith.addf %122, %124 : vector<2x256xf32>
    %cst_26 = arith.constant 0.000000e+00 : f32
    %126 = vector.broadcast %cst_26 : f32 to vector<2x256xf32>
    %127 = arith.maximumf %125, %126 : vector<2x256xf32>
    %c7_27 = arith.constant 7 : index
    %128 = memref.load %arg5[%c7_27] : memref<32xf32, #tpu.memory_space<smem>>
    %129 = vector.broadcast %128 : f32 to vector<2x256xf32>
    %130 = arith.mulf %127, %129 : vector<2x256xf32>
    %131 = arith.addf %115, %130 : vector<2x256xf32>
    %c8 = arith.constant 8 : index
    %132 = memref.load %arg3[%c8] : memref<64xf32, #tpu.memory_space<smem>>
    %133 = vector.broadcast %132 : f32 to vector<2x256xf32>
    %134 = arith.mulf %0, %133 : vector<2x256xf32>
    %c40 = arith.constant 40 : index
    %135 = memref.load %arg3[%c40] : memref<64xf32, #tpu.memory_space<smem>>
    %136 = vector.broadcast %135 : f32 to vector<2x256xf32>
    %137 = arith.mulf %1, %136 : vector<2x256xf32>
    %138 = arith.addf %134, %137 : vector<2x256xf32>
    %c8_28 = arith.constant 8 : index
    %139 = memref.load %arg4[%c8_28] : memref<32xf32, #tpu.memory_space<smem>>
    %140 = vector.broadcast %139 : f32 to vector<2x256xf32>
    %141 = arith.addf %138, %140 : vector<2x256xf32>
    %cst_29 = arith.constant 0.000000e+00 : f32
    %142 = vector.broadcast %cst_29 : f32 to vector<2x256xf32>
    %143 = arith.maximumf %141, %142 : vector<2x256xf32>
    %c8_30 = arith.constant 8 : index
    %144 = memref.load %arg5[%c8_30] : memref<32xf32, #tpu.memory_space<smem>>
    %145 = vector.broadcast %144 : f32 to vector<2x256xf32>
    %146 = arith.mulf %143, %145 : vector<2x256xf32>
    %147 = arith.addf %131, %146 : vector<2x256xf32>
    %c9 = arith.constant 9 : index
    %148 = memref.load %arg3[%c9] : memref<64xf32, #tpu.memory_space<smem>>
    %149 = vector.broadcast %148 : f32 to vector<2x256xf32>
    %150 = arith.mulf %0, %149 : vector<2x256xf32>
    %c41 = arith.constant 41 : index
    %151 = memref.load %arg3[%c41] : memref<64xf32, #tpu.memory_space<smem>>
    %152 = vector.broadcast %151 : f32 to vector<2x256xf32>
    %153 = arith.mulf %1, %152 : vector<2x256xf32>
    %154 = arith.addf %150, %153 : vector<2x256xf32>
    %c9_31 = arith.constant 9 : index
    %155 = memref.load %arg4[%c9_31] : memref<32xf32, #tpu.memory_space<smem>>
    %156 = vector.broadcast %155 : f32 to vector<2x256xf32>
    %157 = arith.addf %154, %156 : vector<2x256xf32>
    %cst_32 = arith.constant 0.000000e+00 : f32
    %158 = vector.broadcast %cst_32 : f32 to vector<2x256xf32>
    %159 = arith.maximumf %157, %158 : vector<2x256xf32>
    %c9_33 = arith.constant 9 : index
    %160 = memref.load %arg5[%c9_33] : memref<32xf32, #tpu.memory_space<smem>>
    %161 = vector.broadcast %160 : f32 to vector<2x256xf32>
    %162 = arith.mulf %159, %161 : vector<2x256xf32>
    %163 = arith.addf %147, %162 : vector<2x256xf32>
    %c10 = arith.constant 10 : index
    %164 = memref.load %arg3[%c10] : memref<64xf32, #tpu.memory_space<smem>>
    %165 = vector.broadcast %164 : f32 to vector<2x256xf32>
    %166 = arith.mulf %0, %165 : vector<2x256xf32>
    %c42 = arith.constant 42 : index
    %167 = memref.load %arg3[%c42] : memref<64xf32, #tpu.memory_space<smem>>
    %168 = vector.broadcast %167 : f32 to vector<2x256xf32>
    %169 = arith.mulf %1, %168 : vector<2x256xf32>
    %170 = arith.addf %166, %169 : vector<2x256xf32>
    %c10_34 = arith.constant 10 : index
    %171 = memref.load %arg4[%c10_34] : memref<32xf32, #tpu.memory_space<smem>>
    %172 = vector.broadcast %171 : f32 to vector<2x256xf32>
    %173 = arith.addf %170, %172 : vector<2x256xf32>
    %cst_35 = arith.constant 0.000000e+00 : f32
    %174 = vector.broadcast %cst_35 : f32 to vector<2x256xf32>
    %175 = arith.maximumf %173, %174 : vector<2x256xf32>
    %c10_36 = arith.constant 10 : index
    %176 = memref.load %arg5[%c10_36] : memref<32xf32, #tpu.memory_space<smem>>
    %177 = vector.broadcast %176 : f32 to vector<2x256xf32>
    %178 = arith.mulf %175, %177 : vector<2x256xf32>
    %179 = arith.addf %163, %178 : vector<2x256xf32>
    %c11 = arith.constant 11 : index
    %180 = memref.load %arg3[%c11] : memref<64xf32, #tpu.memory_space<smem>>
    %181 = vector.broadcast %180 : f32 to vector<2x256xf32>
    %182 = arith.mulf %0, %181 : vector<2x256xf32>
    %c43 = arith.constant 43 : index
    %183 = memref.load %arg3[%c43] : memref<64xf32, #tpu.memory_space<smem>>
    %184 = vector.broadcast %183 : f32 to vector<2x256xf32>
    %185 = arith.mulf %1, %184 : vector<2x256xf32>
    %186 = arith.addf %182, %185 : vector<2x256xf32>
    %c11_37 = arith.constant 11 : index
    %187 = memref.load %arg4[%c11_37] : memref<32xf32, #tpu.memory_space<smem>>
    %188 = vector.broadcast %187 : f32 to vector<2x256xf32>
    %189 = arith.addf %186, %188 : vector<2x256xf32>
    %cst_38 = arith.constant 0.000000e+00 : f32
    %190 = vector.broadcast %cst_38 : f32 to vector<2x256xf32>
    %191 = arith.maximumf %189, %190 : vector<2x256xf32>
    %c11_39 = arith.constant 11 : index
    %192 = memref.load %arg5[%c11_39] : memref<32xf32, #tpu.memory_space<smem>>
    %193 = vector.broadcast %192 : f32 to vector<2x256xf32>
    %194 = arith.mulf %191, %193 : vector<2x256xf32>
    %195 = arith.addf %179, %194 : vector<2x256xf32>
    %c12 = arith.constant 12 : index
    %196 = memref.load %arg3[%c12] : memref<64xf32, #tpu.memory_space<smem>>
    %197 = vector.broadcast %196 : f32 to vector<2x256xf32>
    %198 = arith.mulf %0, %197 : vector<2x256xf32>
    %c44 = arith.constant 44 : index
    %199 = memref.load %arg3[%c44] : memref<64xf32, #tpu.memory_space<smem>>
    %200 = vector.broadcast %199 : f32 to vector<2x256xf32>
    %201 = arith.mulf %1, %200 : vector<2x256xf32>
    %202 = arith.addf %198, %201 : vector<2x256xf32>
    %c12_40 = arith.constant 12 : index
    %203 = memref.load %arg4[%c12_40] : memref<32xf32, #tpu.memory_space<smem>>
    %204 = vector.broadcast %203 : f32 to vector<2x256xf32>
    %205 = arith.addf %202, %204 : vector<2x256xf32>
    %cst_41 = arith.constant 0.000000e+00 : f32
    %206 = vector.broadcast %cst_41 : f32 to vector<2x256xf32>
    %207 = arith.maximumf %205, %206 : vector<2x256xf32>
    %c12_42 = arith.constant 12 : index
    %208 = memref.load %arg5[%c12_42] : memref<32xf32, #tpu.memory_space<smem>>
    %209 = vector.broadcast %208 : f32 to vector<2x256xf32>
    %210 = arith.mulf %207, %209 : vector<2x256xf32>
    %211 = arith.addf %195, %210 : vector<2x256xf32>
    %c13 = arith.constant 13 : index
    %212 = memref.load %arg3[%c13] : memref<64xf32, #tpu.memory_space<smem>>
    %213 = vector.broadcast %212 : f32 to vector<2x256xf32>
    %214 = arith.mulf %0, %213 : vector<2x256xf32>
    %c45 = arith.constant 45 : index
    %215 = memref.load %arg3[%c45] : memref<64xf32, #tpu.memory_space<smem>>
    %216 = vector.broadcast %215 : f32 to vector<2x256xf32>
    %217 = arith.mulf %1, %216 : vector<2x256xf32>
    %218 = arith.addf %214, %217 : vector<2x256xf32>
    %c13_43 = arith.constant 13 : index
    %219 = memref.load %arg4[%c13_43] : memref<32xf32, #tpu.memory_space<smem>>
    %220 = vector.broadcast %219 : f32 to vector<2x256xf32>
    %221 = arith.addf %218, %220 : vector<2x256xf32>
    %cst_44 = arith.constant 0.000000e+00 : f32
    %222 = vector.broadcast %cst_44 : f32 to vector<2x256xf32>
    %223 = arith.maximumf %221, %222 : vector<2x256xf32>
    %c13_45 = arith.constant 13 : index
    %224 = memref.load %arg5[%c13_45] : memref<32xf32, #tpu.memory_space<smem>>
    %225 = vector.broadcast %224 : f32 to vector<2x256xf32>
    %226 = arith.mulf %223, %225 : vector<2x256xf32>
    %227 = arith.addf %211, %226 : vector<2x256xf32>
    %c14 = arith.constant 14 : index
    %228 = memref.load %arg3[%c14] : memref<64xf32, #tpu.memory_space<smem>>
    %229 = vector.broadcast %228 : f32 to vector<2x256xf32>
    %230 = arith.mulf %0, %229 : vector<2x256xf32>
    %c46 = arith.constant 46 : index
    %231 = memref.load %arg3[%c46] : memref<64xf32, #tpu.memory_space<smem>>
    %232 = vector.broadcast %231 : f32 to vector<2x256xf32>
    %233 = arith.mulf %1, %232 : vector<2x256xf32>
    %234 = arith.addf %230, %233 : vector<2x256xf32>
    %c14_46 = arith.constant 14 : index
    %235 = memref.load %arg4[%c14_46] : memref<32xf32, #tpu.memory_space<smem>>
    %236 = vector.broadcast %235 : f32 to vector<2x256xf32>
    %237 = arith.addf %234, %236 : vector<2x256xf32>
    %cst_47 = arith.constant 0.000000e+00 : f32
    %238 = vector.broadcast %cst_47 : f32 to vector<2x256xf32>
    %239 = arith.maximumf %237, %238 : vector<2x256xf32>
    %c14_48 = arith.constant 14 : index
    %240 = memref.load %arg5[%c14_48] : memref<32xf32, #tpu.memory_space<smem>>
    %241 = vector.broadcast %240 : f32 to vector<2x256xf32>
    %242 = arith.mulf %239, %241 : vector<2x256xf32>
    %243 = arith.addf %227, %242 : vector<2x256xf32>
    %c15 = arith.constant 15 : index
    %244 = memref.load %arg3[%c15] : memref<64xf32, #tpu.memory_space<smem>>
    %245 = vector.broadcast %244 : f32 to vector<2x256xf32>
    %246 = arith.mulf %0, %245 : vector<2x256xf32>
    %c47 = arith.constant 47 : index
    %247 = memref.load %arg3[%c47] : memref<64xf32, #tpu.memory_space<smem>>
    %248 = vector.broadcast %247 : f32 to vector<2x256xf32>
    %249 = arith.mulf %1, %248 : vector<2x256xf32>
    %250 = arith.addf %246, %249 : vector<2x256xf32>
    %c15_49 = arith.constant 15 : index
    %251 = memref.load %arg4[%c15_49] : memref<32xf32, #tpu.memory_space<smem>>
    %252 = vector.broadcast %251 : f32 to vector<2x256xf32>
    %253 = arith.addf %250, %252 : vector<2x256xf32>
    %cst_50 = arith.constant 0.000000e+00 : f32
    %254 = vector.broadcast %cst_50 : f32 to vector<2x256xf32>
    %255 = arith.maximumf %253, %254 : vector<2x256xf32>
    %c15_51 = arith.constant 15 : index
    %256 = memref.load %arg5[%c15_51] : memref<32xf32, #tpu.memory_space<smem>>
    %257 = vector.broadcast %256 : f32 to vector<2x256xf32>
    %258 = arith.mulf %255, %257 : vector<2x256xf32>
    %259 = arith.addf %243, %258 : vector<2x256xf32>
    %c16 = arith.constant 16 : index
    %260 = memref.load %arg3[%c16] : memref<64xf32, #tpu.memory_space<smem>>
    %261 = vector.broadcast %260 : f32 to vector<2x256xf32>
    %262 = arith.mulf %0, %261 : vector<2x256xf32>
    %c48 = arith.constant 48 : index
    %263 = memref.load %arg3[%c48] : memref<64xf32, #tpu.memory_space<smem>>
    %264 = vector.broadcast %263 : f32 to vector<2x256xf32>
    %265 = arith.mulf %1, %264 : vector<2x256xf32>
    %266 = arith.addf %262, %265 : vector<2x256xf32>
    %c16_52 = arith.constant 16 : index
    %267 = memref.load %arg4[%c16_52] : memref<32xf32, #tpu.memory_space<smem>>
    %268 = vector.broadcast %267 : f32 to vector<2x256xf32>
    %269 = arith.addf %266, %268 : vector<2x256xf32>
    %cst_53 = arith.constant 0.000000e+00 : f32
    %270 = vector.broadcast %cst_53 : f32 to vector<2x256xf32>
    %271 = arith.maximumf %269, %270 : vector<2x256xf32>
    %c16_54 = arith.constant 16 : index
    %272 = memref.load %arg5[%c16_54] : memref<32xf32, #tpu.memory_space<smem>>
    %273 = vector.broadcast %272 : f32 to vector<2x256xf32>
    %274 = arith.mulf %271, %273 : vector<2x256xf32>
    %275 = arith.addf %259, %274 : vector<2x256xf32>
    %c17 = arith.constant 17 : index
    %276 = memref.load %arg3[%c17] : memref<64xf32, #tpu.memory_space<smem>>
    %277 = vector.broadcast %276 : f32 to vector<2x256xf32>
    %278 = arith.mulf %0, %277 : vector<2x256xf32>
    %c49 = arith.constant 49 : index
    %279 = memref.load %arg3[%c49] : memref<64xf32, #tpu.memory_space<smem>>
    %280 = vector.broadcast %279 : f32 to vector<2x256xf32>
    %281 = arith.mulf %1, %280 : vector<2x256xf32>
    %282 = arith.addf %278, %281 : vector<2x256xf32>
    %c17_55 = arith.constant 17 : index
    %283 = memref.load %arg4[%c17_55] : memref<32xf32, #tpu.memory_space<smem>>
    %284 = vector.broadcast %283 : f32 to vector<2x256xf32>
    %285 = arith.addf %282, %284 : vector<2x256xf32>
    %cst_56 = arith.constant 0.000000e+00 : f32
    %286 = vector.broadcast %cst_56 : f32 to vector<2x256xf32>
    %287 = arith.maximumf %285, %286 : vector<2x256xf32>
    %c17_57 = arith.constant 17 : index
    %288 = memref.load %arg5[%c17_57] : memref<32xf32, #tpu.memory_space<smem>>
    %289 = vector.broadcast %288 : f32 to vector<2x256xf32>
    %290 = arith.mulf %287, %289 : vector<2x256xf32>
    %291 = arith.addf %275, %290 : vector<2x256xf32>
    %c18 = arith.constant 18 : index
    %292 = memref.load %arg3[%c18] : memref<64xf32, #tpu.memory_space<smem>>
    %293 = vector.broadcast %292 : f32 to vector<2x256xf32>
    %294 = arith.mulf %0, %293 : vector<2x256xf32>
    %c50 = arith.constant 50 : index
    %295 = memref.load %arg3[%c50] : memref<64xf32, #tpu.memory_space<smem>>
    %296 = vector.broadcast %295 : f32 to vector<2x256xf32>
    %297 = arith.mulf %1, %296 : vector<2x256xf32>
    %298 = arith.addf %294, %297 : vector<2x256xf32>
    %c18_58 = arith.constant 18 : index
    %299 = memref.load %arg4[%c18_58] : memref<32xf32, #tpu.memory_space<smem>>
    %300 = vector.broadcast %299 : f32 to vector<2x256xf32>
    %301 = arith.addf %298, %300 : vector<2x256xf32>
    %cst_59 = arith.constant 0.000000e+00 : f32
    %302 = vector.broadcast %cst_59 : f32 to vector<2x256xf32>
    %303 = arith.maximumf %301, %302 : vector<2x256xf32>
    %c18_60 = arith.constant 18 : index
    %304 = memref.load %arg5[%c18_60] : memref<32xf32, #tpu.memory_space<smem>>
    %305 = vector.broadcast %304 : f32 to vector<2x256xf32>
    %306 = arith.mulf %303, %305 : vector<2x256xf32>
    %307 = arith.addf %291, %306 : vector<2x256xf32>
    %c19 = arith.constant 19 : index
    %308 = memref.load %arg3[%c19] : memref<64xf32, #tpu.memory_space<smem>>
    %309 = vector.broadcast %308 : f32 to vector<2x256xf32>
    %310 = arith.mulf %0, %309 : vector<2x256xf32>
    %c51 = arith.constant 51 : index
    %311 = memref.load %arg3[%c51] : memref<64xf32, #tpu.memory_space<smem>>
    %312 = vector.broadcast %311 : f32 to vector<2x256xf32>
    %313 = arith.mulf %1, %312 : vector<2x256xf32>
    %314 = arith.addf %310, %313 : vector<2x256xf32>
    %c19_61 = arith.constant 19 : index
    %315 = memref.load %arg4[%c19_61] : memref<32xf32, #tpu.memory_space<smem>>
    %316 = vector.broadcast %315 : f32 to vector<2x256xf32>
    %317 = arith.addf %314, %316 : vector<2x256xf32>
    %cst_62 = arith.constant 0.000000e+00 : f32
    %318 = vector.broadcast %cst_62 : f32 to vector<2x256xf32>
    %319 = arith.maximumf %317, %318 : vector<2x256xf32>
    %c19_63 = arith.constant 19 : index
    %320 = memref.load %arg5[%c19_63] : memref<32xf32, #tpu.memory_space<smem>>
    %321 = vector.broadcast %320 : f32 to vector<2x256xf32>
    %322 = arith.mulf %319, %321 : vector<2x256xf32>
    %323 = arith.addf %307, %322 : vector<2x256xf32>
    %c20 = arith.constant 20 : index
    %324 = memref.load %arg3[%c20] : memref<64xf32, #tpu.memory_space<smem>>
    %325 = vector.broadcast %324 : f32 to vector<2x256xf32>
    %326 = arith.mulf %0, %325 : vector<2x256xf32>
    %c52 = arith.constant 52 : index
    %327 = memref.load %arg3[%c52] : memref<64xf32, #tpu.memory_space<smem>>
    %328 = vector.broadcast %327 : f32 to vector<2x256xf32>
    %329 = arith.mulf %1, %328 : vector<2x256xf32>
    %330 = arith.addf %326, %329 : vector<2x256xf32>
    %c20_64 = arith.constant 20 : index
    %331 = memref.load %arg4[%c20_64] : memref<32xf32, #tpu.memory_space<smem>>
    %332 = vector.broadcast %331 : f32 to vector<2x256xf32>
    %333 = arith.addf %330, %332 : vector<2x256xf32>
    %cst_65 = arith.constant 0.000000e+00 : f32
    %334 = vector.broadcast %cst_65 : f32 to vector<2x256xf32>
    %335 = arith.maximumf %333, %334 : vector<2x256xf32>
    %c20_66 = arith.constant 20 : index
    %336 = memref.load %arg5[%c20_66] : memref<32xf32, #tpu.memory_space<smem>>
    %337 = vector.broadcast %336 : f32 to vector<2x256xf32>
    %338 = arith.mulf %335, %337 : vector<2x256xf32>
    %339 = arith.addf %323, %338 : vector<2x256xf32>
    %c21 = arith.constant 21 : index
    %340 = memref.load %arg3[%c21] : memref<64xf32, #tpu.memory_space<smem>>
    %341 = vector.broadcast %340 : f32 to vector<2x256xf32>
    %342 = arith.mulf %0, %341 : vector<2x256xf32>
    %c53 = arith.constant 53 : index
    %343 = memref.load %arg3[%c53] : memref<64xf32, #tpu.memory_space<smem>>
    %344 = vector.broadcast %343 : f32 to vector<2x256xf32>
    %345 = arith.mulf %1, %344 : vector<2x256xf32>
    %346 = arith.addf %342, %345 : vector<2x256xf32>
    %c21_67 = arith.constant 21 : index
    %347 = memref.load %arg4[%c21_67] : memref<32xf32, #tpu.memory_space<smem>>
    %348 = vector.broadcast %347 : f32 to vector<2x256xf32>
    %349 = arith.addf %346, %348 : vector<2x256xf32>
    %cst_68 = arith.constant 0.000000e+00 : f32
    %350 = vector.broadcast %cst_68 : f32 to vector<2x256xf32>
    %351 = arith.maximumf %349, %350 : vector<2x256xf32>
    %c21_69 = arith.constant 21 : index
    %352 = memref.load %arg5[%c21_69] : memref<32xf32, #tpu.memory_space<smem>>
    %353 = vector.broadcast %352 : f32 to vector<2x256xf32>
    %354 = arith.mulf %351, %353 : vector<2x256xf32>
    %355 = arith.addf %339, %354 : vector<2x256xf32>
    %c22 = arith.constant 22 : index
    %356 = memref.load %arg3[%c22] : memref<64xf32, #tpu.memory_space<smem>>
    %357 = vector.broadcast %356 : f32 to vector<2x256xf32>
    %358 = arith.mulf %0, %357 : vector<2x256xf32>
    %c54 = arith.constant 54 : index
    %359 = memref.load %arg3[%c54] : memref<64xf32, #tpu.memory_space<smem>>
    %360 = vector.broadcast %359 : f32 to vector<2x256xf32>
    %361 = arith.mulf %1, %360 : vector<2x256xf32>
    %362 = arith.addf %358, %361 : vector<2x256xf32>
    %c22_70 = arith.constant 22 : index
    %363 = memref.load %arg4[%c22_70] : memref<32xf32, #tpu.memory_space<smem>>
    %364 = vector.broadcast %363 : f32 to vector<2x256xf32>
    %365 = arith.addf %362, %364 : vector<2x256xf32>
    %cst_71 = arith.constant 0.000000e+00 : f32
    %366 = vector.broadcast %cst_71 : f32 to vector<2x256xf32>
    %367 = arith.maximumf %365, %366 : vector<2x256xf32>
    %c22_72 = arith.constant 22 : index
    %368 = memref.load %arg5[%c22_72] : memref<32xf32, #tpu.memory_space<smem>>
    %369 = vector.broadcast %368 : f32 to vector<2x256xf32>
    %370 = arith.mulf %367, %369 : vector<2x256xf32>
    %371 = arith.addf %355, %370 : vector<2x256xf32>
    %c23 = arith.constant 23 : index
    %372 = memref.load %arg3[%c23] : memref<64xf32, #tpu.memory_space<smem>>
    %373 = vector.broadcast %372 : f32 to vector<2x256xf32>
    %374 = arith.mulf %0, %373 : vector<2x256xf32>
    %c55 = arith.constant 55 : index
    %375 = memref.load %arg3[%c55] : memref<64xf32, #tpu.memory_space<smem>>
    %376 = vector.broadcast %375 : f32 to vector<2x256xf32>
    %377 = arith.mulf %1, %376 : vector<2x256xf32>
    %378 = arith.addf %374, %377 : vector<2x256xf32>
    %c23_73 = arith.constant 23 : index
    %379 = memref.load %arg4[%c23_73] : memref<32xf32, #tpu.memory_space<smem>>
    %380 = vector.broadcast %379 : f32 to vector<2x256xf32>
    %381 = arith.addf %378, %380 : vector<2x256xf32>
    %cst_74 = arith.constant 0.000000e+00 : f32
    %382 = vector.broadcast %cst_74 : f32 to vector<2x256xf32>
    %383 = arith.maximumf %381, %382 : vector<2x256xf32>
    %c23_75 = arith.constant 23 : index
    %384 = memref.load %arg5[%c23_75] : memref<32xf32, #tpu.memory_space<smem>>
    %385 = vector.broadcast %384 : f32 to vector<2x256xf32>
    %386 = arith.mulf %383, %385 : vector<2x256xf32>
    %387 = arith.addf %371, %386 : vector<2x256xf32>
    %c24 = arith.constant 24 : index
    %388 = memref.load %arg3[%c24] : memref<64xf32, #tpu.memory_space<smem>>
    %389 = vector.broadcast %388 : f32 to vector<2x256xf32>
    %390 = arith.mulf %0, %389 : vector<2x256xf32>
    %c56 = arith.constant 56 : index
    %391 = memref.load %arg3[%c56] : memref<64xf32, #tpu.memory_space<smem>>
    %392 = vector.broadcast %391 : f32 to vector<2x256xf32>
    %393 = arith.mulf %1, %392 : vector<2x256xf32>
    %394 = arith.addf %390, %393 : vector<2x256xf32>
    %c24_76 = arith.constant 24 : index
    %395 = memref.load %arg4[%c24_76] : memref<32xf32, #tpu.memory_space<smem>>
    %396 = vector.broadcast %395 : f32 to vector<2x256xf32>
    %397 = arith.addf %394, %396 : vector<2x256xf32>
    %cst_77 = arith.constant 0.000000e+00 : f32
    %398 = vector.broadcast %cst_77 : f32 to vector<2x256xf32>
    %399 = arith.maximumf %397, %398 : vector<2x256xf32>
    %c24_78 = arith.constant 24 : index
    %400 = memref.load %arg5[%c24_78] : memref<32xf32, #tpu.memory_space<smem>>
    %401 = vector.broadcast %400 : f32 to vector<2x256xf32>
    %402 = arith.mulf %399, %401 : vector<2x256xf32>
    %403 = arith.addf %387, %402 : vector<2x256xf32>
    %c25 = arith.constant 25 : index
    %404 = memref.load %arg3[%c25] : memref<64xf32, #tpu.memory_space<smem>>
    %405 = vector.broadcast %404 : f32 to vector<2x256xf32>
    %406 = arith.mulf %0, %405 : vector<2x256xf32>
    %c57 = arith.constant 57 : index
    %407 = memref.load %arg3[%c57] : memref<64xf32, #tpu.memory_space<smem>>
    %408 = vector.broadcast %407 : f32 to vector<2x256xf32>
    %409 = arith.mulf %1, %408 : vector<2x256xf32>
    %410 = arith.addf %406, %409 : vector<2x256xf32>
    %c25_79 = arith.constant 25 : index
    %411 = memref.load %arg4[%c25_79] : memref<32xf32, #tpu.memory_space<smem>>
    %412 = vector.broadcast %411 : f32 to vector<2x256xf32>
    %413 = arith.addf %410, %412 : vector<2x256xf32>
    %cst_80 = arith.constant 0.000000e+00 : f32
    %414 = vector.broadcast %cst_80 : f32 to vector<2x256xf32>
    %415 = arith.maximumf %413, %414 : vector<2x256xf32>
    %c25_81 = arith.constant 25 : index
    %416 = memref.load %arg5[%c25_81] : memref<32xf32, #tpu.memory_space<smem>>
    %417 = vector.broadcast %416 : f32 to vector<2x256xf32>
    %418 = arith.mulf %415, %417 : vector<2x256xf32>
    %419 = arith.addf %403, %418 : vector<2x256xf32>
    %c26 = arith.constant 26 : index
    %420 = memref.load %arg3[%c26] : memref<64xf32, #tpu.memory_space<smem>>
    %421 = vector.broadcast %420 : f32 to vector<2x256xf32>
    %422 = arith.mulf %0, %421 : vector<2x256xf32>
    %c58 = arith.constant 58 : index
    %423 = memref.load %arg3[%c58] : memref<64xf32, #tpu.memory_space<smem>>
    %424 = vector.broadcast %423 : f32 to vector<2x256xf32>
    %425 = arith.mulf %1, %424 : vector<2x256xf32>
    %426 = arith.addf %422, %425 : vector<2x256xf32>
    %c26_82 = arith.constant 26 : index
    %427 = memref.load %arg4[%c26_82] : memref<32xf32, #tpu.memory_space<smem>>
    %428 = vector.broadcast %427 : f32 to vector<2x256xf32>
    %429 = arith.addf %426, %428 : vector<2x256xf32>
    %cst_83 = arith.constant 0.000000e+00 : f32
    %430 = vector.broadcast %cst_83 : f32 to vector<2x256xf32>
    %431 = arith.maximumf %429, %430 : vector<2x256xf32>
    %c26_84 = arith.constant 26 : index
    %432 = memref.load %arg5[%c26_84] : memref<32xf32, #tpu.memory_space<smem>>
    %433 = vector.broadcast %432 : f32 to vector<2x256xf32>
    %434 = arith.mulf %431, %433 : vector<2x256xf32>
    %435 = arith.addf %419, %434 : vector<2x256xf32>
    %c27 = arith.constant 27 : index
    %436 = memref.load %arg3[%c27] : memref<64xf32, #tpu.memory_space<smem>>
    %437 = vector.broadcast %436 : f32 to vector<2x256xf32>
    %438 = arith.mulf %0, %437 : vector<2x256xf32>
    %c59 = arith.constant 59 : index
    %439 = memref.load %arg3[%c59] : memref<64xf32, #tpu.memory_space<smem>>
    %440 = vector.broadcast %439 : f32 to vector<2x256xf32>
    %441 = arith.mulf %1, %440 : vector<2x256xf32>
    %442 = arith.addf %438, %441 : vector<2x256xf32>
    %c27_85 = arith.constant 27 : index
    %443 = memref.load %arg4[%c27_85] : memref<32xf32, #tpu.memory_space<smem>>
    %444 = vector.broadcast %443 : f32 to vector<2x256xf32>
    %445 = arith.addf %442, %444 : vector<2x256xf32>
    %cst_86 = arith.constant 0.000000e+00 : f32
    %446 = vector.broadcast %cst_86 : f32 to vector<2x256xf32>
    %447 = arith.maximumf %445, %446 : vector<2x256xf32>
    %c27_87 = arith.constant 27 : index
    %448 = memref.load %arg5[%c27_87] : memref<32xf32, #tpu.memory_space<smem>>
    %449 = vector.broadcast %448 : f32 to vector<2x256xf32>
    %450 = arith.mulf %447, %449 : vector<2x256xf32>
    %451 = arith.addf %435, %450 : vector<2x256xf32>
    %c28 = arith.constant 28 : index
    %452 = memref.load %arg3[%c28] : memref<64xf32, #tpu.memory_space<smem>>
    %453 = vector.broadcast %452 : f32 to vector<2x256xf32>
    %454 = arith.mulf %0, %453 : vector<2x256xf32>
    %c60 = arith.constant 60 : index
    %455 = memref.load %arg3[%c60] : memref<64xf32, #tpu.memory_space<smem>>
    %456 = vector.broadcast %455 : f32 to vector<2x256xf32>
    %457 = arith.mulf %1, %456 : vector<2x256xf32>
    %458 = arith.addf %454, %457 : vector<2x256xf32>
    %c28_88 = arith.constant 28 : index
    %459 = memref.load %arg4[%c28_88] : memref<32xf32, #tpu.memory_space<smem>>
    %460 = vector.broadcast %459 : f32 to vector<2x256xf32>
    %461 = arith.addf %458, %460 : vector<2x256xf32>
    %cst_89 = arith.constant 0.000000e+00 : f32
    %462 = vector.broadcast %cst_89 : f32 to vector<2x256xf32>
    %463 = arith.maximumf %461, %462 : vector<2x256xf32>
    %c28_90 = arith.constant 28 : index
    %464 = memref.load %arg5[%c28_90] : memref<32xf32, #tpu.memory_space<smem>>
    %465 = vector.broadcast %464 : f32 to vector<2x256xf32>
    %466 = arith.mulf %463, %465 : vector<2x256xf32>
    %467 = arith.addf %451, %466 : vector<2x256xf32>
    %c29 = arith.constant 29 : index
    %468 = memref.load %arg3[%c29] : memref<64xf32, #tpu.memory_space<smem>>
    %469 = vector.broadcast %468 : f32 to vector<2x256xf32>
    %470 = arith.mulf %0, %469 : vector<2x256xf32>
    %c61 = arith.constant 61 : index
    %471 = memref.load %arg3[%c61] : memref<64xf32, #tpu.memory_space<smem>>
    %472 = vector.broadcast %471 : f32 to vector<2x256xf32>
    %473 = arith.mulf %1, %472 : vector<2x256xf32>
    %474 = arith.addf %470, %473 : vector<2x256xf32>
    %c29_91 = arith.constant 29 : index
    %475 = memref.load %arg4[%c29_91] : memref<32xf32, #tpu.memory_space<smem>>
    %476 = vector.broadcast %475 : f32 to vector<2x256xf32>
    %477 = arith.addf %474, %476 : vector<2x256xf32>
    %cst_92 = arith.constant 0.000000e+00 : f32
    %478 = vector.broadcast %cst_92 : f32 to vector<2x256xf32>
    %479 = arith.maximumf %477, %478 : vector<2x256xf32>
    %c29_93 = arith.constant 29 : index
    %480 = memref.load %arg5[%c29_93] : memref<32xf32, #tpu.memory_space<smem>>
    %481 = vector.broadcast %480 : f32 to vector<2x256xf32>
    %482 = arith.mulf %479, %481 : vector<2x256xf32>
    %483 = arith.addf %467, %482 : vector<2x256xf32>
    %c30 = arith.constant 30 : index
    %484 = memref.load %arg3[%c30] : memref<64xf32, #tpu.memory_space<smem>>
    %485 = vector.broadcast %484 : f32 to vector<2x256xf32>
    %486 = arith.mulf %0, %485 : vector<2x256xf32>
    %c62 = arith.constant 62 : index
    %487 = memref.load %arg3[%c62] : memref<64xf32, #tpu.memory_space<smem>>
    %488 = vector.broadcast %487 : f32 to vector<2x256xf32>
    %489 = arith.mulf %1, %488 : vector<2x256xf32>
    %490 = arith.addf %486, %489 : vector<2x256xf32>
    %c30_94 = arith.constant 30 : index
    %491 = memref.load %arg4[%c30_94] : memref<32xf32, #tpu.memory_space<smem>>
    %492 = vector.broadcast %491 : f32 to vector<2x256xf32>
    %493 = arith.addf %490, %492 : vector<2x256xf32>
    %cst_95 = arith.constant 0.000000e+00 : f32
    %494 = vector.broadcast %cst_95 : f32 to vector<2x256xf32>
    %495 = arith.maximumf %493, %494 : vector<2x256xf32>
    %c30_96 = arith.constant 30 : index
    %496 = memref.load %arg5[%c30_96] : memref<32xf32, #tpu.memory_space<smem>>
    %497 = vector.broadcast %496 : f32 to vector<2x256xf32>
    %498 = arith.mulf %495, %497 : vector<2x256xf32>
    %499 = arith.addf %483, %498 : vector<2x256xf32>
    %c31 = arith.constant 31 : index
    %500 = memref.load %arg3[%c31] : memref<64xf32, #tpu.memory_space<smem>>
    %501 = vector.broadcast %500 : f32 to vector<2x256xf32>
    %502 = arith.mulf %0, %501 : vector<2x256xf32>
    %c63 = arith.constant 63 : index
    %503 = memref.load %arg3[%c63] : memref<64xf32, #tpu.memory_space<smem>>
    %504 = vector.broadcast %503 : f32 to vector<2x256xf32>
    %505 = arith.mulf %1, %504 : vector<2x256xf32>
    %506 = arith.addf %502, %505 : vector<2x256xf32>
    %c31_97 = arith.constant 31 : index
    %507 = memref.load %arg4[%c31_97] : memref<32xf32, #tpu.memory_space<smem>>
    %508 = vector.broadcast %507 : f32 to vector<2x256xf32>
    %509 = arith.addf %506, %508 : vector<2x256xf32>
    %cst_98 = arith.constant 0.000000e+00 : f32
    %510 = vector.broadcast %cst_98 : f32 to vector<2x256xf32>
    %511 = arith.maximumf %509, %510 : vector<2x256xf32>
    %c31_99 = arith.constant 31 : index
    %512 = memref.load %arg5[%c31_99] : memref<32xf32, #tpu.memory_space<smem>>
    %513 = vector.broadcast %512 : f32 to vector<2x256xf32>
    %514 = arith.mulf %511, %513 : vector<2x256xf32>
    %515 = arith.addf %499, %514 : vector<2x256xf32>
    %516 = arith.mulf %515, %1 : vector<2x256xf32>
    %cst_100 = arith.constant 1.000000e+00 : f32
    %517 = vector.broadcast %cst_100 : f32 to vector<2x256xf32>
    %518 = arith.subf %517, %1 : vector<2x256xf32>
    %519 = arith.mulf %0, %518 : vector<2x256xf32>
    %520 = arith.addf %516, %519 : vector<2x256xf32>
    %c0_101 = arith.constant 0 : index
    %c0_102 = arith.constant 0 : index
    %521 = vector.load %arg7[%c0_101, %c0_102] : memref<2x256xf32, #tpu.memory_space<vmem>>, vector<2x256xf32>
    tpu.vector_store %arg7[%c0_101, %c0_102], %520 {strides = array<i32>} : memref<2x256xf32, #tpu.memory_space<vmem>>, vector<2x256xf32>,
    %522 = arith.truncf %520 : vector<2x256xf32> to vector<2x256xbf16>
    %c0_103 = arith.constant 0 : index
    %c0_104 = arith.constant 0 : index
    %523 = vector.load %arg8[%c0_103, %c0_104] : memref<2x256xbf16, #tpu.memory_space<vmem>>, vector<2x256xbf16>
    tpu.vector_store %arg8[%c0_103, %c0_104], %522 {strides = array<i32>} : memref<2x256xbf16, #tpu.memory_space<vmem>>, vector<2x256xbf16>,
    return
  }
  func.func @transform_0(%arg0: i32) -> (i32, i32) {
    %c0_i32 = arith.constant 0 : i32
    %c0_i32_0 = arith.constant 0 : i32
    return %c0_i32, %arg0 : i32, i32
  }
  func.func @transform_1(%arg0: i32) -> (i32, i32) {
    %c0_i32 = arith.constant 0 : i32
    %c0_i32_0 = arith.constant 0 : i32
    return %c0_i32, %arg0 : i32, i32
  }
  func.func @transform_2(%arg0: i32) -> i32 {
    %c0_i32 = arith.constant 0 : i32
    %c0_i32_0 = arith.constant 0 : i32
    return %c0_i32 : i32
  }
  func.func @transform_3(%arg0: i32) -> i32 {
    %c0_i32 = arith.constant 0 : i32
    %c0_i32_0 = arith.constant 0 : i32
    return %c0_i32 : i32
  }
  func.func @transform_4(%arg0: i32) -> i32 {
    %c0_i32 = arith.constant 0 : i32
    %c0_i32_0 = arith.constant 0 : i32
    return %c0_i32 : i32
  }
  func.func @transform_5(%arg0: i32) -> i32 {
    %c0_i32 = arith.constant 0 : i32
    %c0_i32_0 = arith.constant 0 : i32
    return %c0_i32 : i32
  }
  func.func @transform_6(%arg0: i32) -> (i32, i32) {
    %c0_i32 = arith.constant 0 : i32
    %c0_i32_0 = arith.constant 0 : i32
    return %c0_i32, %arg0 : i32, i32
  }
  func.func @transform_7(%arg0: i32) -> (i32, i32) {
    %c0_i32 = arith.constant 0 : i32
    %c0_i32_0 = arith.constant 0 : i32
    return %c0_i32, %arg0 : i32, i32
  }
}

module attributes {stable_mosaic.version = 11 : i64} {
  func.func @_radon_refine_kernel(%arg0: i32, %arg1: i32, %arg2: memref<2x256xbf16, #tpu.memory_space<vmem>>, %arg3: memref<256x256xbf16, #tpu.memory_space<vmem>>, %arg4: memref<2x256xf32, #tpu.memory_space<vmem>>, %arg5: memref<64xf32, #tpu.memory_space<smem>>, %arg6: memref<32xf32, #tpu.memory_space<smem>>, %arg7: memref<32xf32, #tpu.memory_space<smem>>, %arg8: memref<1xf32, #tpu.memory_space<smem>>, %arg9: memref<2x256xf32, #tpu.memory_space<vmem>>, %arg10: memref<2x256xf32, #tpu.memory_space<vmem>>, %arg11: memref<2x256xf32, #tpu.memory_space<vmem>>) attributes {dimension_semantics = [#tpu.dimension_semantics<parallel>, #tpu.dimension_semantics<arbitrary>], iteration_bounds = array<i64: 1, 1>, scalar_prefetch = 0 : i64, scratch_operands = 1 : i64, tpu.core_type = #tpu.core_type<tc>, window_params = [{transform_indices = @transform_0, window_bounds = array<i64: 2, 256>}, {transform_indices = @transform_1, window_bounds = array<i64: 256, 256>}, {transform_indices = @transform_2, window_bounds = array<i64: 2, 256>}, {transform_indices = @transform_3, window_bounds = array<i64: 64>}, {transform_indices = @transform_4, window_bounds = array<i64: 32>}, {transform_indices = @transform_5, window_bounds = array<i64: 32>}, {transform_indices = @transform_6, window_bounds = array<i64: 1>}, {transform_indices = @transform_7, window_bounds = array<i64: 2, 256>}, {transform_indices = @transform_8, window_bounds = array<i64: 2, 256>}]} {
    %c0 = arith.constant 0 : index
    %c0_0 = arith.constant 0 : index
    %0 = vector.load %arg2[%c0, %c0_0] : memref<2x256xbf16, #tpu.memory_space<vmem>>, vector<2x256xbf16>
    %c0_1 = arith.constant 0 : index
    %c0_2 = arith.constant 0 : index
    %1 = vector.load %arg3[%c0_1, %c0_2] : memref<256x256xbf16, #tpu.memory_space<vmem>>, vector<256x256xbf16>
    %cst = arith.constant dense<0.000000e+00> : vector<2x256xf32>
    %2 = tpu.matmul %0, %1, %cst {dimension_numbers = #tpu.dot_dimension_numbers<[1], [0], [0], [1], [0, 0, 1, 1], [], []>} : vector<2x256xbf16>, vector<256x256xbf16>, vector<2x256xf32> -> vector<2x256xf32>
    %c0_i32 = arith.constant 0 : i32
    %3 = arith.cmpi eq, %arg1, %c0_i32 : i32
    %4 = arith.extui %3 : i1 to i32
    %c0_i32_3 = arith.constant 0 : i32
    %5 = arith.cmpi ne, %4, %c0_i32_3 : i32
    scf.if %5 {
      %c0_8 = arith.constant 0 : index
      %c0_9 = arith.constant 0 : index
      %12 = vector.load %arg11[%c0_8, %c0_9] : memref<2x256xf32, #tpu.memory_space<vmem>>, vector<2x256xf32>
      tpu.vector_store %arg11[%c0_8, %c0_9], %2 {strides = array<i32>} : memref<2x256xf32, #tpu.memory_space<vmem>>, vector<2x256xf32>,
    } else {
    }
    %c0_i32_4 = arith.constant 0 : i32
    %6 = arith.cmpi sgt, %arg1, %c0_i32_4 : i32
    %7 = arith.extui %6 : i1 to i32
    %c0_i32_5 = arith.constant 0 : i32
    %8 = arith.cmpi ne, %7, %c0_i32_5 : i32
    scf.if %8 {
      %c0_8 = arith.constant 0 : index
      %c0_9 = arith.constant 0 : index
      %12 = vector.load %arg11[%c0_8, %c0_9] : memref<2x256xf32, #tpu.memory_space<vmem>>, vector<2x256xf32>
      %13 = arith.addf %12, %2 : vector<2x256xf32>
      %c0_10 = arith.constant 0 : index
      %c0_11 = arith.constant 0 : index
      %14 = vector.load %arg11[%c0_10, %c0_11] : memref<2x256xf32, #tpu.memory_space<vmem>>, vector<2x256xf32>
      tpu.vector_store %arg11[%c0_10, %c0_11], %13 {strides = array<i32>} : memref<2x256xf32, #tpu.memory_space<vmem>>, vector<2x256xf32>,
    } else {
    }
    %c0_i32_6 = arith.constant 0 : i32
    %9 = arith.cmpi eq, %arg1, %c0_i32_6 : i32
    %10 = arith.extui %9 : i1 to i32
    %c0_i32_7 = arith.constant 0 : i32
    %11 = arith.cmpi ne, %10, %c0_i32_7 : i32
    scf.if %11 {
      %c0_8 = arith.constant 0 : index
      %c0_9 = arith.constant 0 : index
      %12 = vector.load %arg11[%c0_8, %c0_9] : memref<2x256xf32, #tpu.memory_space<vmem>>, vector<2x256xf32>
      %cst_10 = arith.constant 1.73611116 : f32
      %13 = vector.broadcast %cst_10 : f32 to vector<2x256xf32>
      %14 = arith.mulf %12, %13 : vector<2x256xf32>
      %cst_11 = arith.constant -0.000000e+00 : f32
      %15 = vector.broadcast %cst_11 : f32 to vector<2x256xf32>
      %16 = arith.addf %14, %15 : vector<2x256xf32>
      %cst_12 = arith.constant 0.000000e+00 : f32
      %cst_13 = arith.constant 1.000000e+00 : f32
      %17 = vector.broadcast %cst_12 : f32 to vector<2x256xf32>
      %18 = arith.maximumf %17, %16 : vector<2x256xf32>
      %19 = vector.broadcast %cst_13 : f32 to vector<2x256xf32>
      %20 = arith.minimumf %19, %18 : vector<2x256xf32>
      %c0_14 = arith.constant 0 : index
      %c0_15 = arith.constant 0 : index
      %21 = vector.load %arg9[%c0_14, %c0_15] : memref<2x256xf32, #tpu.memory_space<vmem>>, vector<2x256xf32>
      tpu.vector_store %arg9[%c0_14, %c0_15], %20 {strides = array<i32>} : memref<2x256xf32, #tpu.memory_space<vmem>>, vector<2x256xf32>,
      %c0_16 = arith.constant 0 : index
      %c0_17 = arith.constant 0 : index
      %22 = vector.load %arg4[%c0_16, %c0_17] : memref<2x256xf32, #tpu.memory_space<vmem>>, vector<2x256xf32>
      %c0_18 = arith.constant 0 : index
      %23 = memref.load %arg8[%c0_18] : memref<1xf32, #tpu.memory_space<smem>>
      %24 = vector.broadcast %23 : f32 to vector<2x256xf32>
      %c0_19 = arith.constant 0 : index
      %25 = memref.load %arg5[%c0_19] : memref<64xf32, #tpu.memory_space<smem>>
      %26 = vector.broadcast %25 : f32 to vector<2x256xf32>
      %27 = arith.mulf %22, %26 : vector<2x256xf32>
      %c32 = arith.constant 32 : index
      %28 = memref.load %arg5[%c32] : memref<64xf32, #tpu.memory_space<smem>>
      %29 = vector.broadcast %28 : f32 to vector<2x256xf32>
      %30 = arith.mulf %20, %29 : vector<2x256xf32>
      %31 = arith.addf %27, %30 : vector<2x256xf32>
      %c0_20 = arith.constant 0 : index
      %32 = memref.load %arg6[%c0_20] : memref<32xf32, #tpu.memory_space<smem>>
      %33 = vector.broadcast %32 : f32 to vector<2x256xf32>
      %34 = arith.addf %31, %33 : vector<2x256xf32>
      %cst_21 = arith.constant 0.000000e+00 : f32
      %35 = vector.broadcast %cst_21 : f32 to vector<2x256xf32>
      %36 = arith.maximumf %34, %35 : vector<2x256xf32>
      %c0_22 = arith.constant 0 : index
      %37 = memref.load %arg7[%c0_22] : memref<32xf32, #tpu.memory_space<smem>>
      %38 = vector.broadcast %37 : f32 to vector<2x256xf32>
      %39 = arith.mulf %36, %38 : vector<2x256xf32>
      %40 = arith.addf %24, %39 : vector<2x256xf32>
      %c1 = arith.constant 1 : index
      %41 = memref.load %arg5[%c1] : memref<64xf32, #tpu.memory_space<smem>>
      %42 = vector.broadcast %41 : f32 to vector<2x256xf32>
      %43 = arith.mulf %22, %42 : vector<2x256xf32>
      %c33 = arith.constant 33 : index
      %44 = memref.load %arg5[%c33] : memref<64xf32, #tpu.memory_space<smem>>
      %45 = vector.broadcast %44 : f32 to vector<2x256xf32>
      %46 = arith.mulf %20, %45 : vector<2x256xf32>
      %47 = arith.addf %43, %46 : vector<2x256xf32>
      %c1_23 = arith.constant 1 : index
      %48 = memref.load %arg6[%c1_23] : memref<32xf32, #tpu.memory_space<smem>>
      %49 = vector.broadcast %48 : f32 to vector<2x256xf32>
      %50 = arith.addf %47, %49 : vector<2x256xf32>
      %cst_24 = arith.constant 0.000000e+00 : f32
      %51 = vector.broadcast %cst_24 : f32 to vector<2x256xf32>
      %52 = arith.maximumf %50, %51 : vector<2x256xf32>
      %c1_25 = arith.constant 1 : index
      %53 = memref.load %arg7[%c1_25] : memref<32xf32, #tpu.memory_space<smem>>
      %54 = vector.broadcast %53 : f32 to vector<2x256xf32>
      %55 = arith.mulf %52, %54 : vector<2x256xf32>
      %56 = arith.addf %40, %55 : vector<2x256xf32>
      %c2 = arith.constant 2 : index
      %57 = memref.load %arg5[%c2] : memref<64xf32, #tpu.memory_space<smem>>
      %58 = vector.broadcast %57 : f32 to vector<2x256xf32>
      %59 = arith.mulf %22, %58 : vector<2x256xf32>
      %c34 = arith.constant 34 : index
      %60 = memref.load %arg5[%c34] : memref<64xf32, #tpu.memory_space<smem>>
      %61 = vector.broadcast %60 : f32 to vector<2x256xf32>
      %62 = arith.mulf %20, %61 : vector<2x256xf32>
      %63 = arith.addf %59, %62 : vector<2x256xf32>
      %c2_26 = arith.constant 2 : index
      %64 = memref.load %arg6[%c2_26] : memref<32xf32, #tpu.memory_space<smem>>
      %65 = vector.broadcast %64 : f32 to vector<2x256xf32>
      %66 = arith.addf %63, %65 : vector<2x256xf32>
      %cst_27 = arith.constant 0.000000e+00 : f32
      %67 = vector.broadcast %cst_27 : f32 to vector<2x256xf32>
      %68 = arith.maximumf %66, %67 : vector<2x256xf32>
      %c2_28 = arith.constant 2 : index
      %69 = memref.load %arg7[%c2_28] : memref<32xf32, #tpu.memory_space<smem>>
      %70 = vector.broadcast %69 : f32 to vector<2x256xf32>
      %71 = arith.mulf %68, %70 : vector<2x256xf32>
      %72 = arith.addf %56, %71 : vector<2x256xf32>
      %c3 = arith.constant 3 : index
      %73 = memref.load %arg5[%c3] : memref<64xf32, #tpu.memory_space<smem>>
      %74 = vector.broadcast %73 : f32 to vector<2x256xf32>
      %75 = arith.mulf %22, %74 : vector<2x256xf32>
      %c35 = arith.constant 35 : index
      %76 = memref.load %arg5[%c35] : memref<64xf32, #tpu.memory_space<smem>>
      %77 = vector.broadcast %76 : f32 to vector<2x256xf32>
      %78 = arith.mulf %20, %77 : vector<2x256xf32>
      %79 = arith.addf %75, %78 : vector<2x256xf32>
      %c3_29 = arith.constant 3 : index
      %80 = memref.load %arg6[%c3_29] : memref<32xf32, #tpu.memory_space<smem>>
      %81 = vector.broadcast %80 : f32 to vector<2x256xf32>
      %82 = arith.addf %79, %81 : vector<2x256xf32>
      %cst_30 = arith.constant 0.000000e+00 : f32
      %83 = vector.broadcast %cst_30 : f32 to vector<2x256xf32>
      %84 = arith.maximumf %82, %83 : vector<2x256xf32>
      %c3_31 = arith.constant 3 : index
      %85 = memref.load %arg7[%c3_31] : memref<32xf32, #tpu.memory_space<smem>>
      %86 = vector.broadcast %85 : f32 to vector<2x256xf32>
      %87 = arith.mulf %84, %86 : vector<2x256xf32>
      %88 = arith.addf %72, %87 : vector<2x256xf32>
      %c4 = arith.constant 4 : index
      %89 = memref.load %arg5[%c4] : memref<64xf32, #tpu.memory_space<smem>>
      %90 = vector.broadcast %89 : f32 to vector<2x256xf32>
      %91 = arith.mulf %22, %90 : vector<2x256xf32>
      %c36 = arith.constant 36 : index
      %92 = memref.load %arg5[%c36] : memref<64xf32, #tpu.memory_space<smem>>
      %93 = vector.broadcast %92 : f32 to vector<2x256xf32>
      %94 = arith.mulf %20, %93 : vector<2x256xf32>
      %95 = arith.addf %91, %94 : vector<2x256xf32>
      %c4_32 = arith.constant 4 : index
      %96 = memref.load %arg6[%c4_32] : memref<32xf32, #tpu.memory_space<smem>>
      %97 = vector.broadcast %96 : f32 to vector<2x256xf32>
      %98 = arith.addf %95, %97 : vector<2x256xf32>
      %cst_33 = arith.constant 0.000000e+00 : f32
      %99 = vector.broadcast %cst_33 : f32 to vector<2x256xf32>
      %100 = arith.maximumf %98, %99 : vector<2x256xf32>
      %c4_34 = arith.constant 4 : index
      %101 = memref.load %arg7[%c4_34] : memref<32xf32, #tpu.memory_space<smem>>
      %102 = vector.broadcast %101 : f32 to vector<2x256xf32>
      %103 = arith.mulf %100, %102 : vector<2x256xf32>
      %104 = arith.addf %88, %103 : vector<2x256xf32>
      %c5 = arith.constant 5 : index
      %105 = memref.load %arg5[%c5] : memref<64xf32, #tpu.memory_space<smem>>
      %106 = vector.broadcast %105 : f32 to vector<2x256xf32>
      %107 = arith.mulf %22, %106 : vector<2x256xf32>
      %c37 = arith.constant 37 : index
      %108 = memref.load %arg5[%c37] : memref<64xf32, #tpu.memory_space<smem>>
      %109 = vector.broadcast %108 : f32 to vector<2x256xf32>
      %110 = arith.mulf %20, %109 : vector<2x256xf32>
      %111 = arith.addf %107, %110 : vector<2x256xf32>
      %c5_35 = arith.constant 5 : index
      %112 = memref.load %arg6[%c5_35] : memref<32xf32, #tpu.memory_space<smem>>
      %113 = vector.broadcast %112 : f32 to vector<2x256xf32>
      %114 = arith.addf %111, %113 : vector<2x256xf32>
      %cst_36 = arith.constant 0.000000e+00 : f32
      %115 = vector.broadcast %cst_36 : f32 to vector<2x256xf32>
      %116 = arith.maximumf %114, %115 : vector<2x256xf32>
      %c5_37 = arith.constant 5 : index
      %117 = memref.load %arg7[%c5_37] : memref<32xf32, #tpu.memory_space<smem>>
      %118 = vector.broadcast %117 : f32 to vector<2x256xf32>
      %119 = arith.mulf %116, %118 : vector<2x256xf32>
      %120 = arith.addf %104, %119 : vector<2x256xf32>
      %c6 = arith.constant 6 : index
      %121 = memref.load %arg5[%c6] : memref<64xf32, #tpu.memory_space<smem>>
      %122 = vector.broadcast %121 : f32 to vector<2x256xf32>
      %123 = arith.mulf %22, %122 : vector<2x256xf32>
      %c38 = arith.constant 38 : index
      %124 = memref.load %arg5[%c38] : memref<64xf32, #tpu.memory_space<smem>>
      %125 = vector.broadcast %124 : f32 to vector<2x256xf32>
      %126 = arith.mulf %20, %125 : vector<2x256xf32>
      %127 = arith.addf %123, %126 : vector<2x256xf32>
      %c6_38 = arith.constant 6 : index
      %128 = memref.load %arg6[%c6_38] : memref<32xf32, #tpu.memory_space<smem>>
      %129 = vector.broadcast %128 : f32 to vector<2x256xf32>
      %130 = arith.addf %127, %129 : vector<2x256xf32>
      %cst_39 = arith.constant 0.000000e+00 : f32
      %131 = vector.broadcast %cst_39 : f32 to vector<2x256xf32>
      %132 = arith.maximumf %130, %131 : vector<2x256xf32>
      %c6_40 = arith.constant 6 : index
      %133 = memref.load %arg7[%c6_40] : memref<32xf32, #tpu.memory_space<smem>>
      %134 = vector.broadcast %133 : f32 to vector<2x256xf32>
      %135 = arith.mulf %132, %134 : vector<2x256xf32>
      %136 = arith.addf %120, %135 : vector<2x256xf32>
      %c7 = arith.constant 7 : index
      %137 = memref.load %arg5[%c7] : memref<64xf32, #tpu.memory_space<smem>>
      %138 = vector.broadcast %137 : f32 to vector<2x256xf32>
      %139 = arith.mulf %22, %138 : vector<2x256xf32>
      %c39 = arith.constant 39 : index
      %140 = memref.load %arg5[%c39] : memref<64xf32, #tpu.memory_space<smem>>
      %141 = vector.broadcast %140 : f32 to vector<2x256xf32>
      %142 = arith.mulf %20, %141 : vector<2x256xf32>
      %143 = arith.addf %139, %142 : vector<2x256xf32>
      %c7_41 = arith.constant 7 : index
      %144 = memref.load %arg6[%c7_41] : memref<32xf32, #tpu.memory_space<smem>>
      %145 = vector.broadcast %144 : f32 to vector<2x256xf32>
      %146 = arith.addf %143, %145 : vector<2x256xf32>
      %cst_42 = arith.constant 0.000000e+00 : f32
      %147 = vector.broadcast %cst_42 : f32 to vector<2x256xf32>
      %148 = arith.maximumf %146, %147 : vector<2x256xf32>
      %c7_43 = arith.constant 7 : index
      %149 = memref.load %arg7[%c7_43] : memref<32xf32, #tpu.memory_space<smem>>
      %150 = vector.broadcast %149 : f32 to vector<2x256xf32>
      %151 = arith.mulf %148, %150 : vector<2x256xf32>
      %152 = arith.addf %136, %151 : vector<2x256xf32>
      %c8 = arith.constant 8 : index
      %153 = memref.load %arg5[%c8] : memref<64xf32, #tpu.memory_space<smem>>
      %154 = vector.broadcast %153 : f32 to vector<2x256xf32>
      %155 = arith.mulf %22, %154 : vector<2x256xf32>
      %c40 = arith.constant 40 : index
      %156 = memref.load %arg5[%c40] : memref<64xf32, #tpu.memory_space<smem>>
      %157 = vector.broadcast %156 : f32 to vector<2x256xf32>
      %158 = arith.mulf %20, %157 : vector<2x256xf32>
      %159 = arith.addf %155, %158 : vector<2x256xf32>
      %c8_44 = arith.constant 8 : index
      %160 = memref.load %arg6[%c8_44] : memref<32xf32, #tpu.memory_space<smem>>
      %161 = vector.broadcast %160 : f32 to vector<2x256xf32>
      %162 = arith.addf %159, %161 : vector<2x256xf32>
      %cst_45 = arith.constant 0.000000e+00 : f32
      %163 = vector.broadcast %cst_45 : f32 to vector<2x256xf32>
      %164 = arith.maximumf %162, %163 : vector<2x256xf32>
      %c8_46 = arith.constant 8 : index
      %165 = memref.load %arg7[%c8_46] : memref<32xf32, #tpu.memory_space<smem>>
      %166 = vector.broadcast %165 : f32 to vector<2x256xf32>
      %167 = arith.mulf %164, %166 : vector<2x256xf32>
      %168 = arith.addf %152, %167 : vector<2x256xf32>
      %c9 = arith.constant 9 : index
      %169 = memref.load %arg5[%c9] : memref<64xf32, #tpu.memory_space<smem>>
      %170 = vector.broadcast %169 : f32 to vector<2x256xf32>
      %171 = arith.mulf %22, %170 : vector<2x256xf32>
      %c41 = arith.constant 41 : index
      %172 = memref.load %arg5[%c41] : memref<64xf32, #tpu.memory_space<smem>>
      %173 = vector.broadcast %172 : f32 to vector<2x256xf32>
      %174 = arith.mulf %20, %173 : vector<2x256xf32>
      %175 = arith.addf %171, %174 : vector<2x256xf32>
      %c9_47 = arith.constant 9 : index
      %176 = memref.load %arg6[%c9_47] : memref<32xf32, #tpu.memory_space<smem>>
      %177 = vector.broadcast %176 : f32 to vector<2x256xf32>
      %178 = arith.addf %175, %177 : vector<2x256xf32>
      %cst_48 = arith.constant 0.000000e+00 : f32
      %179 = vector.broadcast %cst_48 : f32 to vector<2x256xf32>
      %180 = arith.maximumf %178, %179 : vector<2x256xf32>
      %c9_49 = arith.constant 9 : index
      %181 = memref.load %arg7[%c9_49] : memref<32xf32, #tpu.memory_space<smem>>
      %182 = vector.broadcast %181 : f32 to vector<2x256xf32>
      %183 = arith.mulf %180, %182 : vector<2x256xf32>
      %184 = arith.addf %168, %183 : vector<2x256xf32>
      %c10 = arith.constant 10 : index
      %185 = memref.load %arg5[%c10] : memref<64xf32, #tpu.memory_space<smem>>
      %186 = vector.broadcast %185 : f32 to vector<2x256xf32>
      %187 = arith.mulf %22, %186 : vector<2x256xf32>
      %c42 = arith.constant 42 : index
      %188 = memref.load %arg5[%c42] : memref<64xf32, #tpu.memory_space<smem>>
      %189 = vector.broadcast %188 : f32 to vector<2x256xf32>
      %190 = arith.mulf %20, %189 : vector<2x256xf32>
      %191 = arith.addf %187, %190 : vector<2x256xf32>
      %c10_50 = arith.constant 10 : index
      %192 = memref.load %arg6[%c10_50] : memref<32xf32, #tpu.memory_space<smem>>
      %193 = vector.broadcast %192 : f32 to vector<2x256xf32>
      %194 = arith.addf %191, %193 : vector<2x256xf32>
      %cst_51 = arith.constant 0.000000e+00 : f32
      %195 = vector.broadcast %cst_51 : f32 to vector<2x256xf32>
      %196 = arith.maximumf %194, %195 : vector<2x256xf32>
      %c10_52 = arith.constant 10 : index
      %197 = memref.load %arg7[%c10_52] : memref<32xf32, #tpu.memory_space<smem>>
      %198 = vector.broadcast %197 : f32 to vector<2x256xf32>
      %199 = arith.mulf %196, %198 : vector<2x256xf32>
      %200 = arith.addf %184, %199 : vector<2x256xf32>
      %c11 = arith.constant 11 : index
      %201 = memref.load %arg5[%c11] : memref<64xf32, #tpu.memory_space<smem>>
      %202 = vector.broadcast %201 : f32 to vector<2x256xf32>
      %203 = arith.mulf %22, %202 : vector<2x256xf32>
      %c43 = arith.constant 43 : index
      %204 = memref.load %arg5[%c43] : memref<64xf32, #tpu.memory_space<smem>>
      %205 = vector.broadcast %204 : f32 to vector<2x256xf32>
      %206 = arith.mulf %20, %205 : vector<2x256xf32>
      %207 = arith.addf %203, %206 : vector<2x256xf32>
      %c11_53 = arith.constant 11 : index
      %208 = memref.load %arg6[%c11_53] : memref<32xf32, #tpu.memory_space<smem>>
      %209 = vector.broadcast %208 : f32 to vector<2x256xf32>
      %210 = arith.addf %207, %209 : vector<2x256xf32>
      %cst_54 = arith.constant 0.000000e+00 : f32
      %211 = vector.broadcast %cst_54 : f32 to vector<2x256xf32>
      %212 = arith.maximumf %210, %211 : vector<2x256xf32>
      %c11_55 = arith.constant 11 : index
      %213 = memref.load %arg7[%c11_55] : memref<32xf32, #tpu.memory_space<smem>>
      %214 = vector.broadcast %213 : f32 to vector<2x256xf32>
      %215 = arith.mulf %212, %214 : vector<2x256xf32>
      %216 = arith.addf %200, %215 : vector<2x256xf32>
      %c12 = arith.constant 12 : index
      %217 = memref.load %arg5[%c12] : memref<64xf32, #tpu.memory_space<smem>>
      %218 = vector.broadcast %217 : f32 to vector<2x256xf32>
      %219 = arith.mulf %22, %218 : vector<2x256xf32>
      %c44 = arith.constant 44 : index
      %220 = memref.load %arg5[%c44] : memref<64xf32, #tpu.memory_space<smem>>
      %221 = vector.broadcast %220 : f32 to vector<2x256xf32>
      %222 = arith.mulf %20, %221 : vector<2x256xf32>
      %223 = arith.addf %219, %222 : vector<2x256xf32>
      %c12_56 = arith.constant 12 : index
      %224 = memref.load %arg6[%c12_56] : memref<32xf32, #tpu.memory_space<smem>>
      %225 = vector.broadcast %224 : f32 to vector<2x256xf32>
      %226 = arith.addf %223, %225 : vector<2x256xf32>
      %cst_57 = arith.constant 0.000000e+00 : f32
      %227 = vector.broadcast %cst_57 : f32 to vector<2x256xf32>
      %228 = arith.maximumf %226, %227 : vector<2x256xf32>
      %c12_58 = arith.constant 12 : index
      %229 = memref.load %arg7[%c12_58] : memref<32xf32, #tpu.memory_space<smem>>
      %230 = vector.broadcast %229 : f32 to vector<2x256xf32>
      %231 = arith.mulf %228, %230 : vector<2x256xf32>
      %232 = arith.addf %216, %231 : vector<2x256xf32>
      %c13 = arith.constant 13 : index
      %233 = memref.load %arg5[%c13] : memref<64xf32, #tpu.memory_space<smem>>
      %234 = vector.broadcast %233 : f32 to vector<2x256xf32>
      %235 = arith.mulf %22, %234 : vector<2x256xf32>
      %c45 = arith.constant 45 : index
      %236 = memref.load %arg5[%c45] : memref<64xf32, #tpu.memory_space<smem>>
      %237 = vector.broadcast %236 : f32 to vector<2x256xf32>
      %238 = arith.mulf %20, %237 : vector<2x256xf32>
      %239 = arith.addf %235, %238 : vector<2x256xf32>
      %c13_59 = arith.constant 13 : index
      %240 = memref.load %arg6[%c13_59] : memref<32xf32, #tpu.memory_space<smem>>
      %241 = vector.broadcast %240 : f32 to vector<2x256xf32>
      %242 = arith.addf %239, %241 : vector<2x256xf32>
      %cst_60 = arith.constant 0.000000e+00 : f32
      %243 = vector.broadcast %cst_60 : f32 to vector<2x256xf32>
      %244 = arith.maximumf %242, %243 : vector<2x256xf32>
      %c13_61 = arith.constant 13 : index
      %245 = memref.load %arg7[%c13_61] : memref<32xf32, #tpu.memory_space<smem>>
      %246 = vector.broadcast %245 : f32 to vector<2x256xf32>
      %247 = arith.mulf %244, %246 : vector<2x256xf32>
      %248 = arith.addf %232, %247 : vector<2x256xf32>
      %c14 = arith.constant 14 : index
      %249 = memref.load %arg5[%c14] : memref<64xf32, #tpu.memory_space<smem>>
      %250 = vector.broadcast %249 : f32 to vector<2x256xf32>
      %251 = arith.mulf %22, %250 : vector<2x256xf32>
      %c46 = arith.constant 46 : index
      %252 = memref.load %arg5[%c46] : memref<64xf32, #tpu.memory_space<smem>>
      %253 = vector.broadcast %252 : f32 to vector<2x256xf32>
      %254 = arith.mulf %20, %253 : vector<2x256xf32>
      %255 = arith.addf %251, %254 : vector<2x256xf32>
      %c14_62 = arith.constant 14 : index
      %256 = memref.load %arg6[%c14_62] : memref<32xf32, #tpu.memory_space<smem>>
      %257 = vector.broadcast %256 : f32 to vector<2x256xf32>
      %258 = arith.addf %255, %257 : vector<2x256xf32>
      %cst_63 = arith.constant 0.000000e+00 : f32
      %259 = vector.broadcast %cst_63 : f32 to vector<2x256xf32>
      %260 = arith.maximumf %258, %259 : vector<2x256xf32>
      %c14_64 = arith.constant 14 : index
      %261 = memref.load %arg7[%c14_64] : memref<32xf32, #tpu.memory_space<smem>>
      %262 = vector.broadcast %261 : f32 to vector<2x256xf32>
      %263 = arith.mulf %260, %262 : vector<2x256xf32>
      %264 = arith.addf %248, %263 : vector<2x256xf32>
      %c15 = arith.constant 15 : index
      %265 = memref.load %arg5[%c15] : memref<64xf32, #tpu.memory_space<smem>>
      %266 = vector.broadcast %265 : f32 to vector<2x256xf32>
      %267 = arith.mulf %22, %266 : vector<2x256xf32>
      %c47 = arith.constant 47 : index
      %268 = memref.load %arg5[%c47] : memref<64xf32, #tpu.memory_space<smem>>
      %269 = vector.broadcast %268 : f32 to vector<2x256xf32>
      %270 = arith.mulf %20, %269 : vector<2x256xf32>
      %271 = arith.addf %267, %270 : vector<2x256xf32>
      %c15_65 = arith.constant 15 : index
      %272 = memref.load %arg6[%c15_65] : memref<32xf32, #tpu.memory_space<smem>>
      %273 = vector.broadcast %272 : f32 to vector<2x256xf32>
      %274 = arith.addf %271, %273 : vector<2x256xf32>
      %cst_66 = arith.constant 0.000000e+00 : f32
      %275 = vector.broadcast %cst_66 : f32 to vector<2x256xf32>
      %276 = arith.maximumf %274, %275 : vector<2x256xf32>
      %c15_67 = arith.constant 15 : index
      %277 = memref.load %arg7[%c15_67] : memref<32xf32, #tpu.memory_space<smem>>
      %278 = vector.broadcast %277 : f32 to vector<2x256xf32>
      %279 = arith.mulf %276, %278 : vector<2x256xf32>
      %280 = arith.addf %264, %279 : vector<2x256xf32>
      %c16 = arith.constant 16 : index
      %281 = memref.load %arg5[%c16] : memref<64xf32, #tpu.memory_space<smem>>
      %282 = vector.broadcast %281 : f32 to vector<2x256xf32>
      %283 = arith.mulf %22, %282 : vector<2x256xf32>
      %c48 = arith.constant 48 : index
      %284 = memref.load %arg5[%c48] : memref<64xf32, #tpu.memory_space<smem>>
      %285 = vector.broadcast %284 : f32 to vector<2x256xf32>
      %286 = arith.mulf %20, %285 : vector<2x256xf32>
      %287 = arith.addf %283, %286 : vector<2x256xf32>
      %c16_68 = arith.constant 16 : index
      %288 = memref.load %arg6[%c16_68] : memref<32xf32, #tpu.memory_space<smem>>
      %289 = vector.broadcast %288 : f32 to vector<2x256xf32>
      %290 = arith.addf %287, %289 : vector<2x256xf32>
      %cst_69 = arith.constant 0.000000e+00 : f32
      %291 = vector.broadcast %cst_69 : f32 to vector<2x256xf32>
      %292 = arith.maximumf %290, %291 : vector<2x256xf32>
      %c16_70 = arith.constant 16 : index
      %293 = memref.load %arg7[%c16_70] : memref<32xf32, #tpu.memory_space<smem>>
      %294 = vector.broadcast %293 : f32 to vector<2x256xf32>
      %295 = arith.mulf %292, %294 : vector<2x256xf32>
      %296 = arith.addf %280, %295 : vector<2x256xf32>
      %c17 = arith.constant 17 : index
      %297 = memref.load %arg5[%c17] : memref<64xf32, #tpu.memory_space<smem>>
      %298 = vector.broadcast %297 : f32 to vector<2x256xf32>
      %299 = arith.mulf %22, %298 : vector<2x256xf32>
      %c49 = arith.constant 49 : index
      %300 = memref.load %arg5[%c49] : memref<64xf32, #tpu.memory_space<smem>>
      %301 = vector.broadcast %300 : f32 to vector<2x256xf32>
      %302 = arith.mulf %20, %301 : vector<2x256xf32>
      %303 = arith.addf %299, %302 : vector<2x256xf32>
      %c17_71 = arith.constant 17 : index
      %304 = memref.load %arg6[%c17_71] : memref<32xf32, #tpu.memory_space<smem>>
      %305 = vector.broadcast %304 : f32 to vector<2x256xf32>
      %306 = arith.addf %303, %305 : vector<2x256xf32>
      %cst_72 = arith.constant 0.000000e+00 : f32
      %307 = vector.broadcast %cst_72 : f32 to vector<2x256xf32>
      %308 = arith.maximumf %306, %307 : vector<2x256xf32>
      %c17_73 = arith.constant 17 : index
      %309 = memref.load %arg7[%c17_73] : memref<32xf32, #tpu.memory_space<smem>>
      %310 = vector.broadcast %309 : f32 to vector<2x256xf32>
      %311 = arith.mulf %308, %310 : vector<2x256xf32>
      %312 = arith.addf %296, %311 : vector<2x256xf32>
      %c18 = arith.constant 18 : index
      %313 = memref.load %arg5[%c18] : memref<64xf32, #tpu.memory_space<smem>>
      %314 = vector.broadcast %313 : f32 to vector<2x256xf32>
      %315 = arith.mulf %22, %314 : vector<2x256xf32>
      %c50 = arith.constant 50 : index
      %316 = memref.load %arg5[%c50] : memref<64xf32, #tpu.memory_space<smem>>
      %317 = vector.broadcast %316 : f32 to vector<2x256xf32>
      %318 = arith.mulf %20, %317 : vector<2x256xf32>
      %319 = arith.addf %315, %318 : vector<2x256xf32>
      %c18_74 = arith.constant 18 : index
      %320 = memref.load %arg6[%c18_74] : memref<32xf32, #tpu.memory_space<smem>>
      %321 = vector.broadcast %320 : f32 to vector<2x256xf32>
      %322 = arith.addf %319, %321 : vector<2x256xf32>
      %cst_75 = arith.constant 0.000000e+00 : f32
      %323 = vector.broadcast %cst_75 : f32 to vector<2x256xf32>
      %324 = arith.maximumf %322, %323 : vector<2x256xf32>
      %c18_76 = arith.constant 18 : index
      %325 = memref.load %arg7[%c18_76] : memref<32xf32, #tpu.memory_space<smem>>
      %326 = vector.broadcast %325 : f32 to vector<2x256xf32>
      %327 = arith.mulf %324, %326 : vector<2x256xf32>
      %328 = arith.addf %312, %327 : vector<2x256xf32>
      %c19 = arith.constant 19 : index
      %329 = memref.load %arg5[%c19] : memref<64xf32, #tpu.memory_space<smem>>
      %330 = vector.broadcast %329 : f32 to vector<2x256xf32>
      %331 = arith.mulf %22, %330 : vector<2x256xf32>
      %c51 = arith.constant 51 : index
      %332 = memref.load %arg5[%c51] : memref<64xf32, #tpu.memory_space<smem>>
      %333 = vector.broadcast %332 : f32 to vector<2x256xf32>
      %334 = arith.mulf %20, %333 : vector<2x256xf32>
      %335 = arith.addf %331, %334 : vector<2x256xf32>
      %c19_77 = arith.constant 19 : index
      %336 = memref.load %arg6[%c19_77] : memref<32xf32, #tpu.memory_space<smem>>
      %337 = vector.broadcast %336 : f32 to vector<2x256xf32>
      %338 = arith.addf %335, %337 : vector<2x256xf32>
      %cst_78 = arith.constant 0.000000e+00 : f32
      %339 = vector.broadcast %cst_78 : f32 to vector<2x256xf32>
      %340 = arith.maximumf %338, %339 : vector<2x256xf32>
      %c19_79 = arith.constant 19 : index
      %341 = memref.load %arg7[%c19_79] : memref<32xf32, #tpu.memory_space<smem>>
      %342 = vector.broadcast %341 : f32 to vector<2x256xf32>
      %343 = arith.mulf %340, %342 : vector<2x256xf32>
      %344 = arith.addf %328, %343 : vector<2x256xf32>
      %c20 = arith.constant 20 : index
      %345 = memref.load %arg5[%c20] : memref<64xf32, #tpu.memory_space<smem>>
      %346 = vector.broadcast %345 : f32 to vector<2x256xf32>
      %347 = arith.mulf %22, %346 : vector<2x256xf32>
      %c52 = arith.constant 52 : index
      %348 = memref.load %arg5[%c52] : memref<64xf32, #tpu.memory_space<smem>>
      %349 = vector.broadcast %348 : f32 to vector<2x256xf32>
      %350 = arith.mulf %20, %349 : vector<2x256xf32>
      %351 = arith.addf %347, %350 : vector<2x256xf32>
      %c20_80 = arith.constant 20 : index
      %352 = memref.load %arg6[%c20_80] : memref<32xf32, #tpu.memory_space<smem>>
      %353 = vector.broadcast %352 : f32 to vector<2x256xf32>
      %354 = arith.addf %351, %353 : vector<2x256xf32>
      %cst_81 = arith.constant 0.000000e+00 : f32
      %355 = vector.broadcast %cst_81 : f32 to vector<2x256xf32>
      %356 = arith.maximumf %354, %355 : vector<2x256xf32>
      %c20_82 = arith.constant 20 : index
      %357 = memref.load %arg7[%c20_82] : memref<32xf32, #tpu.memory_space<smem>>
      %358 = vector.broadcast %357 : f32 to vector<2x256xf32>
      %359 = arith.mulf %356, %358 : vector<2x256xf32>
      %360 = arith.addf %344, %359 : vector<2x256xf32>
      %c21 = arith.constant 21 : index
      %361 = memref.load %arg5[%c21] : memref<64xf32, #tpu.memory_space<smem>>
      %362 = vector.broadcast %361 : f32 to vector<2x256xf32>
      %363 = arith.mulf %22, %362 : vector<2x256xf32>
      %c53 = arith.constant 53 : index
      %364 = memref.load %arg5[%c53] : memref<64xf32, #tpu.memory_space<smem>>
      %365 = vector.broadcast %364 : f32 to vector<2x256xf32>
      %366 = arith.mulf %20, %365 : vector<2x256xf32>
      %367 = arith.addf %363, %366 : vector<2x256xf32>
      %c21_83 = arith.constant 21 : index
      %368 = memref.load %arg6[%c21_83] : memref<32xf32, #tpu.memory_space<smem>>
      %369 = vector.broadcast %368 : f32 to vector<2x256xf32>
      %370 = arith.addf %367, %369 : vector<2x256xf32>
      %cst_84 = arith.constant 0.000000e+00 : f32
      %371 = vector.broadcast %cst_84 : f32 to vector<2x256xf32>
      %372 = arith.maximumf %370, %371 : vector<2x256xf32>
      %c21_85 = arith.constant 21 : index
      %373 = memref.load %arg7[%c21_85] : memref<32xf32, #tpu.memory_space<smem>>
      %374 = vector.broadcast %373 : f32 to vector<2x256xf32>
      %375 = arith.mulf %372, %374 : vector<2x256xf32>
      %376 = arith.addf %360, %375 : vector<2x256xf32>
      %c22 = arith.constant 22 : index
      %377 = memref.load %arg5[%c22] : memref<64xf32, #tpu.memory_space<smem>>
      %378 = vector.broadcast %377 : f32 to vector<2x256xf32>
      %379 = arith.mulf %22, %378 : vector<2x256xf32>
      %c54 = arith.constant 54 : index
      %380 = memref.load %arg5[%c54] : memref<64xf32, #tpu.memory_space<smem>>
      %381 = vector.broadcast %380 : f32 to vector<2x256xf32>
      %382 = arith.mulf %20, %381 : vector<2x256xf32>
      %383 = arith.addf %379, %382 : vector<2x256xf32>
      %c22_86 = arith.constant 22 : index
      %384 = memref.load %arg6[%c22_86] : memref<32xf32, #tpu.memory_space<smem>>
      %385 = vector.broadcast %384 : f32 to vector<2x256xf32>
      %386 = arith.addf %383, %385 : vector<2x256xf32>
      %cst_87 = arith.constant 0.000000e+00 : f32
      %387 = vector.broadcast %cst_87 : f32 to vector<2x256xf32>
      %388 = arith.maximumf %386, %387 : vector<2x256xf32>
      %c22_88 = arith.constant 22 : index
      %389 = memref.load %arg7[%c22_88] : memref<32xf32, #tpu.memory_space<smem>>
      %390 = vector.broadcast %389 : f32 to vector<2x256xf32>
      %391 = arith.mulf %388, %390 : vector<2x256xf32>
      %392 = arith.addf %376, %391 : vector<2x256xf32>
      %c23 = arith.constant 23 : index
      %393 = memref.load %arg5[%c23] : memref<64xf32, #tpu.memory_space<smem>>
      %394 = vector.broadcast %393 : f32 to vector<2x256xf32>
      %395 = arith.mulf %22, %394 : vector<2x256xf32>
      %c55 = arith.constant 55 : index
      %396 = memref.load %arg5[%c55] : memref<64xf32, #tpu.memory_space<smem>>
      %397 = vector.broadcast %396 : f32 to vector<2x256xf32>
      %398 = arith.mulf %20, %397 : vector<2x256xf32>
      %399 = arith.addf %395, %398 : vector<2x256xf32>
      %c23_89 = arith.constant 23 : index
      %400 = memref.load %arg6[%c23_89] : memref<32xf32, #tpu.memory_space<smem>>
      %401 = vector.broadcast %400 : f32 to vector<2x256xf32>
      %402 = arith.addf %399, %401 : vector<2x256xf32>
      %cst_90 = arith.constant 0.000000e+00 : f32
      %403 = vector.broadcast %cst_90 : f32 to vector<2x256xf32>
      %404 = arith.maximumf %402, %403 : vector<2x256xf32>
      %c23_91 = arith.constant 23 : index
      %405 = memref.load %arg7[%c23_91] : memref<32xf32, #tpu.memory_space<smem>>
      %406 = vector.broadcast %405 : f32 to vector<2x256xf32>
      %407 = arith.mulf %404, %406 : vector<2x256xf32>
      %408 = arith.addf %392, %407 : vector<2x256xf32>
      %c24 = arith.constant 24 : index
      %409 = memref.load %arg5[%c24] : memref<64xf32, #tpu.memory_space<smem>>
      %410 = vector.broadcast %409 : f32 to vector<2x256xf32>
      %411 = arith.mulf %22, %410 : vector<2x256xf32>
      %c56 = arith.constant 56 : index
      %412 = memref.load %arg5[%c56] : memref<64xf32, #tpu.memory_space<smem>>
      %413 = vector.broadcast %412 : f32 to vector<2x256xf32>
      %414 = arith.mulf %20, %413 : vector<2x256xf32>
      %415 = arith.addf %411, %414 : vector<2x256xf32>
      %c24_92 = arith.constant 24 : index
      %416 = memref.load %arg6[%c24_92] : memref<32xf32, #tpu.memory_space<smem>>
      %417 = vector.broadcast %416 : f32 to vector<2x256xf32>
      %418 = arith.addf %415, %417 : vector<2x256xf32>
      %cst_93 = arith.constant 0.000000e+00 : f32
      %419 = vector.broadcast %cst_93 : f32 to vector<2x256xf32>
      %420 = arith.maximumf %418, %419 : vector<2x256xf32>
      %c24_94 = arith.constant 24 : index
      %421 = memref.load %arg7[%c24_94] : memref<32xf32, #tpu.memory_space<smem>>
      %422 = vector.broadcast %421 : f32 to vector<2x256xf32>
      %423 = arith.mulf %420, %422 : vector<2x256xf32>
      %424 = arith.addf %408, %423 : vector<2x256xf32>
      %c25 = arith.constant 25 : index
      %425 = memref.load %arg5[%c25] : memref<64xf32, #tpu.memory_space<smem>>
      %426 = vector.broadcast %425 : f32 to vector<2x256xf32>
      %427 = arith.mulf %22, %426 : vector<2x256xf32>
      %c57 = arith.constant 57 : index
      %428 = memref.load %arg5[%c57] : memref<64xf32, #tpu.memory_space<smem>>
      %429 = vector.broadcast %428 : f32 to vector<2x256xf32>
      %430 = arith.mulf %20, %429 : vector<2x256xf32>
      %431 = arith.addf %427, %430 : vector<2x256xf32>
      %c25_95 = arith.constant 25 : index
      %432 = memref.load %arg6[%c25_95] : memref<32xf32, #tpu.memory_space<smem>>
      %433 = vector.broadcast %432 : f32 to vector<2x256xf32>
      %434 = arith.addf %431, %433 : vector<2x256xf32>
      %cst_96 = arith.constant 0.000000e+00 : f32
      %435 = vector.broadcast %cst_96 : f32 to vector<2x256xf32>
      %436 = arith.maximumf %434, %435 : vector<2x256xf32>
      %c25_97 = arith.constant 25 : index
      %437 = memref.load %arg7[%c25_97] : memref<32xf32, #tpu.memory_space<smem>>
      %438 = vector.broadcast %437 : f32 to vector<2x256xf32>
      %439 = arith.mulf %436, %438 : vector<2x256xf32>
      %440 = arith.addf %424, %439 : vector<2x256xf32>
      %c26 = arith.constant 26 : index
      %441 = memref.load %arg5[%c26] : memref<64xf32, #tpu.memory_space<smem>>
      %442 = vector.broadcast %441 : f32 to vector<2x256xf32>
      %443 = arith.mulf %22, %442 : vector<2x256xf32>
      %c58 = arith.constant 58 : index
      %444 = memref.load %arg5[%c58] : memref<64xf32, #tpu.memory_space<smem>>
      %445 = vector.broadcast %444 : f32 to vector<2x256xf32>
      %446 = arith.mulf %20, %445 : vector<2x256xf32>
      %447 = arith.addf %443, %446 : vector<2x256xf32>
      %c26_98 = arith.constant 26 : index
      %448 = memref.load %arg6[%c26_98] : memref<32xf32, #tpu.memory_space<smem>>
      %449 = vector.broadcast %448 : f32 to vector<2x256xf32>
      %450 = arith.addf %447, %449 : vector<2x256xf32>
      %cst_99 = arith.constant 0.000000e+00 : f32
      %451 = vector.broadcast %cst_99 : f32 to vector<2x256xf32>
      %452 = arith.maximumf %450, %451 : vector<2x256xf32>
      %c26_100 = arith.constant 26 : index
      %453 = memref.load %arg7[%c26_100] : memref<32xf32, #tpu.memory_space<smem>>
      %454 = vector.broadcast %453 : f32 to vector<2x256xf32>
      %455 = arith.mulf %452, %454 : vector<2x256xf32>
      %456 = arith.addf %440, %455 : vector<2x256xf32>
      %c27 = arith.constant 27 : index
      %457 = memref.load %arg5[%c27] : memref<64xf32, #tpu.memory_space<smem>>
      %458 = vector.broadcast %457 : f32 to vector<2x256xf32>
      %459 = arith.mulf %22, %458 : vector<2x256xf32>
      %c59 = arith.constant 59 : index
      %460 = memref.load %arg5[%c59] : memref<64xf32, #tpu.memory_space<smem>>
      %461 = vector.broadcast %460 : f32 to vector<2x256xf32>
      %462 = arith.mulf %20, %461 : vector<2x256xf32>
      %463 = arith.addf %459, %462 : vector<2x256xf32>
      %c27_101 = arith.constant 27 : index
      %464 = memref.load %arg6[%c27_101] : memref<32xf32, #tpu.memory_space<smem>>
      %465 = vector.broadcast %464 : f32 to vector<2x256xf32>
      %466 = arith.addf %463, %465 : vector<2x256xf32>
      %cst_102 = arith.constant 0.000000e+00 : f32
      %467 = vector.broadcast %cst_102 : f32 to vector<2x256xf32>
      %468 = arith.maximumf %466, %467 : vector<2x256xf32>
      %c27_103 = arith.constant 27 : index
      %469 = memref.load %arg7[%c27_103] : memref<32xf32, #tpu.memory_space<smem>>
      %470 = vector.broadcast %469 : f32 to vector<2x256xf32>
      %471 = arith.mulf %468, %470 : vector<2x256xf32>
      %472 = arith.addf %456, %471 : vector<2x256xf32>
      %c28 = arith.constant 28 : index
      %473 = memref.load %arg5[%c28] : memref<64xf32, #tpu.memory_space<smem>>
      %474 = vector.broadcast %473 : f32 to vector<2x256xf32>
      %475 = arith.mulf %22, %474 : vector<2x256xf32>
      %c60 = arith.constant 60 : index
      %476 = memref.load %arg5[%c60] : memref<64xf32, #tpu.memory_space<smem>>
      %477 = vector.broadcast %476 : f32 to vector<2x256xf32>
      %478 = arith.mulf %20, %477 : vector<2x256xf32>
      %479 = arith.addf %475, %478 : vector<2x256xf32>
      %c28_104 = arith.constant 28 : index
      %480 = memref.load %arg6[%c28_104] : memref<32xf32, #tpu.memory_space<smem>>
      %481 = vector.broadcast %480 : f32 to vector<2x256xf32>
      %482 = arith.addf %479, %481 : vector<2x256xf32>
      %cst_105 = arith.constant 0.000000e+00 : f32
      %483 = vector.broadcast %cst_105 : f32 to vector<2x256xf32>
      %484 = arith.maximumf %482, %483 : vector<2x256xf32>
      %c28_106 = arith.constant 28 : index
      %485 = memref.load %arg7[%c28_106] : memref<32xf32, #tpu.memory_space<smem>>
      %486 = vector.broadcast %485 : f32 to vector<2x256xf32>
      %487 = arith.mulf %484, %486 : vector<2x256xf32>
      %488 = arith.addf %472, %487 : vector<2x256xf32>
      %c29 = arith.constant 29 : index
      %489 = memref.load %arg5[%c29] : memref<64xf32, #tpu.memory_space<smem>>
      %490 = vector.broadcast %489 : f32 to vector<2x256xf32>
      %491 = arith.mulf %22, %490 : vector<2x256xf32>
      %c61 = arith.constant 61 : index
      %492 = memref.load %arg5[%c61] : memref<64xf32, #tpu.memory_space<smem>>
      %493 = vector.broadcast %492 : f32 to vector<2x256xf32>
      %494 = arith.mulf %20, %493 : vector<2x256xf32>
      %495 = arith.addf %491, %494 : vector<2x256xf32>
      %c29_107 = arith.constant 29 : index
      %496 = memref.load %arg6[%c29_107] : memref<32xf32, #tpu.memory_space<smem>>
      %497 = vector.broadcast %496 : f32 to vector<2x256xf32>
      %498 = arith.addf %495, %497 : vector<2x256xf32>
      %cst_108 = arith.constant 0.000000e+00 : f32
      %499 = vector.broadcast %cst_108 : f32 to vector<2x256xf32>
      %500 = arith.maximumf %498, %499 : vector<2x256xf32>
      %c29_109 = arith.constant 29 : index
      %501 = memref.load %arg7[%c29_109] : memref<32xf32, #tpu.memory_space<smem>>
      %502 = vector.broadcast %501 : f32 to vector<2x256xf32>
      %503 = arith.mulf %500, %502 : vector<2x256xf32>
      %504 = arith.addf %488, %503 : vector<2x256xf32>
      %c30 = arith.constant 30 : index
      %505 = memref.load %arg5[%c30] : memref<64xf32, #tpu.memory_space<smem>>
      %506 = vector.broadcast %505 : f32 to vector<2x256xf32>
      %507 = arith.mulf %22, %506 : vector<2x256xf32>
      %c62 = arith.constant 62 : index
      %508 = memref.load %arg5[%c62] : memref<64xf32, #tpu.memory_space<smem>>
      %509 = vector.broadcast %508 : f32 to vector<2x256xf32>
      %510 = arith.mulf %20, %509 : vector<2x256xf32>
      %511 = arith.addf %507, %510 : vector<2x256xf32>
      %c30_110 = arith.constant 30 : index
      %512 = memref.load %arg6[%c30_110] : memref<32xf32, #tpu.memory_space<smem>>
      %513 = vector.broadcast %512 : f32 to vector<2x256xf32>
      %514 = arith.addf %511, %513 : vector<2x256xf32>
      %cst_111 = arith.constant 0.000000e+00 : f32
      %515 = vector.broadcast %cst_111 : f32 to vector<2x256xf32>
      %516 = arith.maximumf %514, %515 : vector<2x256xf32>
      %c30_112 = arith.constant 30 : index
      %517 = memref.load %arg7[%c30_112] : memref<32xf32, #tpu.memory_space<smem>>
      %518 = vector.broadcast %517 : f32 to vector<2x256xf32>
      %519 = arith.mulf %516, %518 : vector<2x256xf32>
      %520 = arith.addf %504, %519 : vector<2x256xf32>
      %c31 = arith.constant 31 : index
      %521 = memref.load %arg5[%c31] : memref<64xf32, #tpu.memory_space<smem>>
      %522 = vector.broadcast %521 : f32 to vector<2x256xf32>
      %523 = arith.mulf %22, %522 : vector<2x256xf32>
      %c63 = arith.constant 63 : index
      %524 = memref.load %arg5[%c63] : memref<64xf32, #tpu.memory_space<smem>>
      %525 = vector.broadcast %524 : f32 to vector<2x256xf32>
      %526 = arith.mulf %20, %525 : vector<2x256xf32>
      %527 = arith.addf %523, %526 : vector<2x256xf32>
      %c31_113 = arith.constant 31 : index
      %528 = memref.load %arg6[%c31_113] : memref<32xf32, #tpu.memory_space<smem>>
      %529 = vector.broadcast %528 : f32 to vector<2x256xf32>
      %530 = arith.addf %527, %529 : vector<2x256xf32>
      %cst_114 = arith.constant 0.000000e+00 : f32
      %531 = vector.broadcast %cst_114 : f32 to vector<2x256xf32>
      %532 = arith.maximumf %530, %531 : vector<2x256xf32>
      %c31_115 = arith.constant 31 : index
      %533 = memref.load %arg7[%c31_115] : memref<32xf32, #tpu.memory_space<smem>>
      %534 = vector.broadcast %533 : f32 to vector<2x256xf32>
      %535 = arith.mulf %532, %534 : vector<2x256xf32>
      %536 = arith.addf %520, %535 : vector<2x256xf32>
      %c0_116 = arith.constant 0 : index
      %c0_117 = arith.constant 0 : index
      %537 = vector.load %arg10[%c0_116, %c0_117] : memref<2x256xf32, #tpu.memory_space<vmem>>, vector<2x256xf32>
      tpu.vector_store %arg10[%c0_116, %c0_117], %536 {strides = array<i32>} : memref<2x256xf32, #tpu.memory_space<vmem>>, vector<2x256xf32>,
    } else {
    }
    return
  }
  func.func @transform_0(%arg0: i32, %arg1: i32) -> (i32, i32) {
    %c0_i32 = arith.constant 0 : i32
    %c0_i32_0 = arith.constant 0 : i32
    return %c0_i32, %arg1 : i32, i32
  }
  func.func @transform_1(%arg0: i32, %arg1: i32) -> (i32, i32) {
    %c0_i32 = arith.constant 0 : i32
    return %arg1, %arg0 : i32, i32
  }
  func.func @transform_2(%arg0: i32, %arg1: i32) -> (i32, i32) {
    %c0_i32 = arith.constant 0 : i32
    %c0_i32_0 = arith.constant 0 : i32
    return %c0_i32, %arg0 : i32, i32
  }
  func.func @transform_3(%arg0: i32, %arg1: i32) -> i32 {
    %c0_i32 = arith.constant 0 : i32
    %c0_i32_0 = arith.constant 0 : i32
    return %c0_i32 : i32
  }
  func.func @transform_4(%arg0: i32, %arg1: i32) -> i32 {
    %c0_i32 = arith.constant 0 : i32
    %c0_i32_0 = arith.constant 0 : i32
    return %c0_i32 : i32
  }
  func.func @transform_5(%arg0: i32, %arg1: i32) -> i32 {
    %c0_i32 = arith.constant 0 : i32
    %c0_i32_0 = arith.constant 0 : i32
    return %c0_i32 : i32
  }
  func.func @transform_6(%arg0: i32, %arg1: i32) -> i32 {
    %c0_i32 = arith.constant 0 : i32
    %c0_i32_0 = arith.constant 0 : i32
    return %c0_i32 : i32
  }
  func.func @transform_7(%arg0: i32, %arg1: i32) -> (i32, i32) {
    %c0_i32 = arith.constant 0 : i32
    %c0_i32_0 = arith.constant 0 : i32
    return %c0_i32, %arg0 : i32, i32
  }
  func.func @transform_8(%arg0: i32, %arg1: i32) -> (i32, i32) {
    %c0_i32 = arith.constant 0 : i32
    %c0_i32_0 = arith.constant 0 : i32
    return %c0_i32, %arg0 : i32, i32
  }
}

</mosaic_0001>

<llo_original>
// kernel: mar_li_net_forward.2
$region0: #{mar_li_net_forward.2}
  #allocation0 [shape = 'u32[]', space=smem, size = 0x4, offset = 0x4, fixed_abs, tag = 'smem constant byte address 0x4 - core index']
  #allocation1 [shape = 'u32[144,128]{1,0:T(1,128)}', space=vmem, size = 0x12000, scoped, tag = 'internal scratch']
  #allocation2 [shape = 'f32[1]{0:T(128)S(6)}', space=smem, size = 0x200, scoped, tag = 'scoped memory for mar_li_net_forward.2']
  %s0 = inlined_call_operand.vmem [shape: f32[2,256], index: 0, kind: input, shape index: {}]
  %s1 = inlined_call_operand.vmem [shape: f32[2,256], index: 1, kind: input, shape index: {}]
  %s2 = inlined_call_operand.vmem [shape: f32[64], index: 2, kind: input, shape index: {}]
  %s3 = inlined_call_operand.vmem [shape: f32[32], index: 3, kind: input, shape index: {}]
  %s4 = inlined_call_operand.vmem [shape: f32[32], index: 4, kind: input, shape index: {}]
  %s5 = inlined_call_operand.<no memory space> [shape: f32[1], index: 5, kind: input, shape index: {}]
  %s6 = inlined_call_operand.vmem [shape: f32[2,256], index: 6, kind: output, shape index: {0}]
  %s7 = inlined_call_operand.vmem [shape: bf16[2,256], index: 7, kind: output, shape index: {1}]
  %8 = xla_tuple %s6, %s7
  %s9 = sld [smem:[#allocation0]]
  $region54: #{mar_li_net_forward.2} parent=0
    _
  %s11 = ssub.s32 1, %s9
  %s12 = scalar_select 0, %s11, %s9
  %13 = sst [smem:[#allocation2]] %s5
  $region1: #{mar_li_net_forward.2} parent=0
    #allocation3 [shape = 'u8[512]{0}', space=smem, size = 0x200, scoped, tag = 'input window, operand 2, single buffered']
    #allocation4 [shape = 's32[1]{0}', space=sflag, size = 0x4, scoped, tag = 'scoped memory for mar_li_net_forward.2']
    #allocation5 [shape = 'u8[512]{0}', space=smem, size = 0x200, scoped, tag = 'input window, operand 3, single buffered']
    #allocation6 [shape = 's32[1]{0}', space=sflag, size = 0x4, scoped, tag = 'scoped memory for mar_li_net_forward.2']
    #allocation7 [shape = 'u8[512]{0}', space=smem, size = 0x200, scoped, tag = 'input window, operand 4, single buffered']
    %14 = vsyncpa [#allocation4], 0
    %15 = vsyncpa [#allocation6], 0
    // Predicated region
    $region2: #{mar_li_net_forward.2} parent=1 // pred_check
      _
    $region3: #{mar_li_net_forward.2} parent=1 // pred_check_branch
      %17 = sbr.rel (0) target = $region5
    $region4: #{mar_li_net_forward.2} parent=1 // pred_region
      _
    $region5: #{mar_li_net_forward.2} parent=1 // pred_fallthru
      _
    // Predicated region
    $region6: #{mar_li_net_forward.2} parent=1 // pred_check
      _
    $region7: #{mar_li_net_forward.2} parent=1 // pred_check_branch
      %19 = sbr.rel (0) target = $region9
    $region8: #{mar_li_net_forward.2} parent=1 // pred_region
      _
    $region9: #{mar_li_net_forward.2} parent=1 // pred_fallthru
      _
    // Predicated region
    $region10: #{mar_li_net_forward.2} parent=1 // pred_check
      _
    $region11: #{mar_li_net_forward.2} parent=1 // pred_check_branch
      %21 = sbr.rel (0) target = $region13
    $region12: #{mar_li_net_forward.2} parent=1 // pred_region
      %s23 = ssub.s32 16, 16
      %24 = vsyncadd [#allocation4], %s23
      %s26 = sshll.u32 %s2, 4
      %s27 = int_to_ptr.vmem [resolvable:$true] %s26
      %29 = dma.vmem_to_smem %s27, 16, [#allocation3], [#allocation4]
    $region13: #{mar_li_net_forward.2} parent=1 // pred_fallthru
      _
    // Predicated region
    $region14: #{mar_li_net_forward.2} parent=1 // pred_check
      _
    $region15: #{mar_li_net_forward.2} parent=1 // pred_check_branch
      %31 = sbr.rel (0) target = $region17
    $region16: #{mar_li_net_forward.2} parent=1 // pred_region
      %s33 = ssub.s32 16, 16
      %34 = vsyncadd [#allocation6], %s33
      %s36 = sshll.u32 %s3, 4
      %s37 = int_to_ptr.vmem [resolvable:$true] %s36
      %39 = dma.vmem_to_smem %s37, 16, [#allocation5], [#allocation6]
    $region17: #{mar_li_net_forward.2} parent=1 // pred_fallthru
      _
    // Predicated region
    $region18: #{mar_li_net_forward.2} parent=1 // pred_check
      _
    $region19: #{mar_li_net_forward.2} parent=1 // pred_check_branch
      %41 = sbr.rel (0) target = $region21
    $region20: #{mar_li_net_forward.2} parent=1 // pred_region
      %s43 = ssub.s32 16, 16
      %44 = vsyncadd [#allocation6], %s43
      %s46 = sshll.u32 %s4, 4
      %s47 = int_to_ptr.vmem [resolvable:$true] %s46
      %49 = dma.vmem_to_smem %s47, 16, [#allocation7], [#allocation6]
    $region21: #{mar_li_net_forward.2} parent=1 // pred_fallthru
      _
    // Predicated region
    $region22: #{mar_li_net_forward.2} parent=1 // pred_check
      _
    $region23: #{mar_li_net_forward.2} parent=1 // pred_check_branch
      %51 = sbr.rel (0) target = $region25
    $region24: #{mar_li_net_forward.2} parent=1 // pred_region
      _
    $region25: #{mar_li_net_forward.2} parent=1 // pred_fallthru
      _
    // Predicated region
    $region26: #{mar_li_net_forward.2} parent=1 // pred_check
      _
    $region27: #{mar_li_net_forward.2} parent=1 // pred_check_branch
      %53 = sbr.rel (0) target = $region29
    $region28: #{mar_li_net_forward.2} parent=1 // pred_region
      %54 = dma.done [#allocation4], 16
    $region29: #{mar_li_net_forward.2} parent=1 // pred_fallthru
      _
    // Predicated region
    $region30: #{mar_li_net_forward.2} parent=1 // pred_check
      _
    $region31: #{mar_li_net_forward.2} parent=1 // pred_check_branch
      %56 = sbr.rel (0) target = $region33
    $region32: #{mar_li_net_forward.2} parent=1 // pred_region
      %57 = dma.done [#allocation6], 16
    $region33: #{mar_li_net_forward.2} parent=1 // pred_fallthru
      _
    // Predicated region
    $region34: #{mar_li_net_forward.2} parent=1 // pred_check
      _
    $region35: #{mar_li_net_forward.2} parent=1 // pred_check_branch
      %59 = sbr.rel (0) target = $region37
    $region36: #{mar_li_net_forward.2} parent=1 // pred_region
      %60 = dma.done [#allocation6], 16
    $region37: #{mar_li_net_forward.2} parent=1 // pred_fallthru
      _
    %61 = sfence
    %v62 = vld [vmem:[%s0] sm:$0xf]
    %v63 = vld [vmem:[%s1] sm:$0xf]
    %s64 = sld [smem:[#allocation2]]
    %v65 = vstv %s64
    %s66 = sld [smem:[#allocation3]]
    %v67 = vstv %s66
    %v68 = vmul.f32 %v62, %v67
    %s69 = sld [smem:[#allocation3 + $0x20]]
    %v70 = vstv %s69
    %v71 = vmul.f32 %v63, %v70
    %v72 = vadd.f32 %v68, %v71
    %s73 = sld [smem:[#allocation5]]
    %v74 = vstv %s73
    %v75 = vadd.f32 %v72, %v74
    %v76 = vmax.f32 %v75, 0.0
    %s77 = sld [smem:[#allocation7]]
    %v78 = vstv %s77
    %v79 = vmul.f32 %v76, %v78
    %v80 = vadd.f32 %v65, %v79
    %s81 = sld [smem:[#allocation3 + $0x1]]
    %v82 = vstv %s81
    %v83 = vmul.f32 %v62, %v82
    %s84 = sld [smem:[#allocation3 + $0x21]]
    %v85 = vstv %s84
    %v86 = vmul.f32 %v63, %v85
    %v87 = vadd.f32 %v83, %v86
    %s88 = sld [smem:[#allocation5 + $0x1]]
    %v89 = vstv %s88
    %v90 = vadd.f32 %v87, %v89
    %v91 = vmax.f32 %v90, 0.0
    %s92 = sld [smem:[#allocation7 + $0x1]]
    %v93 = vstv %s92
    %v94 = vmul.f32 %v91, %v93
    %v95 = vadd.f32 %v80, %v94
    %s96 = sld [smem:[#allocation3 + $0x2]]
    %v97 = vstv %s96
    %v98 = vmul.f32 %v62, %v97
    %s99 = sld [smem:[#allocation3 + $0x22]]
    %v100 = vstv %s99
    %v101 = vmul.f32 %v63, %v100
    %v102 = vadd.f32 %v98, %v101
    %s103 = sld [smem:[#allocation5 + $0x2]]
    %v104 = vstv %s103
    %v105 = vadd.f32 %v102, %v104
    %v106 = vmax.f32 %v105, 0.0
    %s107 = sld [smem:[#allocation7 + $0x2]]
    %v108 = vstv %s107
    %v109 = vmul.f32 %v106, %v108
    %v110 = vadd.f32 %v95, %v109
    %s111 = sld [smem:[#allocation3 + $0x3]]
    %v112 = vstv %s111
    %v113 = vmul.f32 %v62, %v112
    %s114 = sld [smem:[#allocation3 + $0x23]]
    %v115 = vstv %s114
    %v116 = vmul.f32 %v63, %v115
    %v117 = vadd.f32 %v113, %v116
    %s118 = sld [smem:[#allocation5 + $0x3]]
    %v119 = vstv %s118
    %v120 = vadd.f32 %v117, %v119
    %v121 = vmax.f32 %v120, 0.0
    %s122 = sld [smem:[#allocation7 + $0x3]]
    %v123 = vstv %s122
    %v124 = vmul.f32 %v121, %v123
    %v125 = vadd.f32 %v110, %v124
    %s126 = sld [smem:[#allocation3 + $0x4]]
    %v127 = vstv %s126
    %v128 = vmul.f32 %v62, %v127
    %s129 = sld [smem:[#allocation3 + $0x24]]
    %v130 = vstv %s129
    %v131 = vmul.f32 %v63, %v130
    %v132 = vadd.f32 %v128, %v131
    %s133 = sld [smem:[#allocation5 + $0x4]]
    %v134 = vstv %s133
    %v135 = vadd.f32 %v132, %v134
    %v136 = vmax.f32 %v135, 0.0
    %s137 = sld [smem:[#allocation7 + $0x4]]
    %v138 = vstv %s137
    %v139 = vmul.f32 %v136, %v138
    %v140 = vadd.f32 %v125, %v139
    %s141 = sld [smem:[#allocation3 + $0x5]]
    %v142 = vstv %s141
    %v143 = vmul.f32 %v62, %v142
    %s144 = sld [smem:[#allocation3 + $0x25]]
    %v145 = vstv %s144
    %v146 = vmul.f32 %v63, %v145
    %v147 = vadd.f32 %v143, %v146
    %s148 = sld [smem:[#allocation5 + $0x5]]
    %v149 = vstv %s148
    %v150 = vadd.f32 %v147, %v149
    %v151 = vmax.f32 %v150, 0.0
    %s152 = sld [smem:[#allocation7 + $0x5]]
    %v153 = vstv %s152
    %v154 = vmul.f32 %v151, %v153
    %v155 = vadd.f32 %v140, %v154
    %s156 = sld [smem:[#allocation3 + $0x6]]
    %v157 = vstv %s156
    %v158 = vmul.f32 %v62, %v157
    %s159 = sld [smem:[#allocation3 + $0x26]]
    %v160 = vstv %s159
    %v161 = vmul.f32 %v63, %v160
    %v162 = vadd.f32 %v158, %v161
    %s163 = sld [smem:[#allocation5 + $0x6]]
    %v164 = vstv %s163
    %v165 = vadd.f32 %v162, %v164
    %v166 = vmax.f32 %v165, 0.0
    %s167 = sld [smem:[#allocation7 + $0x6]]
    %v168 = vstv %s167
    %v169 = vmul.f32 %v166, %v168
    %v170 = vadd.f32 %v155, %v169
    %s171 = sld [smem:[#allocation3 + $0x7]]
    %v172 = vstv %s171
    %v173 = vmul.f32 %v62, %v172
    %s174 = sld [smem:[#allocation3 + $0x27]]
    %v175 = vstv %s174
    %v176 = vmul.f32 %v63, %v175
    %v177 = vadd.f32 %v173, %v176
    %s178 = sld [smem:[#allocation5 + $0x7]]
    %v179 = vstv %s178
    %v180 = vadd.f32 %v177, %v179
    %v181 = vmax.f32 %v180, 0.0
    %s182 = sld [smem:[#allocation7 + $0x7]]
    %v183 = vstv %s182
    %v184 = vmul.f32 %v181, %v183
    %v185 = vadd.f32 %v170, %v184
    %s186 = sld [smem:[#allocation3 + $0x8]]
    %v187 = vstv %s186
    %v188 = vmul.f32 %v62, %v187
    %s189 = sld [smem:[#allocation3 + $0x28]]
    %v190 = vstv %s189
    %v191 = vmul.f32 %v63, %v190
    %v192 = vadd.f32 %v188, %v191
    %s193 = sld [smem:[#allocation5 + $0x8]]
    %v194 = vstv %s193
    %v195 = vadd.f32 %v192, %v194
    %v196 = vmax.f32 %v195, 0.0
    %s197 = sld [smem:[#allocation7 + $0x8]]
    %v198 = vstv %s197
    %v199 = vmul.f32 %v196, %v198
    %v200 = vadd.f32 %v185, %v199
    %s201 = sld [smem:[#allocation3 + $0x9]]
    %v202 = vstv %s201
    %v203 = vmul.f32 %v62, %v202
    %s204 = sld [smem:[#allocation3 + $0x29]]
    %v205 = vstv %s204
    %v206 = vmul.f32 %v63, %v205
    %v207 = vadd.f32 %v203, %v206
    %s208 = sld [smem:[#allocation5 + $0x9]]
    %v209 = vstv %s208
    %v210 = vadd.f32 %v207, %v209
    %v211 = vmax.f32 %v210, 0.0
    %s212 = sld [smem:[#allocation7 + $0x9]]
    %v213 = vstv %s212
    %v214 = vmul.f32 %v211, %v213
    %v215 = vadd.f32 %v200, %v214
    %s216 = sld [smem:[#allocation3 + $0xa]]
    %v217 = vstv %s216
    %v218 = vmul.f32 %v62, %v217
    %s219 = sld [smem:[#allocation3 + $0x2a]]
    %v220 = vstv %s219
    %v221 = vmul.f32 %v63, %v220
    %v222 = vadd.f32 %v218, %v221
    %s223 = sld [smem:[#allocation5 + $0xa]]
    %v224 = vstv %s223
    %v225 = vadd.f32 %v222, %v224
    %v226 = vmax.f32 %v225, 0.0
    %s227 = sld [smem:[#allocation7 + $0xa]]
    %v228 = vstv %s227
    %v229 = vmul.f32 %v226, %v228
    %v230 = vadd.f32 %v215, %v229
    %s231 = sld [smem:[#allocation3 + $0xb]]
    %v232 = vstv %s231
    %v233 = vmul.f32 %v62, %v232
    %s234 = sld [smem:[#allocation3 + $0x2b]]
    %v235 = vstv %s234
    %v236 = vmul.f32 %v63, %v235
    %v237 = vadd.f32 %v233, %v236
    %s238 = sld [smem:[#allocation5 + $0xb]]
    %v239 = vstv %s238
    %v240 = vadd.f32 %v237, %v239
    %v241 = vmax.f32 %v240, 0.0
    %s242 = sld [smem:[#allocation7 + $0xb]]
    %v243 = vstv %s242
    %v244 = vmul.f32 %v241, %v243
    %v245 = vadd.f32 %v230, %v244
    %s246 = sld [smem:[#allocation3 + $0xc]]
    %v247 = vstv %s246
    %v248 = vmul.f32 %v62, %v247
    %s249 = sld [smem:[#allocation3 + $0x2c]]
    %v250 = vstv %s249
    %v251 = vmul.f32 %v63, %v250
    %v252 = vadd.f32 %v248, %v251
    %s253 = sld [smem:[#allocation5 + $0xc]]
    %v254 = vstv %s253
    %v255 = vadd.f32 %v252, %v254
    %v256 = vmax.f32 %v255, 0.0
    %s257 = sld [smem:[#allocation7 + $0xc]]
    %v258 = vstv %s257
    %v259 = vmul.f32 %v256, %v258
    %v260 = vadd.f32 %v245, %v259
    %s261 = sld [smem:[#allocation3 + $0xd]]
    %v262 = vstv %s261
    %v263 = vmul.f32 %v62, %v262
    %s264 = sld [smem:[#allocation3 + $0x2d]]
    %v265 = vstv %s264
    %v266 = vmul.f32 %v63, %v265
    %v267 = vadd.f32 %v263, %v266
    %s268 = sld [smem:[#allocation5 + $0xd]]
    %v269 = vstv %s268
    %v270 = vadd.f32 %v267, %v269
    %v271 = vmax.f32 %v270, 0.0
    %s272 = sld [smem:[#allocation7 + $0xd]]
    %v273 = vstv %s272
    %v274 = vmul.f32 %v271, %v273
    %v275 = vadd.f32 %v260, %v274
    %s276 = sld [smem:[#allocation3 + $0xe]]
    %v277 = vstv %s276
    %v278 = vmul.f32 %v62, %v277
    %s279 = sld [smem:[#allocation3 + $0x2e]]
    %v280 = vstv %s279
    %v281 = vmul.f32 %v63, %v280
    %v282 = vadd.f32 %v278, %v281
    %s283 = sld [smem:[#allocation5 + $0xe]]
    %v284 = vstv %s283
    %v285 = vadd.f32 %v282, %v284
    %v286 = vmax.f32 %v285, 0.0
    %s287 = sld [smem:[#allocation7 + $0xe]]
    %v288 = vstv %s287
    %v289 = vmul.f32 %v286, %v288
    %v290 = vadd.f32 %v275, %v289
    %s291 = sld [smem:[#allocation3 + $0xf]]
    %v292 = vstv %s291
    %v293 = vmul.f32 %v62, %v292
    %s294 = sld [smem:[#allocation3 + $0x2f]]
    %v295 = vstv %s294
    %v296 = vmul.f32 %v63, %v295
    %v297 = vadd.f32 %v293, %v296
    %s298 = sld [smem:[#allocation5 + $0xf]]
    %v299 = vstv %s298
    %v300 = vadd.f32 %v297, %v299
    %v301 = vmax.f32 %v300, 0.0
    %s302 = sld [smem:[#allocation7 + $0xf]]
    %v303 = vstv %s302
    %v304 = vmul.f32 %v301, %v303
    %v305 = vadd.f32 %v290, %v304
    %s306 = sld [smem:[#allocation3 + $0x10]]
    %v307 = vstv %s306
    %v308 = vmul.f32 %v62, %v307
    %s309 = sld [smem:[#allocation3 + $0x30]]
    %v310 = vstv %s309
    %v311 = vmul.f32 %v63, %v310
    %v312 = vadd.f32 %v308, %v311
    %s313 = sld [smem:[#allocation5 + $0x10]]
    %v314 = vstv %s313
    %v315 = vadd.f32 %v312, %v314
    %v316 = vmax.f32 %v315, 0.0
    %s317 = sld [smem:[#allocation7 + $0x10]]
    %v318 = vstv %s317
    %v319 = vmul.f32 %v316, %v318
    %v320 = vadd.f32 %v305, %v319
    %s321 = sld [smem:[#allocation3 + $0x11]]
    %v322 = vstv %s321
    %v323 = vmul.f32 %v62, %v322
    %s324 = sld [smem:[#allocation3 + $0x31]]
    %v325 = vstv %s324
    %v326 = vmul.f32 %v63, %v325
    %v327 = vadd.f32 %v323, %v326
    %s328 = sld [smem:[#allocation5 + $0x11]]
    %v329 = vstv %s328
    %v330 = vadd.f32 %v327, %v329
    %v331 = vmax.f32 %v330, 0.0
    %s332 = sld [smem:[#allocation7 + $0x11]]
    %v333 = vstv %s332
    %v334 = vmul.f32 %v331, %v333
    %v335 = vadd.f32 %v320, %v334
    %s336 = sld [smem:[#allocation3 + $0x12]]
    %v337 = vstv %s336
    %v338 = vmul.f32 %v62, %v337
    %s339 = sld [smem:[#allocation3 + $0x32]]
    %v340 = vstv %s339
    %v341 = vmul.f32 %v63, %v340
    %v342 = vadd.f32 %v338, %v341
    %s343 = sld [smem:[#allocation5 + $0x12]]
    %v344 = vstv %s343
    %v345 = vadd.f32 %v342, %v344
    %v346 = vmax.f32 %v345, 0.0
    %s347 = sld [smem:[#allocation7 + $0x12]]
    %v348 = vstv %s347
    %v349 = vmul.f32 %v346, %v348
    %v350 = vadd.f32 %v335, %v349
    %s351 = sld [smem:[#allocation3 + $0x13]]
    %v352 = vstv %s351
    %v353 = vmul.f32 %v62, %v352
    %s354 = sld [smem:[#allocation3 + $0x33]]
    %v355 = vstv %s354
    %v356 = vmul.f32 %v63, %v355
    %v357 = vadd.f32 %v353, %v356
    %s358 = sld [smem:[#allocation5 + $0x13]]
    %v359 = vstv %s358
    %v360 = vadd.f32 %v357, %v359
    %v361 = vmax.f32 %v360, 0.0
    %s362 = sld [smem:[#allocation7 + $0x13]]
    %v363 = vstv %s362
    %v364 = vmul.f32 %v361, %v363
    %v365 = vadd.f32 %v350, %v364
    %s366 = sld [smem:[#allocation3 + $0x14]]
    %v367 = vstv %s366
    %v368 = vmul.f32 %v62, %v367
    %s369 = sld [smem:[#allocation3 + $0x34]]
    %v370 = vstv %s369
    %v371 = vmul.f32 %v63, %v370
    %v372 = vadd.f32 %v368, %v371
    %s373 = sld [smem:[#allocation5 + $0x14]]
    %v374 = vstv %s373
    %v375 = vadd.f32 %v372, %v374
    %v376 = vmax.f32 %v375, 0.0
    %s377 = sld [smem:[#allocation7 + $0x14]]
    %v378 = vstv %s377
    %v379 = vmul.f32 %v376, %v378
    %v380 = vadd.f32 %v365, %v379
    %s381 = sld [smem:[#allocation3 + $0x15]]
    %v382 = vstv %s381
    %v383 = vmul.f32 %v62, %v382
    %s384 = sld [smem:[#allocation3 + $0x35]]
    %v385 = vstv %s384
    %v386 = vmul.f32 %v63, %v385
    %v387 = vadd.f32 %v383, %v386
    %s388 = sld [smem:[#allocation5 + $0x15]]
    %v389 = vstv %s388
    %v390 = vadd.f32 %v387, %v389
    %v391 = vmax.f32 %v390, 0.0
    %s392 = sld [smem:[#allocation7 + $0x15]]
    %v393 = vstv %s392
    %v394 = vmul.f32 %v391, %v393
    %v395 = vadd.f32 %v380, %v394
    %s396 = sld [smem:[#allocation3 + $0x16]]
    %v397 = vstv %s396
    %v398 = vmul.f32 %v62, %v397
    %s399 = sld [smem:[#allocation3 + $0x36]]
    %v400 = vstv %s399
    %v401 = vmul.f32 %v63, %v400
    %v402 = vadd.f32 %v398, %v401
    %s403 = sld [smem:[#allocation5 + $0x16]]
    %v404 = vstv %s403
    %v405 = vadd.f32 %v402, %v404
    %v406 = vmax.f32 %v405, 0.0
    %s407 = sld [smem:[#allocation7 + $0x16]]
    %v408 = vstv %s407
    %v409 = vmul.f32 %v406, %v408
    %v410 = vadd.f32 %v395, %v409
    %s411 = sld [smem:[#allocation3 + $0x17]]
    %v412 = vstv %s411
    %v413 = vmul.f32 %v62, %v412
    %s414 = sld [smem:[#allocation3 + $0x37]]
    %v415 = vstv %s414
    %v416 = vmul.f32 %v63, %v415
    %v417 = vadd.f32 %v413, %v416
    %s418 = sld [smem:[#allocation5 + $0x17]]
    %v419 = vstv %s418
    %v420 = vadd.f32 %v417, %v419
    %v421 = vmax.f32 %v420, 0.0
    %s422 = sld [smem:[#allocation7 + $0x17]]
    %v423 = vstv %s422
    %v424 = vmul.f32 %v421, %v423
    %v425 = vadd.f32 %v410, %v424
    %s426 = sld [smem:[#allocation3 + $0x18]]
    %v427 = vstv %s426
    %v428 = vmul.f32 %v62, %v427
    %s429 = sld [smem:[#allocation3 + $0x38]]
    %v430 = vstv %s429
    %v431 = vmul.f32 %v63, %v430
    %v432 = vadd.f32 %v428, %v431
    %s433 = sld [smem:[#allocation5 + $0x18]]
    %v434 = vstv %s433
    %v435 = vadd.f32 %v432, %v434
    %v436 = vmax.f32 %v435, 0.0
    %s437 = sld [smem:[#allocation7 + $0x18]]
    %v438 = vstv %s437
    %v439 = vmul.f32 %v436, %v438
    %v440 = vadd.f32 %v425, %v439
    %s441 = sld [smem:[#allocation3 + $0x19]]
    %v442 = vstv %s441
    %v443 = vmul.f32 %v62, %v442
    %s444 = sld [smem:[#allocation3 + $0x39]]
    %v445 = vstv %s444
    %v446 = vmul.f32 %v63, %v445
    %v447 = vadd.f32 %v443, %v446
    %s448 = sld [smem:[#allocation5 + $0x19]]
    %v449 = vstv %s448
    %v450 = vadd.f32 %v447, %v449
    %v451 = vmax.f32 %v450, 0.0
    %s452 = sld [smem:[#allocation7 + $0x19]]
    %v453 = vstv %s452
    %v454 = vmul.f32 %v451, %v453
    %v455 = vadd.f32 %v440, %v454
    %s456 = sld [smem:[#allocation3 + $0x1a]]
    %v457 = vstv %s456
    %v458 = vmul.f32 %v62, %v457
    %s459 = sld [smem:[#allocation3 + $0x3a]]
    %v460 = vstv %s459
    %v461 = vmul.f32 %v63, %v460
    %v462 = vadd.f32 %v458, %v461
    %s463 = sld [smem:[#allocation5 + $0x1a]]
    %v464 = vstv %s463
    %v465 = vadd.f32 %v462, %v464
    %v466 = vmax.f32 %v465, 0.0
    %s467 = sld [smem:[#allocation7 + $0x1a]]
    %v468 = vstv %s467
    %v469 = vmul.f32 %v466, %v468
    %v470 = vadd.f32 %v455, %v469
    %s471 = sld [smem:[#allocation3 + $0x1b]]
    %v472 = vstv %s471
    %v473 = vmul.f32 %v62, %v472
    %s474 = sld [smem:[#allocation3 + $0x3b]]
    %v475 = vstv %s474
    %v476 = vmul.f32 %v63, %v475
    %v477 = vadd.f32 %v473, %v476
    %s478 = sld [smem:[#allocation5 + $0x1b]]
    %v479 = vstv %s478
    %v480 = vadd.f32 %v477, %v479
    %v481 = vmax.f32 %v480, 0.0
    %s482 = sld [smem:[#allocation7 + $0x1b]]
    %v483 = vstv %s482
    %v484 = vmul.f32 %v481, %v483
    %v485 = vadd.f32 %v470, %v484
    %s486 = sld [smem:[#allocation3 + $0x1c]]
    %v487 = vstv %s486
    %v488 = vmul.f32 %v62, %v487
    %s489 = sld [smem:[#allocation3 + $0x3c]]
    %v490 = vstv %s489
    %v491 = vmul.f32 %v63, %v490
    %v492 = vadd.f32 %v488, %v491
    %s493 = sld [smem:[#allocation5 + $0x1c]]
    %v494 = vstv %s493
    %v495 = vadd.f32 %v492, %v494
    %v496 = vmax.f32 %v495, 0.0
    %s497 = sld [smem:[#allocation7 + $0x1c]]
    %v498 = vstv %s497
    %v499 = vmul.f32 %v496, %v498
    %v500 = vadd.f32 %v485, %v499
    %s501 = sld [smem:[#allocation3 + $0x1d]]
    %v502 = vstv %s501
    %v503 = vmul.f32 %v62, %v502
    %s504 = sld [smem:[#allocation3 + $0x3d]]
    %v505 = vstv %s504
    %v506 = vmul.f32 %v63, %v505
    %v507 = vadd.f32 %v503, %v506
    %s508 = sld [smem:[#allocation5 + $0x1d]]
    %v509 = vstv %s508
    %v510 = vadd.f32 %v507, %v509
    %v511 = vmax.f32 %v510, 0.0
    %s512 = sld [smem:[#allocation7 + $0x1d]]
    %v513 = vstv %s512
    %v514 = vmul.f32 %v511, %v513
    %v515 = vadd.f32 %v500, %v514
    %s516 = sld [smem:[#allocation3 + $0x1e]]
    %v517 = vstv %s516
    %v518 = vmul.f32 %v62, %v517
    %s519 = sld [smem:[#allocation3 + $0x3e]]
    %v520 = vstv %s519
    %v521 = vmul.f32 %v63, %v520
    %v522 = vadd.f32 %v518, %v521
    %s523 = sld [smem:[#allocation5 + $0x1e]]
    %v524 = vstv %s523
    %v525 = vadd.f32 %v522, %v524
    %v526 = vmax.f32 %v525, 0.0
    %s527 = sld [smem:[#allocation7 + $0x1e]]
    %v528 = vstv %s527
    %v529 = vmul.f32 %v526, %v528
    %v530 = vadd.f32 %v515, %v529
    %s531 = sld [smem:[#allocation3 + $0x1f]]
    %v532 = vstv %s531
    %v533 = vmul.f32 %v62, %v532
    %s534 = sld [smem:[#allocation3 + $0x3f]]
    %v535 = vstv %s534
    %v536 = vmul.f32 %v63, %v535
    %v537 = vadd.f32 %v533, %v536
    %s538 = sld [smem:[#allocation5 + $0x1f]]
    %v539 = vstv %s538
    %v540 = vadd.f32 %v537, %v539
    %v541 = vmax.f32 %v540, 0.0
    %s542 = sld [smem:[#allocation7 + $0x1f]]
    %v543 = vstv %s542
    %v544 = vmul.f32 %v541, %v543
    %v545 = vadd.f32 %v530, %v544
    %v546 = vmul.f32 %v545, %v63
    %v547 = vsub.f32 1.0, %v63
    %v548 = vmul.f32 %v62, %v547
    %v549 = vadd.f32 %v546, %v548
    %550 = vst [vmem:[%s6] sm:$0xf] %v549
    %v553 = vunpack.c.l.s4 1983009808
    %v554 = vunpack.c.0.s8 %v553
    %v555 = vlaneseq
    %v556 = vshrl.u32 %v555, 7
    %v557 = vsub.s32 %v554, %v556
    %v558 = vrot.slane %v549, %v557
    %v559 = vcombine.high %v558, %v558
    %v562 = vpack.c.bf16 %v558, %v558
    %v563 = vpack.c.bf16 %v559, %v559
    %v566 = vcombine.low %v562, %v563
    %v568 = vunpack.c.l.s4 1966171168
    %v569 = vunpack.c.0.s8 %v568
    %v570 = vlaneseq
    %v571 = vshrl.u32 %v570, 7
    %v572 = vsub.s32 %v569, %v571
    %v573 = vrot.slane %v566, %v572
    %v575 = vunpack.c.l.s4 1966171168
    %v576 = vunpack.c.0.s8 %v575
    %v577 = vlaneseq
    %v578 = vshrl.u32 %v577, 7
    %v579 = vsub.s32 %v576, %v578
    %v580 = vrot.slane %v573, %v579
    %582 = vst [vmem:[%s7] sm:$0x3] %v580
    // Predicated region
    $region38: #{mar_li_net_forward.2} parent=1 // pred_check
      _
    $region39: #{mar_li_net_forward.2} parent=1 // pred_check_branch
      %584 = sbr.rel (0) target = $region41
    $region40: #{mar_li_net_forward.2} parent=1 // pred_region
      _
    $region41: #{mar_li_net_forward.2} parent=1 // pred_fallthru
      _
    // Predicated region
    $region42: #{mar_li_net_forward.2} parent=1 // pred_check
      _
    $region43: #{mar_li_net_forward.2} parent=1 // pred_check_branch
      %586 = sbr.rel (0) target = $region45
    $region44: #{mar_li_net_forward.2} parent=1 // pred_region
      _
    $region45: #{mar_li_net_forward.2} parent=1 // pred_fallthru
      _
    // Predicated region
    $region46: #{mar_li_net_forward.2} parent=1 // pred_check
      _
    $region47: #{mar_li_net_forward.2} parent=1 // pred_check_branch
      %588 = sbr.rel (0) target = $region49
    $region48: #{mar_li_net_forward.2} parent=1 // pred_region
      _
    $region49: #{mar_li_net_forward.2} parent=1 // pred_fallthru
      _
    // Predicated region
    $region50: #{mar_li_net_forward.2} parent=1 // pred_check
      _
    $region51: #{mar_li_net_forward.2} parent=1 // pred_check_branch
      %590 = sbr.rel (0) target = $region53
    $region52: #{mar_li_net_forward.2} parent=1 // pred_region
      _
    $region53: #{mar_li_net_forward.2} parent=1 // pred_fallthru
      _
    %591 = vsyncpa [#allocation4], 1
    %592 = vsyncpa [#allocation6], 1

// kernel: mar_li_net_forward.3
$region0: #{mar_li_net_forward.3}
  #allocation0 [shape = 'u32[]', space=smem, size = 0x4, offset = 0x4, fixed_abs, tag = 'smem constant byte address 0x4 - core index']
  #allocation1 [shape = 'u32[144,128]{1,0:T(1,128)}', space=vmem, size = 0x12000, scoped, tag = 'internal scratch']
  #allocation2 [shape = 'f32[2,256]{1,0:T(2,128)}', space=vmem, size = 0x800, scoped, tag = 'scratch operand']
  #allocation3 [shape = 'f32[1]{0:T(128)S(6)}', space=smem, size = 0x200, scoped, tag = 'scoped memory for mar_li_net_forward.3']
  %s0 = inlined_call_operand.vmem [shape: bf16[2,256], index: 0, kind: input, shape index: {}]
  %s1 = inlined_call_operand.hbm [shape: bf16[256,256], index: 1, kind: input, shape index: {}]
  %s2 = inlined_call_operand.vmem [shape: f32[2,256], index: 2, kind: input, shape index: {}]
  %s3 = inlined_call_operand.vmem [shape: f32[64], index: 3, kind: input, shape index: {}]
  %s4 = inlined_call_operand.vmem [shape: f32[32], index: 4, kind: input, shape index: {}]
  %s5 = inlined_call_operand.vmem [shape: f32[32], index: 5, kind: input, shape index: {}]
  %s6 = inlined_call_operand.<no memory space> [shape: f32[1], index: 6, kind: input, shape index: {}]
  %s7 = inlined_call_operand.vmem [shape: f32[2,256], index: 7, kind: output, shape index: {0}]
  %s8 = inlined_call_operand.vmem [shape: f32[2,256], index: 8, kind: output, shape index: {1}]
  %9 = xla_tuple %s7, %s8
  %s10 = sld [smem:[#allocation0]]
  $region74: #{mar_li_net_forward.3} parent=0
    _
  %s12 = ssub.s32 1, %s10
  %s13 = scalar_select 0, %s12, %s10
  %14 = sst [smem:[#allocation3]] %s6
  $region1: #{mar_li_net_forward.3} parent=0
    #allocation4 [shape = 'u8[131072]{0}', space=vmem, size = 0x20000, scoped, tag = 'input window, operand 1, single buffered']
    #allocation5 [shape = 's32[1]{0}', space=sflag, size = 0x4, scoped, tag = 'scoped memory for mar_li_net_forward.3']
    #allocation6 [shape = 's32[1]{0}', space=sflag, size = 0x4, scoped, tag = 'scoped memory for mar_li_net_forward.3']
    #allocation7 [shape = 'u8[512]{0}', space=smem, size = 0x200, scoped, tag = 'input window, operand 3, single buffered']
    #allocation8 [shape = 'u8[512]{0}', space=smem, size = 0x200, scoped, tag = 'input window, operand 4, single buffered']
    #allocation9 [shape = 's32[1]{0}', space=sflag, size = 0x4, scoped, tag = 'scoped memory for mar_li_net_forward.3']
    #allocation10 [shape = 'u8[512]{0}', space=smem, size = 0x200, scoped, tag = 'input window, operand 5, single buffered']
    %15 = vsyncpa [#allocation5], 0
    %16 = vsyncpa [#allocation6], 0
    %17 = vsyncpa [#allocation9], 0
    // Predicated region
    $region2: #{mar_li_net_forward.3} parent=1 // pred_check
      _
    $region3: #{mar_li_net_forward.3} parent=1 // pred_check_branch
      %19 = sbr.rel (0) target = $region5
    $region4: #{mar_li_net_forward.3} parent=1 // pred_region
      _
    $region5: #{mar_li_net_forward.3} parent=1 // pred_fallthru
      _
    // Predicated region
    $region6: #{mar_li_net_forward.3} parent=1 // pred_check
      _
    $region7: #{mar_li_net_forward.3} parent=1 // pred_check_branch
      %21 = sbr.rel (0) target = $region9
    $region8: #{mar_li_net_forward.3} parent=1 // pred_region
      %s23 = ssub.s32 4096, 4096
      %24 = vsyncadd [#allocation5], %s23
      %s25 = sshll.u32 [#allocation4], 4
      %s26 = int_to_ptr.vmem [resolvable:$true] %s25
      %31 = dma.hbm_to_vmem [thread:$0]  %s1, 4096, %s26, [#allocation5], 128, 128, 8
    $region9: #{mar_li_net_forward.3} parent=1 // pred_fallthru
      _
    // Predicated region
    $region10: #{mar_li_net_forward.3} parent=1 // pred_check
      _
    $region11: #{mar_li_net_forward.3} parent=1 // pred_check_branch
      %33 = sbr.rel (0) target = $region13
    $region12: #{mar_li_net_forward.3} parent=1 // pred_region
      _
    $region13: #{mar_li_net_forward.3} parent=1 // pred_fallthru
      _
    // Predicated region
    $region14: #{mar_li_net_forward.3} parent=1 // pred_check
      _
    $region15: #{mar_li_net_forward.3} parent=1 // pred_check_branch
      %35 = sbr.rel (0) target = $region17
    $region16: #{mar_li_net_forward.3} parent=1 // pred_region
      %s37 = ssub.s32 16, 16
      %38 = vsyncadd [#allocation6], %s37
      %s40 = sshll.u32 %s3, 4
      %s41 = int_to_ptr.vmem [resolvable:$true] %s40
      %43 = dma.vmem_to_smem %s41, 16, [#allocation7], [#allocation6]
    $region17: #{mar_li_net_forward.3} parent=1 // pred_fallthru
      _
    // Predicated region
    $region18: #{mar_li_net_forward.3} parent=1 // pred_check
      _
    $region19: #{mar_li_net_forward.3} parent=1 // pred_check_branch
      %45 = sbr.rel (0) target = $region21
    $region20: #{mar_li_net_forward.3} parent=1 // pred_region
      %s47 = ssub.s32 16, 16
      %48 = vsyncadd [#allocation9], %s47
      %s50 = sshll.u32 %s4, 4
      %s51 = int_to_ptr.vmem [resolvable:$true] %s50
      %53 = dma.vmem_to_smem %s51, 16, [#allocation8], [#allocation9]
    $region21: #{mar_li_net_forward.3} parent=1 // pred_fallthru
      _
    // Predicated region
    $region22: #{mar_li_net_forward.3} parent=1 // pred_check
      _
    $region23: #{mar_li_net_forward.3} parent=1 // pred_check_branch
      %55 = sbr.rel (0) target = $region25
    $region24: #{mar_li_net_forward.3} parent=1 // pred_region
      %s57 = ssub.s32 16, 16
      %58 = vsyncadd [#allocation9], %s57
      %s60 = sshll.u32 %s5, 4
      %s61 = int_to_ptr.vmem [resolvable:$true] %s60
      %63 = dma.vmem_to_smem %s61, 16, [#allocation10], [#allocation9]
    $region25: #{mar_li_net_forward.3} parent=1 // pred_fallthru
      _
    // Predicated region
    $region26: #{mar_li_net_forward.3} parent=1 // pred_check
      _
    $region27: #{mar_li_net_forward.3} parent=1 // pred_check_branch
      %65 = sbr.rel (0) target = $region29
    $region28: #{mar_li_net_forward.3} parent=1 // pred_region
      _
    $region29: #{mar_li_net_forward.3} parent=1 // pred_fallthru
      _
    // Predicated region
    $region30: #{mar_li_net_forward.3} parent=1 // pred_check
      _
    $region31: #{mar_li_net_forward.3} parent=1 // pred_check_branch
      %67 = sbr.rel (0) target = $region33
    $region32: #{mar_li_net_forward.3} parent=1 // pred_region
      %68 = dma.done [#allocation5], 4096
    $region33: #{mar_li_net_forward.3} parent=1 // pred_fallthru
      _
    // Predicated region
    $region34: #{mar_li_net_forward.3} parent=1 // pred_check
      _
    $region35: #{mar_li_net_forward.3} parent=1 // pred_check_branch
      %70 = sbr.rel (0) target = $region37
    $region36: #{mar_li_net_forward.3} parent=1 // pred_region
      %71 = dma.done [#allocation6], 16
    $region37: #{mar_li_net_forward.3} parent=1 // pred_fallthru
      _
    // Predicated region
    $region38: #{mar_li_net_forward.3} parent=1 // pred_check
      _
    $region39: #{mar_li_net_forward.3} parent=1 // pred_check_branch
      %73 = sbr.rel (0) target = $region41
    $region40: #{mar_li_net_forward.3} parent=1 // pred_region
      %74 = dma.done [#allocation9], 16
    $region41: #{mar_li_net_forward.3} parent=1 // pred_fallthru
      _
    // Predicated region
    $region42: #{mar_li_net_forward.3} parent=1 // pred_check
      _
    $region43: #{mar_li_net_forward.3} parent=1 // pred_check_branch
      %76 = sbr.rel (0) target = $region45
    $region44: #{mar_li_net_forward.3} parent=1 // pred_region
      %77 = dma.done [#allocation9], 16
    $region45: #{mar_li_net_forward.3} parent=1 // pred_fallthru
      _
    %78 = sfence
    %v79 = vld [vmem:[%s0] sm:$0x3]
    %v80 = vld [vmem:[#allocation4] sm:$0xff]
    %v81 = vld [vmem:[#allocation4 + $0x8] sm:$0xff]
    %v82 = vld [vmem:[#allocation4 + $0x10] sm:$0xff]
    %v83 = vld [vmem:[#allocation4 + $0x18] sm:$0xff]
    %v84 = vld [vmem:[#allocation4 + $0x20] sm:$0xff]
    %v85 = vld [vmem:[#allocation4 + $0x28] sm:$0xff]
    %v86 = vld [vmem:[#allocation4 + $0x30] sm:$0xff]
    %v87 = vld [vmem:[#allocation4 + $0x38] sm:$0xff]
    %v88 = vld [vmem:[#allocation4 + $0x40] sm:$0xff]
    %v89 = vld [vmem:[#allocation4 + $0x48] sm:$0xff]
    %v90 = vld [vmem:[#allocation4 + $0x50] sm:$0xff]
    %v91 = vld [vmem:[#allocation4 + $0x58] sm:$0xff]
    %v92 = vld [vmem:[#allocation4 + $0x60] sm:$0xff]
    %v93 = vld [vmem:[#allocation4 + $0x68] sm:$0xff]
    %v94 = vld [vmem:[#allocation4 + $0x70] sm:$0xff]
    %v95 = vld [vmem:[#allocation4 + $0x78] sm:$0xff]
    %v96 = vld [vmem:[#allocation4 + $0x80] sm:$0xff]
    %v97 = vld [vmem:[#allocation4 + $0x88] sm:$0xff]
    %v98 = vld [vmem:[#allocation4 + $0x90] sm:$0xff]
    %v99 = vld [vmem:[#allocation4 + $0x98] sm:$0xff]
    %v100 = vld [vmem:[#allocation4 + $0xa0] sm:$0xff]
    %v101 = vld [vmem:[#allocation4 + $0xa8] sm:$0xff]
    %v102 = vld [vmem:[#allocation4 + $0xb0] sm:$0xff]
    %v103 = vld [vmem:[#allocation4 + $0xb8] sm:$0xff]
    %v104 = vld [vmem:[#allocation4 + $0xc0] sm:$0xff]
    %v105 = vld [vmem:[#allocation4 + $0xc8] sm:$0xff]
    %v106 = vld [vmem:[#allocation4 + $0xd0] sm:$0xff]
    %v107 = vld [vmem:[#allocation4 + $0xd8] sm:$0xff]
    %v108 = vld [vmem:[#allocation4 + $0xe0] sm:$0xff]
    %v109 = vld [vmem:[#allocation4 + $0xe8] sm:$0xff]
    %v110 = vld [vmem:[#allocation4 + $0xf0] sm:$0xff]
    %v111 = vld [vmem:[#allocation4 + $0xf8] sm:$0xff]
    %v114 = vunpack.c.l.s4 1966171168
    %v115 = vunpack.c.0.s8 %v114
    %v116 = vlaneseq
    %v117 = vshrl.u32 %v116, 7
    %v118 = vsub.s32 %v115, %v117
    %v119 = vrot.slane %v79, %v118
    %v120 = vcombine.high %v119, %v119
    %v122 = vunpack.c.l.s4 1966171168
    %v123 = vunpack.c.0.s8 %v122
    %v124 = vlaneseq
    %v125 = vshrl.u32 %v124, 7
    %v126 = vsub.s32 %v123, %v125
    %v127 = vrot.slane %v119, %v126
    %v129 = vunpack.c.l.s4 1966171168
    %v130 = vunpack.c.0.s8 %v129
    %v131 = vlaneseq
    %v132 = vshrl.u32 %v131, 7
    %v133 = vsub.s32 %v130, %v132
    %v134 = vrot.slane %v120, %v133
    %v169 = vunpack.c.l.b16 %v80
    %v170 = vunpack.c.h.b16 %v80
    %v171 = vunpack.c.l.b16 %v81
    %v172 = vunpack.c.h.b16 %v81
    %v173 = vunpack.c.l.b16 %v82
    %v174 = vunpack.c.h.b16 %v82
    %v175 = vunpack.c.l.b16 %v83
    %v176 = vunpack.c.h.b16 %v83
    %v177 = vunpack.c.l.b16 %v84
    %v178 = vunpack.c.h.b16 %v84
    %v179 = vunpack.c.l.b16 %v85
    %v180 = vunpack.c.h.b16 %v85
    %v181 = vunpack.c.l.b16 %v86
    %v182 = vunpack.c.h.b16 %v86
    %v183 = vunpack.c.l.b16 %v87
    %v184 = vunpack.c.h.b16 %v87
    %v185 = vunpack.c.l.b16 %v88
    %v186 = vunpack.c.h.b16 %v88
    %v187 = vunpack.c.l.b16 %v89
    %v188 = vunpack.c.h.b16 %v89
    %v189 = vunpack.c.l.b16 %v90
    %v190 = vunpack.c.h.b16 %v90
    %v191 = vunpack.c.l.b16 %v91
    %v192 = vunpack.c.h.b16 %v91
    %v193 = vunpack.c.l.b16 %v92
    %v194 = vunpack.c.h.b16 %v92
    %v195 = vunpack.c.l.b16 %v93
    %v196 = vunpack.c.h.b16 %v93
    %v197 = vunpack.c.l.b16 %v94
    %v198 = vunpack.c.h.b16 %v94
    %v199 = vunpack.c.l.b16 %v95
    %v200 = vunpack.c.h.b16 %v95
    %v201 = vunpack.c.l.b16 %v96
    %v202 = vunpack.c.h.b16 %v96
    %v203 = vunpack.c.l.b16 %v97
    %v204 = vunpack.c.h.b16 %v97
    %v205 = vunpack.c.l.b16 %v98
    %v206 = vunpack.c.h.b16 %v98
    %v207 = vunpack.c.l.b16 %v99
    %v208 = vunpack.c.h.b16 %v99
    %v209 = vunpack.c.l.b16 %v100
    %v210 = vunpack.c.h.b16 %v100
    %v211 = vunpack.c.l.b16 %v101
    %v212 = vunpack.c.h.b16 %v101
    %v213 = vunpack.c.l.b16 %v102
    %v214 = vunpack.c.h.b16 %v102
    %v215 = vunpack.c.l.b16 %v103
    %v216 = vunpack.c.h.b16 %v103
    %v217 = vunpack.c.l.b16 %v104
    %v218 = vunpack.c.h.b16 %v104
    %v219 = vunpack.c.l.b16 %v105
    %v220 = vunpack.c.h.b16 %v105
    %v221 = vunpack.c.l.b16 %v106
    %v222 = vunpack.c.h.b16 %v106
    %v223 = vunpack.c.l.b16 %v107
    %v224 = vunpack.c.h.b16 %v107
    %v225 = vunpack.c.l.b16 %v108
    %v226 = vunpack.c.h.b16 %v108
    %v227 = vunpack.c.l.b16 %v109
    %v228 = vunpack.c.h.b16 %v109
    %v229 = vunpack.c.l.b16 %v110
    %v230 = vunpack.c.h.b16 %v110
    %v231 = vunpack.c.l.b16 %v111
    %v232 = vunpack.c.h.b16 %v111
    %v233 = vpack.c.b16 %v171, %v169
    %v234 = vpack.c.b16 %v172, %v170
    %v235 = vpack.c.b16 %v175, %v173
    %v236 = vpack.c.b16 %v176, %v174
    %v237 = vpack.c.b16 %v179, %v177
    %v238 = vpack.c.b16 %v180, %v178
    %v239 = vpack.c.b16 %v183, %v181
    %v240 = vpack.c.b16 %v184, %v182
    %v241 = vpack.c.b16 %v187, %v185
    %v242 = vpack.c.b16 %v188, %v186
    %v243 = vpack.c.b16 %v191, %v189
    %v244 = vpack.c.b16 %v192, %v190
    %v245 = vpack.c.b16 %v195, %v193
    %v246 = vpack.c.b16 %v196, %v194
    %v247 = vpack.c.b16 %v199, %v197
    %v248 = vpack.c.b16 %v200, %v198
    %v249 = vpack.c.b16 %v203, %v201
    %v250 = vpack.c.b16 %v204, %v202
    %v251 = vpack.c.b16 %v207, %v205
    %v252 = vpack.c.b16 %v208, %v206
    %v253 = vpack.c.b16 %v211, %v209
    %v254 = vpack.c.b16 %v212, %v210
    %v255 = vpack.c.b16 %v215, %v213
    %v256 = vpack.c.b16 %v216, %v214
    %v257 = vpack.c.b16 %v219, %v217
    %v258 = vpack.c.b16 %v220, %v218
    %v259 = vpack.c.b16 %v223, %v221
    %v260 = vpack.c.b16 %v224, %v222
    %v261 = vpack.c.b16 %v227, %v225
    %v262 = vpack.c.b16 %v228, %v226
    %v263 = vpack.c.b16 %v231, %v229
    %v264 = vpack.c.b16 %v232, %v230
    %297 = vmatprep.subr.bf16.mxu0 %v234
    %298 = vmatpush1.bf16.msra.mxu0 %v233
    %299 = vmatprep.subr.bf16.mxu0 %v236
    %300 = vmatpush1.bf16.msra.mxu0 %v235
    %301 = vmatprep.subr.bf16.mxu0 %v238
    %302 = vmatpush1.bf16.msra.mxu0 %v237
    %303 = vmatprep.subr.bf16.mxu0 %v240
    %304 = vmatpush1.bf16.msra.mxu0 %v239
    %305 = vmatprep.subr.bf16.mxu0 %v242
    %306 = vmatpush1.bf16.msra.mxu0 %v241
    %307 = vmatprep.subr.bf16.mxu0 %v244
    %308 = vmatpush1.bf16.msra.mxu0 %v243
    %309 = vmatprep.subr.bf16.mxu0 %v246
    %310 = vmatpush1.bf16.msra.mxu0 %v245
    %311 = vmatprep.subr.bf16.mxu0 %v248
    %312 = vmatpush1.bf16.msra.mxu0 %v247
    %313 = vmatprep.subr.bf16.mxu0 %v250
    %314 = vmatpush1.bf16.msra.mxu0 %v249
    %315 = vmatprep.subr.bf16.mxu0 %v252
    %316 = vmatpush1.bf16.msra.mxu0 %v251
    %317 = vmatprep.subr.bf16.mxu0 %v254
    %318 = vmatpush1.bf16.msra.mxu0 %v253
    %319 = vmatprep.subr.bf16.mxu0 %v256
    %320 = vmatpush1.bf16.msra.mxu0 %v255
    %321 = vmatprep.subr.bf16.mxu0 %v258
    %322 = vmatpush1.bf16.msra.mxu0 %v257
    %323 = vmatprep.subr.bf16.mxu0 %v260
    %324 = vmatpush1.bf16.msra.mxu0 %v259
    %325 = vmatprep.subr.bf16.mxu0 %v262
    %326 = vmatpush1.bf16.msra.mxu0 %v261
    %327 = vmatprep.subr.bf16.mxu0 %v264
    %328 = vmatpush1.bf16.msra.mxu0 %v263
    %329 = vmatprep.mubr.bf16.mxu0 %v134
    %330 = vmatmul.mubr.bf16.gmra.mrb[0].mxu0 %v127
    %v331 = vpop.f32.mrb[0].mxu0
    %v332 = vadd.f32 0.0, %v331
    %v333 = vpop.f32.mrb[0].mxu0
    %v334 = vadd.f32 0.0, %v333
    %v335 = vpop.f32.mrb[0].mxu0
    %v336 = vpop.f32.mrb[0].mxu0
    %337 = vdwg.mxu0
    %p338 = scmp.eq.s32.totalorder 0, 0
    // Predicated region
    $region46: #{mar_li_net_forward.3} parent=1 // pred_check
      %p339 = pneg %p338
    $region47: #{mar_li_net_forward.3} parent=1 // pred_check_branch
      %341 = sbr.rel (%p339) target = $region49
    $region48: #{mar_li_net_forward.3} parent=1 // pred_region
      %v344 = vcombine.low %v332, %v334
      %v346 = vunpack.c.l.s4 1983009808
      %v347 = vunpack.c.0.s8 %v346
      %v348 = vlaneseq
      %v349 = vshrl.u32 %v348, 7
      %v350 = vsub.s32 %v347, %v349
      %v351 = vrot.slane %v344, %v350
      %353 = vst [vmem:[#allocation2] sm:$0xf] %v351
    $region49: #{mar_li_net_forward.3} parent=1 // pred_fallthru
      _
    %p354 = scmp.gt.s32.totalorder 0, 0
    // Predicated region
    $region50: #{mar_li_net_forward.3} parent=1 // pred_check
      %p355 = pneg %p354
    $region51: #{mar_li_net_forward.3} parent=1 // pred_check_branch
      %357 = sbr.rel (%p355) target = $region53
    $region52: #{mar_li_net_forward.3} parent=1 // pred_region
      %v358 = vld [vmem:[#allocation2] sm:$0xf]
      %v361 = vcombine.low %v332, %v334
      %v363 = vunpack.c.l.s4 1983009808
      %v364 = vunpack.c.0.s8 %v363
      %v365 = vlaneseq
      %v366 = vshrl.u32 %v365, 7
      %v367 = vsub.s32 %v364, %v366
      %v368 = vrot.slane %v361, %v367
      %v370 = vadd.f32 %v358, %v368
      %371 = vst [vmem:[#allocation2] sm:$0xf] %v370
    $region53: #{mar_li_net_forward.3} parent=1 // pred_fallthru
      _
    // Predicated region
    $region54: #{mar_li_net_forward.3} parent=1 // pred_check
      %p372 = pneg %p338
    $region55: #{mar_li_net_forward.3} parent=1 // pred_check_branch
      %374 = sbr.rel (%p372) target = $region57
    $region56: #{mar_li_net_forward.3} parent=1 // pred_region
      %v375 = vld [vmem:[#allocation2] sm:$0xf]
      %v376 = vmul.f32 %v375, 1.7361112
      %v377 = vmax.f32 %v376, 0.0
      %v378 = vmin.f32 %v377, 1.0
      %379 = vst [vmem:[%s7] sm:$0xf] %v378
      %v380 = vld [vmem:[%s2] sm:$0xf]
      %s381 = sld [smem:[#allocation3]]
      %v382 = vstv %s381
      %s383 = sld [smem:[#allocation7]]
      %v384 = vstv %s383
      %v385 = vmul.f32 %v380, %v384
      %s386 = sld [smem:[#allocation7 + $0x20]]
      %v387 = vstv %s386
      %v388 = vmul.f32 %v378, %v387
      %v389 = vadd.f32 %v385, %v388
      %s390 = sld [smem:[#allocation8]]
      %v391 = vstv %s390
      %v392 = vadd.f32 %v389, %v391
      %v393 = vmax.f32 %v392, 0.0
      %s394 = sld [smem:[#allocation10]]
      %v395 = vstv %s394
      %v396 = vmul.f32 %v393, %v395
      %v397 = vadd.f32 %v382, %v396
      %s398 = sld [smem:[#allocation7 + $0x1]]
      %v399 = vstv %s398
      %v400 = vmul.f32 %v380, %v399
      %s401 = sld [smem:[#allocation7 + $0x21]]
      %v402 = vstv %s401
      %v403 = vmul.f32 %v378, %v402
      %v404 = vadd.f32 %v400, %v403
      %s405 = sld [smem:[#allocation8 + $0x1]]
      %v406 = vstv %s405
      %v407 = vadd.f32 %v404, %v406
      %v408 = vmax.f32 %v407, 0.0
      %s409 = sld [smem:[#allocation10 + $0x1]]
      %v410 = vstv %s409
      %v411 = vmul.f32 %v408, %v410
      %v412 = vadd.f32 %v397, %v411
      %s413 = sld [smem:[#allocation7 + $0x2]]
      %v414 = vstv %s413
      %v415 = vmul.f32 %v380, %v414
      %s416 = sld [smem:[#allocation7 + $0x22]]
      %v417 = vstv %s416
      %v418 = vmul.f32 %v378, %v417
      %v419 = vadd.f32 %v415, %v418
      %s420 = sld [smem:[#allocation8 + $0x2]]
      %v421 = vstv %s420
      %v422 = vadd.f32 %v419, %v421
      %v423 = vmax.f32 %v422, 0.0
      %s424 = sld [smem:[#allocation10 + $0x2]]
      %v425 = vstv %s424
      %v426 = vmul.f32 %v423, %v425
      %v427 = vadd.f32 %v412, %v426
      %s428 = sld [smem:[#allocation7 + $0x3]]
      %v429 = vstv %s428
      %v430 = vmul.f32 %v380, %v429
      %s431 = sld [smem:[#allocation7 + $0x23]]
      %v432 = vstv %s431
      %v433 = vmul.f32 %v378, %v432
      %v434 = vadd.f32 %v430, %v433
      %s435 = sld [smem:[#allocation8 + $0x3]]
      %v436 = vstv %s435
      %v437 = vadd.f32 %v434, %v436
      %v438 = vmax.f32 %v437, 0.0
      %s439 = sld [smem:[#allocation10 + $0x3]]
      %v440 = vstv %s439
      %v441 = vmul.f32 %v438, %v440
      %v442 = vadd.f32 %v427, %v441
      %s443 = sld [smem:[#allocation7 + $0x4]]
      %v444 = vstv %s443
      %v445 = vmul.f32 %v380, %v444
      %s446 = sld [smem:[#allocation7 + $0x24]]
      %v447 = vstv %s446
      %v448 = vmul.f32 %v378, %v447
      %v449 = vadd.f32 %v445, %v448
      %s450 = sld [smem:[#allocation8 + $0x4]]
      %v451 = vstv %s450
      %v452 = vadd.f32 %v449, %v451
      %v453 = vmax.f32 %v452, 0.0
      %s454 = sld [smem:[#allocation10 + $0x4]]
      %v455 = vstv %s454
      %v456 = vmul.f32 %v453, %v455
      %v457 = vadd.f32 %v442, %v456
      %s458 = sld [smem:[#allocation7 + $0x5]]
      %v459 = vstv %s458
      %v460 = vmul.f32 %v380, %v459
      %s461 = sld [smem:[#allocation7 + $0x25]]
      %v462 = vstv %s461
      %v463 = vmul.f32 %v378, %v462
      %v464 = vadd.f32 %v460, %v463
      %s465 = sld [smem:[#allocation8 + $0x5]]
      %v466 = vstv %s465
      %v467 = vadd.f32 %v464, %v466
      %v468 = vmax.f32 %v467, 0.0
      %s469 = sld [smem:[#allocation10 + $0x5]]
      %v470 = vstv %s469
      %v471 = vmul.f32 %v468, %v470
      %v472 = vadd.f32 %v457, %v471
      %s473 = sld [smem:[#allocation7 + $0x6]]
      %v474 = vstv %s473
      %v475 = vmul.f32 %v380, %v474
      %s476 = sld [smem:[#allocation7 + $0x26]]
      %v477 = vstv %s476
      %v478 = vmul.f32 %v378, %v477
      %v479 = vadd.f32 %v475, %v478
      %s480 = sld [smem:[#allocation8 + $0x6]]
      %v481 = vstv %s480
      %v482 = vadd.f32 %v479, %v481
      %v483 = vmax.f32 %v482, 0.0
      %s484 = sld [smem:[#allocation10 + $0x6]]
      %v485 = vstv %s484
      %v486 = vmul.f32 %v483, %v485
      %v487 = vadd.f32 %v472, %v486
      %s488 = sld [smem:[#allocation7 + $0x7]]
      %v489 = vstv %s488
      %v490 = vmul.f32 %v380, %v489
      %s491 = sld [smem:[#allocation7 + $0x27]]
      %v492 = vstv %s491
      %v493 = vmul.f32 %v378, %v492
      %v494 = vadd.f32 %v490, %v493
      %s495 = sld [smem:[#allocation8 + $0x7]]
      %v496 = vstv %s495
      %v497 = vadd.f32 %v494, %v496
      %v498 = vmax.f32 %v497, 0.0
      %s499 = sld [smem:[#allocation10 + $0x7]]
      %v500 = vstv %s499
      %v501 = vmul.f32 %v498, %v500
      %v502 = vadd.f32 %v487, %v501
      %s503 = sld [smem:[#allocation7 + $0x8]]
      %v504 = vstv %s503
      %v505 = vmul.f32 %v380, %v504
      %s506 = sld [smem:[#allocation7 + $0x28]]
      %v507 = vstv %s506
      %v508 = vmul.f32 %v378, %v507
      %v509 = vadd.f32 %v505, %v508
      %s510 = sld [smem:[#allocation8 + $0x8]]
      %v511 = vstv %s510
      %v512 = vadd.f32 %v509, %v511
      %v513 = vmax.f32 %v512, 0.0
      %s514 = sld [smem:[#allocation10 + $0x8]]
      %v515 = vstv %s514
      %v516 = vmul.f32 %v513, %v515
      %v517 = vadd.f32 %v502, %v516
      %s518 = sld [smem:[#allocation7 + $0x9]]
      %v519 = vstv %s518
      %v520 = vmul.f32 %v380, %v519
      %s521 = sld [smem:[#allocation7 + $0x29]]
      %v522 = vstv %s521
      %v523 = vmul.f32 %v378, %v522
      %v524 = vadd.f32 %v520, %v523
      %s525 = sld [smem:[#allocation8 + $0x9]]
      %v526 = vstv %s525
      %v527 = vadd.f32 %v524, %v526
      %v528 = vmax.f32 %v527, 0.0
      %s529 = sld [smem:[#allocation10 + $0x9]]
      %v530 = vstv %s529
      %v531 = vmul.f32 %v528, %v530
      %v532 = vadd.f32 %v517, %v531
      %s533 = sld [smem:[#allocation7 + $0xa]]
      %v534 = vstv %s533
      %v535 = vmul.f32 %v380, %v534
      %s536 = sld [smem:[#allocation7 + $0x2a]]
      %v537 = vstv %s536
      %v538 = vmul.f32 %v378, %v537
      %v539 = vadd.f32 %v535, %v538
      %s540 = sld [smem:[#allocation8 + $0xa]]
      %v541 = vstv %s540
      %v542 = vadd.f32 %v539, %v541
      %v543 = vmax.f32 %v542, 0.0
      %s544 = sld [smem:[#allocation10 + $0xa]]
      %v545 = vstv %s544
      %v546 = vmul.f32 %v543, %v545
      %v547 = vadd.f32 %v532, %v546
      %s548 = sld [smem:[#allocation7 + $0xb]]
      %v549 = vstv %s548
      %v550 = vmul.f32 %v380, %v549
      %s551 = sld [smem:[#allocation7 + $0x2b]]
      %v552 = vstv %s551
      %v553 = vmul.f32 %v378, %v552
      %v554 = vadd.f32 %v550, %v553
      %s555 = sld [smem:[#allocation8 + $0xb]]
      %v556 = vstv %s555
      %v557 = vadd.f32 %v554, %v556
      %v558 = vmax.f32 %v557, 0.0
      %s559 = sld [smem:[#allocation10 + $0xb]]
      %v560 = vstv %s559
      %v561 = vmul.f32 %v558, %v560
      %v562 = vadd.f32 %v547, %v561
      %s563 = sld [smem:[#allocation7 + $0xc]]
      %v564 = vstv %s563
      %v565 = vmul.f32 %v380, %v564
      %s566 = sld [smem:[#allocation7 + $0x2c]]
      %v567 = vstv %s566
      %v568 = vmul.f32 %v378, %v567
      %v569 = vadd.f32 %v565, %v568
      %s570 = sld [smem:[#allocation8 + $0xc]]
      %v571 = vstv %s570
      %v572 = vadd.f32 %v569, %v571
      %v573 = vmax.f32 %v572, 0.0
      %s574 = sld [smem:[#allocation10 + $0xc]]
      %v575 = vstv %s574
      %v576 = vmul.f32 %v573, %v575
      %v577 = vadd.f32 %v562, %v576
      %s578 = sld [smem:[#allocation7 + $0xd]]
      %v579 = vstv %s578
      %v580 = vmul.f32 %v380, %v579
      %s581 = sld [smem:[#allocation7 + $0x2d]]
      %v582 = vstv %s581
      %v583 = vmul.f32 %v378, %v582
      %v584 = vadd.f32 %v580, %v583
      %s585 = sld [smem:[#allocation8 + $0xd]]
      %v586 = vstv %s585
      %v587 = vadd.f32 %v584, %v586
      %v588 = vmax.f32 %v587, 0.0
      %s589 = sld [smem:[#allocation10 + $0xd]]
      %v590 = vstv %s589
      %v591 = vmul.f32 %v588, %v590
      %v592 = vadd.f32 %v577, %v591
      %s593 = sld [smem:[#allocation7 + $0xe]]
      %v594 = vstv %s593
      %v595 = vmul.f32 %v380, %v594
      %s596 = sld [smem:[#allocation7 + $0x2e]]
      %v597 = vstv %s596
      %v598 = vmul.f32 %v378, %v597
      %v599 = vadd.f32 %v595, %v598
      %s600 = sld [smem:[#allocation8 + $0xe]]
      %v601 = vstv %s600
      %v602 = vadd.f32 %v599, %v601
      %v603 = vmax.f32 %v602, 0.0
      %s604 = sld [smem:[#allocation10 + $0xe]]
      %v605 = vstv %s604
      %v606 = vmul.f32 %v603, %v605
      %v607 = vadd.f32 %v592, %v606
      %s608 = sld [smem:[#allocation7 + $0xf]]
      %v609 = vstv %s608
      %v610 = vmul.f32 %v380, %v609
      %s611 = sld [smem:[#allocation7 + $0x2f]]
      %v612 = vstv %s611
      %v613 = vmul.f32 %v378, %v612
      %v614 = vadd.f32 %v610, %v613
      %s615 = sld [smem:[#allocation8 + $0xf]]
      %v616 = vstv %s615
      %v617 = vadd.f32 %v614, %v616
      %v618 = vmax.f32 %v617, 0.0
      %s619 = sld [smem:[#allocation10 + $0xf]]
      %v620 = vstv %s619
      %v621 = vmul.f32 %v618, %v620
      %v622 = vadd.f32 %v607, %v621
      %s623 = sld [smem:[#allocation7 + $0x10]]
      %v624 = vstv %s623
      %v625 = vmul.f32 %v380, %v624
      %s626 = sld [smem:[#allocation7 + $0x30]]
      %v627 = vstv %s626
      %v628 = vmul.f32 %v378, %v627
      %v629 = vadd.f32 %v625, %v628
      %s630 = sld [smem:[#allocation8 + $0x10]]
      %v631 = vstv %s630
      %v632 = vadd.f32 %v629, %v631
      %v633 = vmax.f32 %v632, 0.0
      %s634 = sld [smem:[#allocation10 + $0x10]]
      %v635 = vstv %s634
      %v636 = vmul.f32 %v633, %v635
      %v637 = vadd.f32 %v622, %v636
      %s638 = sld [smem:[#allocation7 + $0x11]]
      %v639 = vstv %s638
      %v640 = vmul.f32 %v380, %v639
      %s641 = sld [smem:[#allocation7 + $0x31]]
      %v642 = vstv %s641
      %v643 = vmul.f32 %v378, %v642
      %v644 = vadd.f32 %v640, %v643
      %s645 = sld [smem:[#allocation8 + $0x11]]
      %v646 = vstv %s645
      %v647 = vadd.f32 %v644, %v646
      %v648 = vmax.f32 %v647, 0.0
      %s649 = sld [smem:[#allocation10 + $0x11]]
      %v650 = vstv %s649
      %v651 = vmul.f32 %v648, %v650
      %v652 = vadd.f32 %v637, %v651
      %s653 = sld [smem:[#allocation7 + $0x12]]
      %v654 = vstv %s653
      %v655 = vmul.f32 %v380, %v654
      %s656 = sld [smem:[#allocation7 + $0x32]]
      %v657 = vstv %s656
      %v658 = vmul.f32 %v378, %v657
      %v659 = vadd.f32 %v655, %v658
      %s660 = sld [smem:[#allocation8 + $0x12]]
      %v661 = vstv %s660
      %v662 = vadd.f32 %v659, %v661
      %v663 = vmax.f32 %v662, 0.0
      %s664 = sld [smem:[#allocation10 + $0x12]]
      %v665 = vstv %s664
      %v666 = vmul.f32 %v663, %v665
      %v667 = vadd.f32 %v652, %v666
      %s668 = sld [smem:[#allocation7 + $0x13]]
      %v669 = vstv %s668
      %v670 = vmul.f32 %v380, %v669
      %s671 = sld [smem:[#allocation7 + $0x33]]
      %v672 = vstv %s671
      %v673 = vmul.f32 %v378, %v672
      %v674 = vadd.f32 %v670, %v673
      %s675 = sld [smem:[#allocation8 + $0x13]]
      %v676 = vstv %s675
      %v677 = vadd.f32 %v674, %v676
      %v678 = vmax.f32 %v677, 0.0
      %s679 = sld [smem:[#allocation10 + $0x13]]
      %v680 = vstv %s679
      %v681 = vmul.f32 %v678, %v680
      %v682 = vadd.f32 %v667, %v681
      %s683 = sld [smem:[#allocation7 + $0x14]]
      %v684 = vstv %s683
      %v685 = vmul.f32 %v380, %v684
      %s686 = sld [smem:[#allocation7 + $0x34]]
      %v687 = vstv %s686
      %v688 = vmul.f32 %v378, %v687
      %v689 = vadd.f32 %v685, %v688
      %s690 = sld [smem:[#allocation8 + $0x14]]
      %v691 = vstv %s690
      %v692 = vadd.f32 %v689, %v691
      %v693 = vmax.f32 %v692, 0.0
      %s694 = sld [smem:[#allocation10 + $0x14]]
      %v695 = vstv %s694
      %v696 = vmul.f32 %v693, %v695
      %v697 = vadd.f32 %v682, %v696
      %s698 = sld [smem:[#allocation7 + $0x15]]
      %v699 = vstv %s698
      %v700 = vmul.f32 %v380, %v699
      %s701 = sld [smem:[#allocation7 + $0x35]]
      %v702 = vstv %s701
      %v703 = vmul.f32 %v378, %v702
      %v704 = vadd.f32 %v700, %v703
      %s705 = sld [smem:[#allocation8 + $0x15]]
      %v706 = vstv %s705
      %v707 = vadd.f32 %v704, %v706
      %v708 = vmax.f32 %v707, 0.0
      %s709 = sld [smem:[#allocation10 + $0x15]]
      %v710 = vstv %s709
      %v711 = vmul.f32 %v708, %v710
      %v712 = vadd.f32 %v697, %v711
      %s713 = sld [smem:[#allocation7 + $0x16]]
      %v714 = vstv %s713
      %v715 = vmul.f32 %v380, %v714
      %s716 = sld [smem:[#allocation7 + $0x36]]
      %v717 = vstv %s716
      %v718 = vmul.f32 %v378, %v717
      %v719 = vadd.f32 %v715, %v718
      %s720 = sld [smem:[#allocation8 + $0x16]]
      %v721 = vstv %s720
      %v722 = vadd.f32 %v719, %v721
      %v723 = vmax.f32 %v722, 0.0
      %s724 = sld [smem:[#allocation10 + $0x16]]
      %v725 = vstv %s724
      %v726 = vmul.f32 %v723, %v725
      %v727 = vadd.f32 %v712, %v726
      %s728 = sld [smem:[#allocation7 + $0x17]]
      %v729 = vstv %s728
      %v730 = vmul.f32 %v380, %v729
      %s731 = sld [smem:[#allocation7 + $0x37]]
      %v732 = vstv %s731
      %v733 = vmul.f32 %v378, %v732
      %v734 = vadd.f32 %v730, %v733
      %s735 = sld [smem:[#allocation8 + $0x17]]
      %v736 = vstv %s735
      %v737 = vadd.f32 %v734, %v736
      %v738 = vmax.f32 %v737, 0.0
      %s739 = sld [smem:[#allocation10 + $0x17]]
      %v740 = vstv %s739
      %v741 = vmul.f32 %v738, %v740
      %v742 = vadd.f32 %v727, %v741
      %s743 = sld [smem:[#allocation7 + $0x18]]
      %v744 = vstv %s743
      %v745 = vmul.f32 %v380, %v744
      %s746 = sld [smem:[#allocation7 + $0x38]]
      %v747 = vstv %s746
      %v748 = vmul.f32 %v378, %v747
      %v749 = vadd.f32 %v745, %v748
      %s750 = sld [smem:[#allocation8 + $0x18]]
      %v751 = vstv %s750
      %v752 = vadd.f32 %v749, %v751
      %v753 = vmax.f32 %v752, 0.0
      %s754 = sld [smem:[#allocation10 + $0x18]]
      %v755 = vstv %s754
      %v756 = vmul.f32 %v753, %v755
      %v757 = vadd.f32 %v742, %v756
      %s758 = sld [smem:[#allocation7 + $0x19]]
      %v759 = vstv %s758
      %v760 = vmul.f32 %v380, %v759
      %s761 = sld [smem:[#allocation7 + $0x39]]
      %v762 = vstv %s761
      %v763 = vmul.f32 %v378, %v762
      %v764 = vadd.f32 %v760, %v763
      %s765 = sld [smem:[#allocation8 + $0x19]]
      %v766 = vstv %s765
      %v767 = vadd.f32 %v764, %v766
      %v768 = vmax.f32 %v767, 0.0
      %s769 = sld [smem:[#allocation10 + $0x19]]
      %v770 = vstv %s769
      %v771 = vmul.f32 %v768, %v770
      %v772 = vadd.f32 %v757, %v771
      %s773 = sld [smem:[#allocation7 + $0x1a]]
      %v774 = vstv %s773
      %v775 = vmul.f32 %v380, %v774
      %s776 = sld [smem:[#allocation7 + $0x3a]]
      %v777 = vstv %s776
      %v778 = vmul.f32 %v378, %v777
      %v779 = vadd.f32 %v775, %v778
      %s780 = sld [smem:[#allocation8 + $0x1a]]
      %v781 = vstv %s780
      %v782 = vadd.f32 %v779, %v781
      %v783 = vmax.f32 %v782, 0.0
      %s784 = sld [smem:[#allocation10 + $0x1a]]
      %v785 = vstv %s784
      %v786 = vmul.f32 %v783, %v785
      %v787 = vadd.f32 %v772, %v786
      %s788 = sld [smem:[#allocation7 + $0x1b]]
      %v789 = vstv %s788
      %v790 = vmul.f32 %v380, %v789
      %s791 = sld [smem:[#allocation7 + $0x3b]]
      %v792 = vstv %s791
      %v793 = vmul.f32 %v378, %v792
      %v794 = vadd.f32 %v790, %v793
      %s795 = sld [smem:[#allocation8 + $0x1b]]
      %v796 = vstv %s795
      %v797 = vadd.f32 %v794, %v796
      %v798 = vmax.f32 %v797, 0.0
      %s799 = sld [smem:[#allocation10 + $0x1b]]
      %v800 = vstv %s799
      %v801 = vmul.f32 %v798, %v800
      %v802 = vadd.f32 %v787, %v801
      %s803 = sld [smem:[#allocation7 + $0x1c]]
      %v804 = vstv %s803
      %v805 = vmul.f32 %v380, %v804
      %s806 = sld [smem:[#allocation7 + $0x3c]]
      %v807 = vstv %s806
      %v808 = vmul.f32 %v378, %v807
      %v809 = vadd.f32 %v805, %v808
      %s810 = sld [smem:[#allocation8 + $0x1c]]
      %v811 = vstv %s810
      %v812 = vadd.f32 %v809, %v811
      %v813 = vmax.f32 %v812, 0.0
      %s814 = sld [smem:[#allocation10 + $0x1c]]
      %v815 = vstv %s814
      %v816 = vmul.f32 %v813, %v815
      %v817 = vadd.f32 %v802, %v816
      %s818 = sld [smem:[#allocation7 + $0x1d]]
      %v819 = vstv %s818
      %v820 = vmul.f32 %v380, %v819
      %s821 = sld [smem:[#allocation7 + $0x3d]]
      %v822 = vstv %s821
      %v823 = vmul.f32 %v378, %v822
      %v824 = vadd.f32 %v820, %v823
      %s825 = sld [smem:[#allocation8 + $0x1d]]
      %v826 = vstv %s825
      %v827 = vadd.f32 %v824, %v826
      %v828 = vmax.f32 %v827, 0.0
      %s829 = sld [smem:[#allocation10 + $0x1d]]
      %v830 = vstv %s829
      %v831 = vmul.f32 %v828, %v830
      %v832 = vadd.f32 %v817, %v831
      %s833 = sld [smem:[#allocation7 + $0x1e]]
      %v834 = vstv %s833
      %v835 = vmul.f32 %v380, %v834
      %s836 = sld [smem:[#allocation7 + $0x3e]]
      %v837 = vstv %s836
      %v838 = vmul.f32 %v378, %v837
      %v839 = vadd.f32 %v835, %v838
      %s840 = sld [smem:[#allocation8 + $0x1e]]
      %v841 = vstv %s840
      %v842 = vadd.f32 %v839, %v841
      %v843 = vmax.f32 %v842, 0.0
      %s844 = sld [smem:[#allocation10 + $0x1e]]
      %v845 = vstv %s844
      %v846 = vmul.f32 %v843, %v845
      %v847 = vadd.f32 %v832, %v846
      %s848 = sld [smem:[#allocation7 + $0x1f]]
      %v849 = vstv %s848
      %v850 = vmul.f32 %v380, %v849
      %s851 = sld [smem:[#allocation7 + $0x3f]]
      %v852 = vstv %s851
      %v853 = vmul.f32 %v378, %v852
      %v854 = vadd.f32 %v850, %v853
      %s855 = sld [smem:[#allocation8 + $0x1f]]
      %v856 = vstv %s855
      %v857 = vadd.f32 %v854, %v856
      %v858 = vmax.f32 %v857, 0.0
      %s859 = sld [smem:[#allocation10 + $0x1f]]
      %v860 = vstv %s859
      %v861 = vmul.f32 %v858, %v860
      %v862 = vadd.f32 %v847, %v861
      %863 = vst [vmem:[%s8] sm:$0xf] %v862
    $region57: #{mar_li_net_forward.3} parent=1 // pred_fallthru
      _
    // Predicated region
    $region58: #{mar_li_net_forward.3} parent=1 // pred_check
      _
    $region59: #{mar_li_net_forward.3} parent=1 // pred_check_branch
      %865 = sbr.rel (0) target = $region61
    $region60: #{mar_li_net_forward.3} parent=1 // pred_region
      _
    $region61: #{mar_li_net_forward.3} parent=1 // pred_fallthru
      _
    // Predicated region
    $region62: #{mar_li_net_forward.3} parent=1 // pred_check
      _
    $region63: #{mar_li_net_forward.3} parent=1 // pred_check_branch
      %867 = sbr.rel (0) target = $region65
    $region64: #{mar_li_net_forward.3} parent=1 // pred_region
      _
    $region65: #{mar_li_net_forward.3} parent=1 // pred_fallthru
      _
    // Predicated region
    $region66: #{mar_li_net_forward.3} parent=1 // pred_check
      _
    $region67: #{mar_li_net_forward.3} parent=1 // pred_check_branch
      %869 = sbr.rel (0) target = $region69
    $region68: #{mar_li_net_forward.3} parent=1 // pred_region
      _
    $region69: #{mar_li_net_forward.3} parent=1 // pred_fallthru
      _
    // Predicated region
    $region70: #{mar_li_net_forward.3} parent=1 // pred_check
      _
    $region71: #{mar_li_net_forward.3} parent=1 // pred_check_branch
      %871 = sbr.rel (0) target = $region73
    $region72: #{mar_li_net_forward.3} parent=1 // pred_region
      _
    $region73: #{mar_li_net_forward.3} parent=1 // pred_fallthru
      _
    %872 = vsyncpa [#allocation5], 1
    %873 = vsyncpa [#allocation6], 1
    %874 = vsyncpa [#allocation9], 1

</llo_original>
